<compile_context>
chip_gen: v5e
topology: v5e:2x2
jax: 0.10.0
libtpu: 0.0.40
codegen_flags: <defaults>
</compile_context>

<pallas_src>
import functools

import jax
import jax.numpy as jnp
import numpy as np
from jax.experimental import pallas as pl
from jax.experimental.pallas import tpu as pltpu


def _round_up(x, m):
    return (x + m - 1) // m * m


def _conv_bank_kernel(x_ref, w_ref, b_ref, o_ref, *, k, wp, rows, stride, wo, l1,
                      use_vpu):
    """One grid step: a block of (batch*group) items x a block of output rows.

    x_ref: (B, 1, basis_size, f_blk)  flat padded input slab (rows + halo), bf16
    w_ref: (k*k, n_basis, basis_size) filter bank, tap-major, bf16
    b_ref: (n_basis, 1)               bias, f32
    o_ref: (B, n_basis, rows, wo)     final NCHW output block
    """
    n_items = x_ref.shape[0]
    basis_size = x_ref.shape[2]
    n_basis = o_ref.shape[1]
    bias = b_ref[...]                                            # (n_basis, 1) f32

    for b in range(n_items):
        acc = jnp.zeros((n_basis, l1), jnp.float32)
        for kh in range(k):
            for kw in range(k):
                t = kh * k + kw
                tap = x_ref[b, 0, :, pl.ds(kh * wp + kw, l1)]    # (basis_size, l1) bf16
                if use_vpu:
                    # Tiny filter bank: broadcast-FMA on the VPU with exact f32
                    # products; avoids tiny-contraction MXU pushes / MRF drains.
                    tap32 = tap.astype(jnp.float32)
                    w32 = w_ref[t].astype(jnp.float32)           # (n_basis, basis_size)
                    for c in range(basis_size):
                        acc = acc + w32[:, c:c + 1] * tap32[c:c + 1, :]
                else:
                    acc = acc + jnp.dot(w_ref[t], tap,
                                        preferred_element_type=jnp.float32)
        # Per-output-row extraction of the valid (strided) columns, fused with the
        # bias add and the store of the final NCHW layout (no post-kernel passes).
        for rr in range(rows):
            base = rr * stride * wp
            row = acc[:, base:base + (wo - 1) * stride + 1:stride]  # (n_basis, wo)
            o_ref[b, :, rr, :] = (row + bias).astype(o_ref.dtype)


def conv_basis_forward(x, weight, bias, stride=1, *,
                       compute_dtype=jnp.bfloat16,
                       items_per_block=None, rows_per_block=None,
                       vmem_fraction=0.8):
    """Equivalent of conv_basis.forward.

    x:      (N, in_channels, H, W)
    weight: (n_basis, basis_size, k, k) shared filter bank
    bias:   (n_basis,) or None
    returns (N, group * n_basis, Ho, Wo), group = in_channels // basis_size.
    """
    N, Cin, H, W = x.shape
    n_basis, basis_size, k, k2 = weight.shape
    assert k == k2
    assert Cin % basis_size == 0
    group = Cin // basis_size
    pad = k // 2
    NG = N * group

    Hp, Wp = H + 2 * pad, W + 2 * pad
    Wp_al = _round_up(Wp, 128)                  # lane-aligned padded width
    Ho = (Hp - k) // stride + 1
    Wo = (Wp - k) // stride + 1

    out_dtype = x.dtype
    ce = jnp.dtype(compute_dtype).itemsize
    oe = jnp.dtype(out_dtype).itemsize

    # ---- generation-aware VMEM budget --------------------------------------
    try:
        vmem_cap = int(pltpu.get_tpu_info().vmem_capacity_bytes)
    except Exception:                            # pragma: no cover
        vmem_cap = 64 * 2 ** 20                  # conservative (v7x physical size)
    vmem_cap = max(vmem_cap, 32 * 2 ** 20)
    budget = int(vmem_cap * vmem_fraction)

    def step_bytes(b_ng, r):
        r_rows1 = (r - 1) * stride + 1           # stride-1 rows computed per block
        f_blk_ = (r_rows1 + k) * Wp_al           # input slab incl. halo + overhang row
        l1_ = r_rows1 * Wp_al
        in_blk = b_ng * basis_size * f_blk_ * ce
        out_blk = b_ng * n_basis * r * Wo * oe
        w_blk = k * k * n_basis * basis_size * ce + n_basis * 4
        dbuf = 2 * (in_blk + out_blk + w_blk)    # BlockSpec double-buffering
        live = 2 * n_basis * l1_ * 4 + 2 * basis_size * l1_ * ce  # acc + tap temps
        return dbuf + live + (2 << 20)           # + compiler scratch slack

    # ---- tile selection (rows per block, items per block) -------------------
    if rows_per_block is not None:
        assert Ho % rows_per_block == 0, (Ho, rows_per_block)
        assert rows_per_block % 8 == 0 or rows_per_block == Ho
        R = rows_per_block
    else:
        r_cands = [r for r in range(min(Ho, 64), 0, -1)
                   if Ho % r == 0 and r % 8 == 0] or [Ho]
        R = next((r for r in r_cands if step_bytes(1, r) <= budget), r_cands[-1])

    b_cands = [b for b in range(min(NG, 8), 0, -1) if NG % b == 0]
    if items_per_block is not None:
        assert NG % items_per_block == 0, (NG, items_per_block)
        B = items_per_block
    else:
        B = next((b for b in b_cands if step_bytes(b, R) <= budget), 1)
        # v7x megacore: prefer >= 2 balanced grid tiles so both TCs get work.
        while (NG // B) * (Ho // R) < 2 and B > 1:
            B = next(b for b in b_cands if b < B)

    n_rb = Ho // R
    r_rows1 = (R - 1) * stride + 1
    r_in_ext = r_rows1 + k                       # halo rows + 1 overhang row
    f_blk = r_in_ext * Wp_al
    l1 = r_rows1 * Wp_al

    # ---- input prep: group-fold, cast, pad, per-row-block slabs (with halo) --
    xg = x.reshape(NG, basis_size, H, W).astype(compute_dtype)
    xp = jnp.pad(xg, ((0, 0), (0, 0), (pad, pad + 1), (pad, Wp_al - W - pad)))
    row_idx = (np.arange(n_rb)[:, None] * (R * stride)
               + np.arange(r_in_ext)[None, :])   # (n_rb, r_in_ext), halo duplicated
    xc = xp[:, :, row_idx, :]                    # (NG, bs, n_rb, r_in_ext, Wp_al)
    xflat = xc.transpose(0, 2, 1, 3, 4).reshape(NG, n_rb, basis_size, f_blk)

    # (kh, kw) tap-major weight layout; bias as (n_basis, 1) f32.
    w_taps = weight.transpose(2, 3, 0, 1).reshape(k * k, n_basis, basis_size)
    w_taps = w_taps.astype(compute_dtype)
    if bias is None:
        bias = jnp.zeros((n_basis,), jnp.float32)
    b2d = bias.reshape(n_basis, 1).astype(jnp.float32)

    # Tiny banks (like this module config) go to the VPU; big banks use the MXU.
    use_vpu = (n_basis <= 8) and (basis_size * k * k <= 32)

    cost = pl.CostEstimate(
        flops=2 * NG * n_rb * k * k * n_basis * basis_size * l1,
        transcendentals=0,
        bytes_accessed=int(xflat.size * ce + w_taps.size * ce + b2d.size * 4
                           + NG * n_basis * Ho * Wo * oe))

    kernel = functools.partial(
        _conv_bank_kernel, k=k, wp=Wp_al, rows=R, stride=stride, wo=Wo, l1=l1,
        use_vpu=use_vpu)

    out = pl.pallas_call(
        kernel,
        out_shape=jax.ShapeDtypeStruct((NG, n_basis, Ho, Wo), out_dtype),
        grid_spec=pltpu.PrefetchScalarGridSpec(
            num_scalar_prefetch=0,
            grid=(NG // B, n_rb),
            in_specs=[
                pl.BlockSpec((B, 1, basis_size, f_blk), lambda g, r: (g, r, 0, 0)),
                pl.BlockSpec((k * k, n_basis, basis_size), lambda g, r: (0, 0, 0)),
                pl.BlockSpec((n_basis, 1), lambda g, r: (0, 0)),
            ],
            out_specs=pl.BlockSpec((B, n_basis, R, Wo), lambda g, r: (g, 0, r, 0)),
        ),
        compiler_params=pltpu.CompilerParams(
            dimension_semantics=("parallel", "parallel"),
            vmem_limit_bytes=budget),
        cost_estimate=cost,
    )(xflat, w_taps, b2d)

    # (N*group, n_basis, Ho, Wo) -> (N, group*n_basis, Ho, Wo): free reshape only.
    return out.reshape(N, group * n_basis, Ho, Wo)


def conv_basis_reference(x, weight, bias, stride=1):
    """Pure-JAX reference (grouped conv with the bank tiled per group)."""
    N, C, H, W = x.shape
    n_basis, basis_size, k, _ = weight.shape
    group = C // basis_size
    pad = k // 2
    w_g = jnp.tile(weight, (group, 1, 1, 1))
    out = jax.lax.conv_general_dilated(
        x, w_g, window_strides=(stride, stride),
        padding=[(pad, pad), (pad, pad)],
        dimension_numbers=("NCHW", "OIHW", "NCHW"),
        feature_group_count=group,
        precision=jax.lax.Precision.HIGHEST)
    b_g = jnp.tile(bias, group)
    return out + b_g[None, :, None, None]


if __name__ == "__main__":
    # Module config: in_channels=4, basis_size=2 -> group=2, n_basis=4, k=3.
    N, in_channels, H, W = 2, 4, 16, 16
    basis_size, n_basis, kernel_size = 2, 4, 3

    key = jax.random.PRNGKey(0)
    kx, kw_, kb = jax.random.split(key, 3)
    x = jax.random.normal(kx, (N, in_channels, H, W), dtype=jnp.float32)
    weight = jax.random.normal(
        kw_, (n_basis, basis_size, kernel_size, kernel_size), dtype=jnp.float32) * 0.1
    bias = jax.random.normal(kb, (n_basis,), dtype=jnp.float32)

    group = in_channels // basis_size
    x_bf = x.astype(jnp.bfloat16).astype(jnp.float32)
    w_bf = weight.astype(jnp.bfloat16).astype(jnp.float32)

    # Auto-tiled path (stride 1).
    out = jax.block_until_ready(conv_basis_forward(x, weight, bias, stride=1))
    assert out.shape == (N, group * n_basis, H, W), out.shape

    # Tight check: reference on the same bf16-rounded operands (f32 accumulation
    # both sides), so only accumulation-order noise remains.
    ref_bf = jax.block_until_ready(conv_basis_reference(x_bf, w_bf, bias, stride=1))
    np.testing.assert_allclose(np.asarray(out), np.asarray(ref_bf),
                               rtol=1e-3, atol=1e-3)

    # Loose check against the full-f32 module semantics (bf16 input rounding).
    ref = jax.block_until_ready(conv_basis_reference(x, weight, bias, stride=1))
    np.testing.assert_allclose(np.asarray(out), np.asarray(ref),
                               rtol=5e-2, atol=5e-2)

    # Explicit multi-tile path: exercises item batching AND spatial row tiling.
    out_t = jax.block_until_ready(conv_basis_forward(
        x, weight, bias, stride=1, items_per_block=2, rows_per_block=8))
    np.testing.assert_allclose(np.asarray(out_t), np.asarray(ref_bf),
                               rtol=1e-3, atol=1e-3)

    # Strided path: subsampling is fused into the in-kernel store (no post pass).
    out_s2 = jax.block_until_ready(conv_basis_forward(x, weight, bias, stride=2))
    ref_s2 = jax.block_until_ready(conv_basis_reference(x_bf, w_bf, bias, stride=2))
    assert out_s2.shape == ref_s2.shape, (out_s2.shape, ref_s2.shape)
    np.testing.assert_allclose(np.asarray(out_s2), np.asarray(ref_s2),
                               rtol=1e-3, atol=1e-3)

    print("KERNEL_OK")
</pallas_src>

<mosaic_0001>
module attributes {stable_mosaic.version = 11 : i64} {
  func.func @_conv_bank_kernel(%arg0: i32, %arg1: i32, %arg2: memref<2x1x2x2432xbf16, #tpu.memory_space<vmem>>, %arg3: memref<9x4x2xbf16, #tpu.memory_space<vmem>>, %arg4: memref<4x1xf32, #tpu.memory_space<vmem>>, %arg5: memref<2x4x16x16xf32, #tpu.memory_space<vmem>>) attributes {dimension_semantics = [#tpu.dimension_semantics<parallel>, #tpu.dimension_semantics<parallel>], iteration_bounds = array<i64: 2, 1>, scalar_prefetch = 0 : i64, scratch_operands = 0 : i64, tpu.core_type = #tpu.core_type<tc>, window_params = [{transform_indices = @transform_0, window_bounds = array<i64: 2, 1, 2, 2432>}, {pipeline_mode = #tpu.pipeline_mode<synchronous>, transform_indices = @transform_1, window_bounds = array<i64: 9, 4, 2>}, {pipeline_mode = #tpu.pipeline_mode<synchronous>, transform_indices = @transform_2, window_bounds = array<i64: 4, 1>}, {transform_indices = @transform_3, window_bounds = array<i64: 2, 4, 16, 16>}]} {
    %c0 = arith.constant 0 : index
    %c0_0 = arith.constant 0 : index
    %0 = vector.load %arg4[%c0, %c0_0] : memref<4x1xf32, #tpu.memory_space<vmem>>, vector<4x1xf32>
    %cst = arith.constant 0.000000e+00 : f32
    %1 = vector.broadcast %cst : f32 to vector<4x2048xf32>
    %c0_1 = arith.constant 0 : index
    %c0_2 = arith.constant 0 : index
    %c0_3 = arith.constant 0 : index
    %c0_4 = arith.constant 0 : index
    %2 = vector.load %arg2[%c0_1, %c0_2, %c0_3, %c0_4] : memref<2x1x2x2432xbf16, #tpu.memory_space<vmem>>, vector<1x1x2x2048xbf16>
    %3 = vector.shape_cast %2 : vector<1x1x2x2048xbf16> to vector<2x2048xbf16>
    %4 = arith.extf %3 : vector<2x2048xbf16> to vector<2x2048xf32>
    %c0_5 = arith.constant 0 : index
    %c0_6 = arith.constant 0 : index
    %c0_7 = arith.constant 0 : index
    %5 = vector.load %arg3[%c0_5, %c0_6, %c0_7] : memref<9x4x2xbf16, #tpu.memory_space<vmem>>, vector<1x4x2xbf16>
    %6 = vector.shape_cast %5 : vector<1x4x2xbf16> to vector<4x2xbf16>
    %7 = arith.extf %6 : vector<4x2xbf16> to vector<4x2xf32>
    %8 = vector.extract_strided_slice %7 {offsets = [0, 0], sizes = [4, 1], strides = [1, 1]} : vector<4x2xf32> to vector<4x1xf32>
    %9 = vector.extract_strided_slice %4 {offsets = [0, 0], sizes = [1, 2048], strides = [1, 1]} : vector<2x2048xf32> to vector<1x2048xf32>
    %10 = vector.broadcast %8 : vector<4x1xf32> to vector<4x2048xf32>
    %11 = vector.broadcast %9 : vector<1x2048xf32> to vector<4x2048xf32>
    %12 = arith.mulf %10, %11 : vector<4x2048xf32>
    %13 = arith.addf %1, %12 : vector<4x2048xf32>
    %14 = vector.extract_strided_slice %7 {offsets = [0, 1], sizes = [4, 1], strides = [1, 1]} : vector<4x2xf32> to vector<4x1xf32>
    %15 = vector.extract_strided_slice %4 {offsets = [1, 0], sizes = [1, 2048], strides = [1, 1]} : vector<2x2048xf32> to vector<1x2048xf32>
    %16 = vector.broadcast %14 : vector<4x1xf32> to vector<4x2048xf32>
    %17 = vector.broadcast %15 : vector<1x2048xf32> to vector<4x2048xf32>
    %18 = arith.mulf %16, %17 : vector<4x2048xf32>
    %19 = arith.addf %13, %18 : vector<4x2048xf32>
    %c0_8 = arith.constant 0 : index
    %c0_9 = arith.constant 0 : index
    %c0_10 = arith.constant 0 : index
    %c1 = arith.constant 1 : index
    %20 = vector.load %arg2[%c0_8, %c0_9, %c0_10, %c1] : memref<2x1x2x2432xbf16, #tpu.memory_space<vmem>>, vector<1x1x2x2048xbf16>
    %21 = vector.shape_cast %20 : vector<1x1x2x2048xbf16> to vector<2x2048xbf16>
    %22 = arith.extf %21 : vector<2x2048xbf16> to vector<2x2048xf32>
    %c1_11 = arith.constant 1 : index
    %c0_12 = arith.constant 0 : index
    %c0_13 = arith.constant 0 : index
    %23 = vector.load %arg3[%c1_11, %c0_12, %c0_13] : memref<9x4x2xbf16, #tpu.memory_space<vmem>>, vector<1x4x2xbf16>
    %24 = vector.shape_cast %23 : vector<1x4x2xbf16> to vector<4x2xbf16>
    %25 = arith.extf %24 : vector<4x2xbf16> to vector<4x2xf32>
    %26 = vector.extract_strided_slice %25 {offsets = [0, 0], sizes = [4, 1], strides = [1, 1]} : vector<4x2xf32> to vector<4x1xf32>
    %27 = vector.extract_strided_slice %22 {offsets = [0, 0], sizes = [1, 2048], strides = [1, 1]} : vector<2x2048xf32> to vector<1x2048xf32>
    %28 = vector.broadcast %26 : vector<4x1xf32> to vector<4x2048xf32>
    %29 = vector.broadcast %27 : vector<1x2048xf32> to vector<4x2048xf32>
    %30 = arith.mulf %28, %29 : vector<4x2048xf32>
    %31 = arith.addf %19, %30 : vector<4x2048xf32>
    %32 = vector.extract_strided_slice %25 {offsets = [0, 1], sizes = [4, 1], strides = [1, 1]} : vector<4x2xf32> to vector<4x1xf32>
    %33 = vector.extract_strided_slice %22 {offsets = [1, 0], sizes = [1, 2048], strides = [1, 1]} : vector<2x2048xf32> to vector<1x2048xf32>
    %34 = vector.broadcast %32 : vector<4x1xf32> to vector<4x2048xf32>
    %35 = vector.broadcast %33 : vector<1x2048xf32> to vector<4x2048xf32>
    %36 = arith.mulf %34, %35 : vector<4x2048xf32>
    %37 = arith.addf %31, %36 : vector<4x2048xf32>
    %c0_14 = arith.constant 0 : index
    %c0_15 = arith.constant 0 : index
    %c0_16 = arith.constant 0 : index
    %c2 = arith.constant 2 : index
    %38 = vector.load %arg2[%c0_14, %c0_15, %c0_16, %c2] : memref<2x1x2x2432xbf16, #tpu.memory_space<vmem>>, vector<1x1x2x2048xbf16>
    %39 = vector.shape_cast %38 : vector<1x1x2x2048xbf16> to vector<2x2048xbf16>
    %40 = arith.extf %39 : vector<2x2048xbf16> to vector<2x2048xf32>
    %c2_17 = arith.constant 2 : index
    %c0_18 = arith.constant 0 : index
    %c0_19 = arith.constant 0 : index
    %41 = vector.load %arg3[%c2_17, %c0_18, %c0_19] : memref<9x4x2xbf16, #tpu.memory_space<vmem>>, vector<1x4x2xbf16>
    %42 = vector.shape_cast %41 : vector<1x4x2xbf16> to vector<4x2xbf16>
    %43 = arith.extf %42 : vector<4x2xbf16> to vector<4x2xf32>
    %44 = vector.extract_strided_slice %43 {offsets = [0, 0], sizes = [4, 1], strides = [1, 1]} : vector<4x2xf32> to vector<4x1xf32>
    %45 = vector.extract_strided_slice %40 {offsets = [0, 0], sizes = [1, 2048], strides = [1, 1]} : vector<2x2048xf32> to vector<1x2048xf32>
    %46 = vector.broadcast %44 : vector<4x1xf32> to vector<4x2048xf32>
    %47 = vector.broadcast %45 : vector<1x2048xf32> to vector<4x2048xf32>
    %48 = arith.mulf %46, %47 : vector<4x2048xf32>
    %49 = arith.addf %37, %48 : vector<4x2048xf32>
    %50 = vector.extract_strided_slice %43 {offsets = [0, 1], sizes = [4, 1], strides = [1, 1]} : vector<4x2xf32> to vector<4x1xf32>
    %51 = vector.extract_strided_slice %40 {offsets = [1, 0], sizes = [1, 2048], strides = [1, 1]} : vector<2x2048xf32> to vector<1x2048xf32>
    %52 = vector.broadcast %50 : vector<4x1xf32> to vector<4x2048xf32>
    %53 = vector.broadcast %51 : vector<1x2048xf32> to vector<4x2048xf32>
    %54 = arith.mulf %52, %53 : vector<4x2048xf32>
    %55 = arith.addf %49, %54 : vector<4x2048xf32>
    %c0_20 = arith.constant 0 : index
    %c0_21 = arith.constant 0 : index
    %c0_22 = arith.constant 0 : index
    %c128 = arith.constant 128 : index
    %56 = vector.load %arg2[%c0_20, %c0_21, %c0_22, %c128] : memref<2x1x2x2432xbf16, #tpu.memory_space<vmem>>, vector<1x1x2x2048xbf16>
    %57 = vector.shape_cast %56 : vector<1x1x2x2048xbf16> to vector<2x2048xbf16>
    %58 = arith.extf %57 : vector<2x2048xbf16> to vector<2x2048xf32>
    %c3 = arith.constant 3 : index
    %c0_23 = arith.constant 0 : index
    %c0_24 = arith.constant 0 : index
    %59 = vector.load %arg3[%c3, %c0_23, %c0_24] : memref<9x4x2xbf16, #tpu.memory_space<vmem>>, vector<1x4x2xbf16>
    %60 = vector.shape_cast %59 : vector<1x4x2xbf16> to vector<4x2xbf16>
    %61 = arith.extf %60 : vector<4x2xbf16> to vector<4x2xf32>
    %62 = vector.extract_strided_slice %61 {offsets = [0, 0], sizes = [4, 1], strides = [1, 1]} : vector<4x2xf32> to vector<4x1xf32>
    %63 = vector.extract_strided_slice %58 {offsets = [0, 0], sizes = [1, 2048], strides = [1, 1]} : vector<2x2048xf32> to vector<1x2048xf32>
    %64 = vector.broadcast %62 : vector<4x1xf32> to vector<4x2048xf32>
    %65 = vector.broadcast %63 : vector<1x2048xf32> to vector<4x2048xf32>
    %66 = arith.mulf %64, %65 : vector<4x2048xf32>
    %67 = arith.addf %55, %66 : vector<4x2048xf32>
    %68 = vector.extract_strided_slice %61 {offsets = [0, 1], sizes = [4, 1], strides = [1, 1]} : vector<4x2xf32> to vector<4x1xf32>
    %69 = vector.extract_strided_slice %58 {offsets = [1, 0], sizes = [1, 2048], strides = [1, 1]} : vector<2x2048xf32> to vector<1x2048xf32>
    %70 = vector.broadcast %68 : vector<4x1xf32> to vector<4x2048xf32>
    %71 = vector.broadcast %69 : vector<1x2048xf32> to vector<4x2048xf32>
    %72 = arith.mulf %70, %71 : vector<4x2048xf32>
    %73 = arith.addf %67, %72 : vector<4x2048xf32>
    %c0_25 = arith.constant 0 : index
    %c0_26 = arith.constant 0 : index
    %c0_27 = arith.constant 0 : index
    %c129 = arith.constant 129 : index
    %74 = vector.load %arg2[%c0_25, %c0_26, %c0_27, %c129] : memref<2x1x2x2432xbf16, #tpu.memory_space<vmem>>, vector<1x1x2x2048xbf16>
    %75 = vector.shape_cast %74 : vector<1x1x2x2048xbf16> to vector<2x2048xbf16>
    %76 = arith.extf %75 : vector<2x2048xbf16> to vector<2x2048xf32>
    %c4 = arith.constant 4 : index
    %c0_28 = arith.constant 0 : index
    %c0_29 = arith.constant 0 : index
    %77 = vector.load %arg3[%c4, %c0_28, %c0_29] : memref<9x4x2xbf16, #tpu.memory_space<vmem>>, vector<1x4x2xbf16>
    %78 = vector.shape_cast %77 : vector<1x4x2xbf16> to vector<4x2xbf16>
    %79 = arith.extf %78 : vector<4x2xbf16> to vector<4x2xf32>
    %80 = vector.extract_strided_slice %79 {offsets = [0, 0], sizes = [4, 1], strides = [1, 1]} : vector<4x2xf32> to vector<4x1xf32>
    %81 = vector.extract_strided_slice %76 {offsets = [0, 0], sizes = [1, 2048], strides = [1, 1]} : vector<2x2048xf32> to vector<1x2048xf32>
    %82 = vector.broadcast %80 : vector<4x1xf32> to vector<4x2048xf32>
    %83 = vector.broadcast %81 : vector<1x2048xf32> to vector<4x2048xf32>
    %84 = arith.mulf %82, %83 : vector<4x2048xf32>
    %85 = arith.addf %73, %84 : vector<4x2048xf32>
    %86 = vector.extract_strided_slice %79 {offsets = [0, 1], sizes = [4, 1], strides = [1, 1]} : vector<4x2xf32> to vector<4x1xf32>
    %87 = vector.extract_strided_slice %76 {offsets = [1, 0], sizes = [1, 2048], strides = [1, 1]} : vector<2x2048xf32> to vector<1x2048xf32>
    %88 = vector.broadcast %86 : vector<4x1xf32> to vector<4x2048xf32>
    %89 = vector.broadcast %87 : vector<1x2048xf32> to vector<4x2048xf32>
    %90 = arith.mulf %88, %89 : vector<4x2048xf32>
    %91 = arith.addf %85, %90 : vector<4x2048xf32>
    %c0_30 = arith.constant 0 : index
    %c0_31 = arith.constant 0 : index
    %c0_32 = arith.constant 0 : index
    %c130 = arith.constant 130 : index
    %92 = vector.load %arg2[%c0_30, %c0_31, %c0_32, %c130] : memref<2x1x2x2432xbf16, #tpu.memory_space<vmem>>, vector<1x1x2x2048xbf16>
    %93 = vector.shape_cast %92 : vector<1x1x2x2048xbf16> to vector<2x2048xbf16>
    %94 = arith.extf %93 : vector<2x2048xbf16> to vector<2x2048xf32>
    %c5 = arith.constant 5 : index
    %c0_33 = arith.constant 0 : index
    %c0_34 = arith.constant 0 : index
    %95 = vector.load %arg3[%c5, %c0_33, %c0_34] : memref<9x4x2xbf16, #tpu.memory_space<vmem>>, vector<1x4x2xbf16>
    %96 = vector.shape_cast %95 : vector<1x4x2xbf16> to vector<4x2xbf16>
    %97 = arith.extf %96 : vector<4x2xbf16> to vector<4x2xf32>
    %98 = vector.extract_strided_slice %97 {offsets = [0, 0], sizes = [4, 1], strides = [1, 1]} : vector<4x2xf32> to vector<4x1xf32>
    %99 = vector.extract_strided_slice %94 {offsets = [0, 0], sizes = [1, 2048], strides = [1, 1]} : vector<2x2048xf32> to vector<1x2048xf32>
    %100 = vector.broadcast %98 : vector<4x1xf32> to vector<4x2048xf32>
    %101 = vector.broadcast %99 : vector<1x2048xf32> to vector<4x2048xf32>
    %102 = arith.mulf %100, %101 : vector<4x2048xf32>
    %103 = arith.addf %91, %102 : vector<4x2048xf32>
    %104 = vector.extract_strided_slice %97 {offsets = [0, 1], sizes = [4, 1], strides = [1, 1]} : vector<4x2xf32> to vector<4x1xf32>
    %105 = vector.extract_strided_slice %94 {offsets = [1, 0], sizes = [1, 2048], strides = [1, 1]} : vector<2x2048xf32> to vector<1x2048xf32>
    %106 = vector.broadcast %104 : vector<4x1xf32> to vector<4x2048xf32>
    %107 = vector.broadcast %105 : vector<1x2048xf32> to vector<4x2048xf32>
    %108 = arith.mulf %106, %107 : vector<4x2048xf32>
    %109 = arith.addf %103, %108 : vector<4x2048xf32>
    %c0_35 = arith.constant 0 : index
    %c0_36 = arith.constant 0 : index
    %c0_37 = arith.constant 0 : index
    %c256 = arith.constant 256 : index
    %110 = vector.load %arg2[%c0_35, %c0_36, %c0_37, %c256] : memref<2x1x2x2432xbf16, #tpu.memory_space<vmem>>, vector<1x1x2x2048xbf16>
    %111 = vector.shape_cast %110 : vector<1x1x2x2048xbf16> to vector<2x2048xbf16>
    %112 = arith.extf %111 : vector<2x2048xbf16> to vector<2x2048xf32>
    %c6 = arith.constant 6 : index
    %c0_38 = arith.constant 0 : index
    %c0_39 = arith.constant 0 : index
    %113 = vector.load %arg3[%c6, %c0_38, %c0_39] : memref<9x4x2xbf16, #tpu.memory_space<vmem>>, vector<1x4x2xbf16>
    %114 = vector.shape_cast %113 : vector<1x4x2xbf16> to vector<4x2xbf16>
    %115 = arith.extf %114 : vector<4x2xbf16> to vector<4x2xf32>
    %116 = vector.extract_strided_slice %115 {offsets = [0, 0], sizes = [4, 1], strides = [1, 1]} : vector<4x2xf32> to vector<4x1xf32>
    %117 = vector.extract_strided_slice %112 {offsets = [0, 0], sizes = [1, 2048], strides = [1, 1]} : vector<2x2048xf32> to vector<1x2048xf32>
    %118 = vector.broadcast %116 : vector<4x1xf32> to vector<4x2048xf32>
    %119 = vector.broadcast %117 : vector<1x2048xf32> to vector<4x2048xf32>
    %120 = arith.mulf %118, %119 : vector<4x2048xf32>
    %121 = arith.addf %109, %120 : vector<4x2048xf32>
    %122 = vector.extract_strided_slice %115 {offsets = [0, 1], sizes = [4, 1], strides = [1, 1]} : vector<4x2xf32> to vector<4x1xf32>
    %123 = vector.extract_strided_slice %112 {offsets = [1, 0], sizes = [1, 2048], strides = [1, 1]} : vector<2x2048xf32> to vector<1x2048xf32>
    %124 = vector.broadcast %122 : vector<4x1xf32> to vector<4x2048xf32>
    %125 = vector.broadcast %123 : vector<1x2048xf32> to vector<4x2048xf32>
    %126 = arith.mulf %124, %125 : vector<4x2048xf32>
    %127 = arith.addf %121, %126 : vector<4x2048xf32>
    %c0_40 = arith.constant 0 : index
    %c0_41 = arith.constant 0 : index
    %c0_42 = arith.constant 0 : index
    %c257 = arith.constant 257 : index
    %128 = vector.load %arg2[%c0_40, %c0_41, %c0_42, %c257] : memref<2x1x2x2432xbf16, #tpu.memory_space<vmem>>, vector<1x1x2x2048xbf16>
    %129 = vector.shape_cast %128 : vector<1x1x2x2048xbf16> to vector<2x2048xbf16>
    %130 = arith.extf %129 : vector<2x2048xbf16> to vector<2x2048xf32>
    %c7 = arith.constant 7 : index
    %c0_43 = arith.constant 0 : index
    %c0_44 = arith.constant 0 : index
    %131 = vector.load %arg3[%c7, %c0_43, %c0_44] : memref<9x4x2xbf16, #tpu.memory_space<vmem>>, vector<1x4x2xbf16>
    %132 = vector.shape_cast %131 : vector<1x4x2xbf16> to vector<4x2xbf16>
    %133 = arith.extf %132 : vector<4x2xbf16> to vector<4x2xf32>
    %134 = vector.extract_strided_slice %133 {offsets = [0, 0], sizes = [4, 1], strides = [1, 1]} : vector<4x2xf32> to vector<4x1xf32>
    %135 = vector.extract_strided_slice %130 {offsets = [0, 0], sizes = [1, 2048], strides = [1, 1]} : vector<2x2048xf32> to vector<1x2048xf32>
    %136 = vector.broadcast %134 : vector<4x1xf32> to vector<4x2048xf32>
    %137 = vector.broadcast %135 : vector<1x2048xf32> to vector<4x2048xf32>
    %138 = arith.mulf %136, %137 : vector<4x2048xf32>
    %139 = arith.addf %127, %138 : vector<4x2048xf32>
    %140 = vector.extract_strided_slice %133 {offsets = [0, 1], sizes = [4, 1], strides = [1, 1]} : vector<4x2xf32> to vector<4x1xf32>
    %141 = vector.extract_strided_slice %130 {offsets = [1, 0], sizes = [1, 2048], strides = [1, 1]} : vector<2x2048xf32> to vector<1x2048xf32>
    %142 = vector.broadcast %140 : vector<4x1xf32> to vector<4x2048xf32>
    %143 = vector.broadcast %141 : vector<1x2048xf32> to vector<4x2048xf32>
    %144 = arith.mulf %142, %143 : vector<4x2048xf32>
    %145 = arith.addf %139, %144 : vector<4x2048xf32>
    %c0_45 = arith.constant 0 : index
    %c0_46 = arith.constant 0 : index
    %c0_47 = arith.constant 0 : index
    %c258 = arith.constant 258 : index
    %146 = vector.load %arg2[%c0_45, %c0_46, %c0_47, %c258] : memref<2x1x2x2432xbf16, #tpu.memory_space<vmem>>, vector<1x1x2x2048xbf16>
    %147 = vector.shape_cast %146 : vector<1x1x2x2048xbf16> to vector<2x2048xbf16>
    %148 = arith.extf %147 : vector<2x2048xbf16> to vector<2x2048xf32>
    %c8 = arith.constant 8 : index
    %c0_48 = arith.constant 0 : index
    %c0_49 = arith.constant 0 : index
    %149 = vector.load %arg3[%c8, %c0_48, %c0_49] : memref<9x4x2xbf16, #tpu.memory_space<vmem>>, vector<1x4x2xbf16>
    %150 = vector.shape_cast %149 : vector<1x4x2xbf16> to vector<4x2xbf16>
    %151 = arith.extf %150 : vector<4x2xbf16> to vector<4x2xf32>
    %152 = vector.extract_strided_slice %151 {offsets = [0, 0], sizes = [4, 1], strides = [1, 1]} : vector<4x2xf32> to vector<4x1xf32>
    %153 = vector.extract_strided_slice %148 {offsets = [0, 0], sizes = [1, 2048], strides = [1, 1]} : vector<2x2048xf32> to vector<1x2048xf32>
    %154 = vector.broadcast %152 : vector<4x1xf32> to vector<4x2048xf32>
    %155 = vector.broadcast %153 : vector<1x2048xf32> to vector<4x2048xf32>
    %156 = arith.mulf %154, %155 : vector<4x2048xf32>
    %157 = arith.addf %145, %156 : vector<4x2048xf32>
    %158 = vector.extract_strided_slice %151 {offsets = [0, 1], sizes = [4, 1], strides = [1, 1]} : vector<4x2xf32> to vector<4x1xf32>
    %159 = vector.extract_strided_slice %148 {offsets = [1, 0], sizes = [1, 2048], strides = [1, 1]} : vector<2x2048xf32> to vector<1x2048xf32>
    %160 = vector.broadcast %158 : vector<4x1xf32> to vector<4x2048xf32>
    %161 = vector.broadcast %159 : vector<1x2048xf32> to vector<4x2048xf32>
    %162 = arith.mulf %160, %161 : vector<4x2048xf32>
    %163 = arith.addf %157, %162 : vector<4x2048xf32>
    %164 = vector.extract_strided_slice %163 {offsets = [0, 0], sizes = [4, 16], strides = [1, 1]} : vector<4x2048xf32> to vector<4x16xf32>
    %165 = vector.broadcast %0 : vector<4x1xf32> to vector<4x16xf32>
    %166 = arith.addf %164, %165 : vector<4x16xf32>
    %c0_50 = arith.constant 0 : index
    %c0_51 = arith.constant 0 : index
    %c0_52 = arith.constant 0 : index
    %c0_53 = arith.constant 0 : index
    %167 = vector.load %arg5[%c0_50, %c0_51, %c0_52, %c0_53] : memref<2x4x16x16xf32, #tpu.memory_space<vmem>>, vector<1x4x1x16xf32>
    %168 = vector.shape_cast %167 : vector<1x4x1x16xf32> to vector<4x16xf32>
    %169 = vector.shape_cast %166 : vector<4x16xf32> to vector<1x4x1x16xf32>
    tpu.vector_store %arg5[%c0_50, %c0_51, %c0_52, %c0_53], %169 {strides = array<i32>} : memref<2x4x16x16xf32, #tpu.memory_space<vmem>>, vector<1x4x1x16xf32>,
    %170 = vector.extract_strided_slice %163 {offsets = [0, 128], sizes = [4, 16], strides = [1, 1]} : vector<4x2048xf32> to vector<4x16xf32>
    %171 = vector.broadcast %0 : vector<4x1xf32> to vector<4x16xf32>
    %172 = arith.addf %170, %171 : vector<4x16xf32>
    %c0_54 = arith.constant 0 : index
    %c0_55 = arith.constant 0 : index
    %c1_56 = arith.constant 1 : index
    %c0_57 = arith.constant 0 : index
    %173 = vector.load %arg5[%c0_54, %c0_55, %c1_56, %c0_57] : memref<2x4x16x16xf32, #tpu.memory_space<vmem>>, vector<1x4x1x16xf32>
    %174 = vector.shape_cast %173 : vector<1x4x1x16xf32> to vector<4x16xf32>
    %175 = vector.shape_cast %172 : vector<4x16xf32> to vector<1x4x1x16xf32>
    tpu.vector_store %arg5[%c0_54, %c0_55, %c1_56, %c0_57], %175 {strides = array<i32>} : memref<2x4x16x16xf32, #tpu.memory_space<vmem>>, vector<1x4x1x16xf32>,
    %176 = vector.extract_strided_slice %163 {offsets = [0, 256], sizes = [4, 16], strides = [1, 1]} : vector<4x2048xf32> to vector<4x16xf32>
    %177 = vector.broadcast %0 : vector<4x1xf32> to vector<4x16xf32>
    %178 = arith.addf %176, %177 : vector<4x16xf32>
    %c0_58 = arith.constant 0 : index
    %c0_59 = arith.constant 0 : index
    %c2_60 = arith.constant 2 : index
    %c0_61 = arith.constant 0 : index
    %179 = vector.load %arg5[%c0_58, %c0_59, %c2_60, %c0_61] : memref<2x4x16x16xf32, #tpu.memory_space<vmem>>, vector<1x4x1x16xf32>
    %180 = vector.shape_cast %179 : vector<1x4x1x16xf32> to vector<4x16xf32>
    %181 = vector.shape_cast %178 : vector<4x16xf32> to vector<1x4x1x16xf32>
    tpu.vector_store %arg5[%c0_58, %c0_59, %c2_60, %c0_61], %181 {strides = array<i32>} : memref<2x4x16x16xf32, #tpu.memory_space<vmem>>, vector<1x4x1x16xf32>,
    %182 = vector.extract_strided_slice %163 {offsets = [0, 384], sizes = [4, 16], strides = [1, 1]} : vector<4x2048xf32> to vector<4x16xf32>
    %183 = vector.broadcast %0 : vector<4x1xf32> to vector<4x16xf32>
    %184 = arith.addf %182, %183 : vector<4x16xf32>
    %c0_62 = arith.constant 0 : index
    %c0_63 = arith.constant 0 : index
    %c3_64 = arith.constant 3 : index
    %c0_65 = arith.constant 0 : index
    %185 = vector.load %arg5[%c0_62, %c0_63, %c3_64, %c0_65] : memref<2x4x16x16xf32, #tpu.memory_space<vmem>>, vector<1x4x1x16xf32>
    %186 = vector.shape_cast %185 : vector<1x4x1x16xf32> to vector<4x16xf32>
    %187 = vector.shape_cast %184 : vector<4x16xf32> to vector<1x4x1x16xf32>
    tpu.vector_store %arg5[%c0_62, %c0_63, %c3_64, %c0_65], %187 {strides = array<i32>} : memref<2x4x16x16xf32, #tpu.memory_space<vmem>>, vector<1x4x1x16xf32>,
    %188 = vector.extract_strided_slice %163 {offsets = [0, 512], sizes = [4, 16], strides = [1, 1]} : vector<4x2048xf32> to vector<4x16xf32>
    %189 = vector.broadcast %0 : vector<4x1xf32> to vector<4x16xf32>
    %190 = arith.addf %188, %189 : vector<4x16xf32>
    %c0_66 = arith.constant 0 : index
    %c0_67 = arith.constant 0 : index
    %c4_68 = arith.constant 4 : index
    %c0_69 = arith.constant 0 : index
    %191 = vector.load %arg5[%c0_66, %c0_67, %c4_68, %c0_69] : memref<2x4x16x16xf32, #tpu.memory_space<vmem>>, vector<1x4x1x16xf32>
    %192 = vector.shape_cast %191 : vector<1x4x1x16xf32> to vector<4x16xf32>
    %193 = vector.shape_cast %190 : vector<4x16xf32> to vector<1x4x1x16xf32>
    tpu.vector_store %arg5[%c0_66, %c0_67, %c4_68, %c0_69], %193 {strides = array<i32>} : memref<2x4x16x16xf32, #tpu.memory_space<vmem>>, vector<1x4x1x16xf32>,
    %194 = vector.extract_strided_slice %163 {offsets = [0, 640], sizes = [4, 16], strides = [1, 1]} : vector<4x2048xf32> to vector<4x16xf32>
    %195 = vector.broadcast %0 : vector<4x1xf32> to vector<4x16xf32>
    %196 = arith.addf %194, %195 : vector<4x16xf32>
    %c0_70 = arith.constant 0 : index
    %c0_71 = arith.constant 0 : index
    %c5_72 = arith.constant 5 : index
    %c0_73 = arith.constant 0 : index
    %197 = vector.load %arg5[%c0_70, %c0_71, %c5_72, %c0_73] : memref<2x4x16x16xf32, #tpu.memory_space<vmem>>, vector<1x4x1x16xf32>
    %198 = vector.shape_cast %197 : vector<1x4x1x16xf32> to vector<4x16xf32>
    %199 = vector.shape_cast %196 : vector<4x16xf32> to vector<1x4x1x16xf32>
    tpu.vector_store %arg5[%c0_70, %c0_71, %c5_72, %c0_73], %199 {strides = array<i32>} : memref<2x4x16x16xf32, #tpu.memory_space<vmem>>, vector<1x4x1x16xf32>,
    %200 = vector.extract_strided_slice %163 {offsets = [0, 768], sizes = [4, 16], strides = [1, 1]} : vector<4x2048xf32> to vector<4x16xf32>
    %201 = vector.broadcast %0 : vector<4x1xf32> to vector<4x16xf32>
    %202 = arith.addf %200, %201 : vector<4x16xf32>
    %c0_74 = arith.constant 0 : index
    %c0_75 = arith.constant 0 : index
    %c6_76 = arith.constant 6 : index
    %c0_77 = arith.constant 0 : index
    %203 = vector.load %arg5[%c0_74, %c0_75, %c6_76, %c0_77] : memref<2x4x16x16xf32, #tpu.memory_space<vmem>>, vector<1x4x1x16xf32>
    %204 = vector.shape_cast %203 : vector<1x4x1x16xf32> to vector<4x16xf32>
    %205 = vector.shape_cast %202 : vector<4x16xf32> to vector<1x4x1x16xf32>
    tpu.vector_store %arg5[%c0_74, %c0_75, %c6_76, %c0_77], %205 {strides = array<i32>} : memref<2x4x16x16xf32, #tpu.memory_space<vmem>>, vector<1x4x1x16xf32>,
    %206 = vector.extract_strided_slice %163 {offsets = [0, 896], sizes = [4, 16], strides = [1, 1]} : vector<4x2048xf32> to vector<4x16xf32>
    %207 = vector.broadcast %0 : vector<4x1xf32> to vector<4x16xf32>
    %208 = arith.addf %206, %207 : vector<4x16xf32>
    %c0_78 = arith.constant 0 : index
    %c0_79 = arith.constant 0 : index
    %c7_80 = arith.constant 7 : index
    %c0_81 = arith.constant 0 : index
    %209 = vector.load %arg5[%c0_78, %c0_79, %c7_80, %c0_81] : memref<2x4x16x16xf32, #tpu.memory_space<vmem>>, vector<1x4x1x16xf32>
    %210 = vector.shape_cast %209 : vector<1x4x1x16xf32> to vector<4x16xf32>
    %211 = vector.shape_cast %208 : vector<4x16xf32> to vector<1x4x1x16xf32>
    tpu.vector_store %arg5[%c0_78, %c0_79, %c7_80, %c0_81], %211 {strides = array<i32>} : memref<2x4x16x16xf32, #tpu.memory_space<vmem>>, vector<1x4x1x16xf32>,
    %212 = vector.extract_strided_slice %163 {offsets = [0, 1024], sizes = [4, 16], strides = [1, 1]} : vector<4x2048xf32> to vector<4x16xf32>
    %213 = vector.broadcast %0 : vector<4x1xf32> to vector<4x16xf32>
    %214 = arith.addf %212, %213 : vector<4x16xf32>
    %c0_82 = arith.constant 0 : index
    %c0_83 = arith.constant 0 : index
    %c8_84 = arith.constant 8 : index
    %c0_85 = arith.constant 0 : index
    %215 = vector.load %arg5[%c0_82, %c0_83, %c8_84, %c0_85] : memref<2x4x16x16xf32, #tpu.memory_space<vmem>>, vector<1x4x1x16xf32>
    %216 = vector.shape_cast %215 : vector<1x4x1x16xf32> to vector<4x16xf32>
    %217 = vector.shape_cast %214 : vector<4x16xf32> to vector<1x4x1x16xf32>
    tpu.vector_store %arg5[%c0_82, %c0_83, %c8_84, %c0_85], %217 {strides = array<i32>} : memref<2x4x16x16xf32, #tpu.memory_space<vmem>>, vector<1x4x1x16xf32>,
    %218 = vector.extract_strided_slice %163 {offsets = [0, 1152], sizes = [4, 16], strides = [1, 1]} : vector<4x2048xf32> to vector<4x16xf32>
    %219 = vector.broadcast %0 : vector<4x1xf32> to vector<4x16xf32>
    %220 = arith.addf %218, %219 : vector<4x16xf32>
    %c0_86 = arith.constant 0 : index
    %c0_87 = arith.constant 0 : index
    %c9 = arith.constant 9 : index
    %c0_88 = arith.constant 0 : index
    %221 = vector.load %arg5[%c0_86, %c0_87, %c9, %c0_88] : memref<2x4x16x16xf32, #tpu.memory_space<vmem>>, vector<1x4x1x16xf32>
    %222 = vector.shape_cast %221 : vector<1x4x1x16xf32> to vector<4x16xf32>
    %223 = vector.shape_cast %220 : vector<4x16xf32> to vector<1x4x1x16xf32>
    tpu.vector_store %arg5[%c0_86, %c0_87, %c9, %c0_88], %223 {strides = array<i32>} : memref<2x4x16x16xf32, #tpu.memory_space<vmem>>, vector<1x4x1x16xf32>,
    %224 = vector.extract_strided_slice %163 {offsets = [0, 1280], sizes = [4, 16], strides = [1, 1]} : vector<4x2048xf32> to vector<4x16xf32>
    %225 = vector.broadcast %0 : vector<4x1xf32> to vector<4x16xf32>
    %226 = arith.addf %224, %225 : vector<4x16xf32>
    %c0_89 = arith.constant 0 : index
    %c0_90 = arith.constant 0 : index
    %c10 = arith.constant 10 : index
    %c0_91 = arith.constant 0 : index
    %227 = vector.load %arg5[%c0_89, %c0_90, %c10, %c0_91] : memref<2x4x16x16xf32, #tpu.memory_space<vmem>>, vector<1x4x1x16xf32>
    %228 = vector.shape_cast %227 : vector<1x4x1x16xf32> to vector<4x16xf32>
    %229 = vector.shape_cast %226 : vector<4x16xf32> to vector<1x4x1x16xf32>
    tpu.vector_store %arg5[%c0_89, %c0_90, %c10, %c0_91], %229 {strides = array<i32>} : memref<2x4x16x16xf32, #tpu.memory_space<vmem>>, vector<1x4x1x16xf32>,
    %230 = vector.extract_strided_slice %163 {offsets = [0, 1408], sizes = [4, 16], strides = [1, 1]} : vector<4x2048xf32> to vector<4x16xf32>
    %231 = vector.broadcast %0 : vector<4x1xf32> to vector<4x16xf32>
    %232 = arith.addf %230, %231 : vector<4x16xf32>
    %c0_92 = arith.constant 0 : index
    %c0_93 = arith.constant 0 : index
    %c11 = arith.constant 11 : index
    %c0_94 = arith.constant 0 : index
    %233 = vector.load %arg5[%c0_92, %c0_93, %c11, %c0_94] : memref<2x4x16x16xf32, #tpu.memory_space<vmem>>, vector<1x4x1x16xf32>
    %234 = vector.shape_cast %233 : vector<1x4x1x16xf32> to vector<4x16xf32>
    %235 = vector.shape_cast %232 : vector<4x16xf32> to vector<1x4x1x16xf32>
    tpu.vector_store %arg5[%c0_92, %c0_93, %c11, %c0_94], %235 {strides = array<i32>} : memref<2x4x16x16xf32, #tpu.memory_space<vmem>>, vector<1x4x1x16xf32>,
    %236 = vector.extract_strided_slice %163 {offsets = [0, 1536], sizes = [4, 16], strides = [1, 1]} : vector<4x2048xf32> to vector<4x16xf32>
    %237 = vector.broadcast %0 : vector<4x1xf32> to vector<4x16xf32>
    %238 = arith.addf %236, %237 : vector<4x16xf32>
    %c0_95 = arith.constant 0 : index
    %c0_96 = arith.constant 0 : index
    %c12 = arith.constant 12 : index
    %c0_97 = arith.constant 0 : index
    %239 = vector.load %arg5[%c0_95, %c0_96, %c12, %c0_97] : memref<2x4x16x16xf32, #tpu.memory_space<vmem>>, vector<1x4x1x16xf32>
    %240 = vector.shape_cast %239 : vector<1x4x1x16xf32> to vector<4x16xf32>
    %241 = vector.shape_cast %238 : vector<4x16xf32> to vector<1x4x1x16xf32>
    tpu.vector_store %arg5[%c0_95, %c0_96, %c12, %c0_97], %241 {strides = array<i32>} : memref<2x4x16x16xf32, #tpu.memory_space<vmem>>, vector<1x4x1x16xf32>,
    %242 = vector.extract_strided_slice %163 {offsets = [0, 1664], sizes = [4, 16], strides = [1, 1]} : vector<4x2048xf32> to vector<4x16xf32>
    %243 = vector.broadcast %0 : vector<4x1xf32> to vector<4x16xf32>
    %244 = arith.addf %242, %243 : vector<4x16xf32>
    %c0_98 = arith.constant 0 : index
    %c0_99 = arith.constant 0 : index
    %c13 = arith.constant 13 : index
    %c0_100 = arith.constant 0 : index
    %245 = vector.load %arg5[%c0_98, %c0_99, %c13, %c0_100] : memref<2x4x16x16xf32, #tpu.memory_space<vmem>>, vector<1x4x1x16xf32>
    %246 = vector.shape_cast %245 : vector<1x4x1x16xf32> to vector<4x16xf32>
    %247 = vector.shape_cast %244 : vector<4x16xf32> to vector<1x4x1x16xf32>
    tpu.vector_store %arg5[%c0_98, %c0_99, %c13, %c0_100], %247 {strides = array<i32>} : memref<2x4x16x16xf32, #tpu.memory_space<vmem>>, vector<1x4x1x16xf32>,
    %248 = vector.extract_strided_slice %163 {offsets = [0, 1792], sizes = [4, 16], strides = [1, 1]} : vector<4x2048xf32> to vector<4x16xf32>
    %249 = vector.broadcast %0 : vector<4x1xf32> to vector<4x16xf32>
    %250 = arith.addf %248, %249 : vector<4x16xf32>
    %c0_101 = arith.constant 0 : index
    %c0_102 = arith.constant 0 : index
    %c14 = arith.constant 14 : index
    %c0_103 = arith.constant 0 : index
    %251 = vector.load %arg5[%c0_101, %c0_102, %c14, %c0_103] : memref<2x4x16x16xf32, #tpu.memory_space<vmem>>, vector<1x4x1x16xf32>
    %252 = vector.shape_cast %251 : vector<1x4x1x16xf32> to vector<4x16xf32>
    %253 = vector.shape_cast %250 : vector<4x16xf32> to vector<1x4x1x16xf32>
    tpu.vector_store %arg5[%c0_101, %c0_102, %c14, %c0_103], %253 {strides = array<i32>} : memref<2x4x16x16xf32, #tpu.memory_space<vmem>>, vector<1x4x1x16xf32>,
    %254 = vector.extract_strided_slice %163 {offsets = [0, 1920], sizes = [4, 16], strides = [1, 1]} : vector<4x2048xf32> to vector<4x16xf32>
    %255 = vector.broadcast %0 : vector<4x1xf32> to vector<4x16xf32>
    %256 = arith.addf %254, %255 : vector<4x16xf32>
    %c0_104 = arith.constant 0 : index
    %c0_105 = arith.constant 0 : index
    %c15 = arith.constant 15 : index
    %c0_106 = arith.constant 0 : index
    %257 = vector.load %arg5[%c0_104, %c0_105, %c15, %c0_106] : memref<2x4x16x16xf32, #tpu.memory_space<vmem>>, vector<1x4x1x16xf32>
    %258 = vector.shape_cast %257 : vector<1x4x1x16xf32> to vector<4x16xf32>
    %259 = vector.shape_cast %256 : vector<4x16xf32> to vector<1x4x1x16xf32>
    tpu.vector_store %arg5[%c0_104, %c0_105, %c15, %c0_106], %259 {strides = array<i32>} : memref<2x4x16x16xf32, #tpu.memory_space<vmem>>, vector<1x4x1x16xf32>,
    %cst_107 = arith.constant 0.000000e+00 : f32
    %260 = vector.broadcast %cst_107 : f32 to vector<4x2048xf32>
    %c1_108 = arith.constant 1 : index
    %c0_109 = arith.constant 0 : index
    %c0_110 = arith.constant 0 : index
    %c0_111 = arith.constant 0 : index
    %261 = vector.load %arg2[%c1_108, %c0_109, %c0_110, %c0_111] : memref<2x1x2x2432xbf16, #tpu.memory_space<vmem>>, vector<1x1x2x2048xbf16>
    %262 = vector.shape_cast %261 : vector<1x1x2x2048xbf16> to vector<2x2048xbf16>
    %263 = arith.extf %262 : vector<2x2048xbf16> to vector<2x2048xf32>
    %c0_112 = arith.constant 0 : index
    %c0_113 = arith.constant 0 : index
    %c0_114 = arith.constant 0 : index
    %264 = vector.load %arg3[%c0_112, %c0_113, %c0_114] : memref<9x4x2xbf16, #tpu.memory_space<vmem>>, vector<1x4x2xbf16>
    %265 = vector.shape_cast %264 : vector<1x4x2xbf16> to vector<4x2xbf16>
    %266 = arith.extf %265 : vector<4x2xbf16> to vector<4x2xf32>
    %267 = vector.extract_strided_slice %266 {offsets = [0, 0], sizes = [4, 1], strides = [1, 1]} : vector<4x2xf32> to vector<4x1xf32>
    %268 = vector.extract_strided_slice %263 {offsets = [0, 0], sizes = [1, 2048], strides = [1, 1]} : vector<2x2048xf32> to vector<1x2048xf32>
    %269 = vector.broadcast %267 : vector<4x1xf32> to vector<4x2048xf32>
    %270 = vector.broadcast %268 : vector<1x2048xf32> to vector<4x2048xf32>
    %271 = arith.mulf %269, %270 : vector<4x2048xf32>
    %272 = arith.addf %260, %271 : vector<4x2048xf32>
    %273 = vector.extract_strided_slice %266 {offsets = [0, 1], sizes = [4, 1], strides = [1, 1]} : vector<4x2xf32> to vector<4x1xf32>
    %274 = vector.extract_strided_slice %263 {offsets = [1, 0], sizes = [1, 2048], strides = [1, 1]} : vector<2x2048xf32> to vector<1x2048xf32>
    %275 = vector.broadcast %273 : vector<4x1xf32> to vector<4x2048xf32>
    %276 = vector.broadcast %274 : vector<1x2048xf32> to vector<4x2048xf32>
    %277 = arith.mulf %275, %276 : vector<4x2048xf32>
    %278 = arith.addf %272, %277 : vector<4x2048xf32>
    %c1_115 = arith.constant 1 : index
    %c0_116 = arith.constant 0 : index
    %c0_117 = arith.constant 0 : index
    %c1_118 = arith.constant 1 : index
    %279 = vector.load %arg2[%c1_115, %c0_116, %c0_117, %c1_118] : memref<2x1x2x2432xbf16, #tpu.memory_space<vmem>>, vector<1x1x2x2048xbf16>
    %280 = vector.shape_cast %279 : vector<1x1x2x2048xbf16> to vector<2x2048xbf16>
    %281 = arith.extf %280 : vector<2x2048xbf16> to vector<2x2048xf32>
    %c1_119 = arith.constant 1 : index
    %c0_120 = arith.constant 0 : index
    %c0_121 = arith.constant 0 : index
    %282 = vector.load %arg3[%c1_119, %c0_120, %c0_121] : memref<9x4x2xbf16, #tpu.memory_space<vmem>>, vector<1x4x2xbf16>
    %283 = vector.shape_cast %282 : vector<1x4x2xbf16> to vector<4x2xbf16>
    %284 = arith.extf %283 : vector<4x2xbf16> to vector<4x2xf32>
    %285 = vector.extract_strided_slice %284 {offsets = [0, 0], sizes = [4, 1], strides = [1, 1]} : vector<4x2xf32> to vector<4x1xf32>
    %286 = vector.extract_strided_slice %281 {offsets = [0, 0], sizes = [1, 2048], strides = [1, 1]} : vector<2x2048xf32> to vector<1x2048xf32>
    %287 = vector.broadcast %285 : vector<4x1xf32> to vector<4x2048xf32>
    %288 = vector.broadcast %286 : vector<1x2048xf32> to vector<4x2048xf32>
    %289 = arith.mulf %287, %288 : vector<4x2048xf32>
    %290 = arith.addf %278, %289 : vector<4x2048xf32>
    %291 = vector.extract_strided_slice %284 {offsets = [0, 1], sizes = [4, 1], strides = [1, 1]} : vector<4x2xf32> to vector<4x1xf32>
    %292 = vector.extract_strided_slice %281 {offsets = [1, 0], sizes = [1, 2048], strides = [1, 1]} : vector<2x2048xf32> to vector<1x2048xf32>
    %293 = vector.broadcast %291 : vector<4x1xf32> to vector<4x2048xf32>
    %294 = vector.broadcast %292 : vector<1x2048xf32> to vector<4x2048xf32>
    %295 = arith.mulf %293, %294 : vector<4x2048xf32>
    %296 = arith.addf %290, %295 : vector<4x2048xf32>
    %c1_122 = arith.constant 1 : index
    %c0_123 = arith.constant 0 : index
    %c0_124 = arith.constant 0 : index
    %c2_125 = arith.constant 2 : index
    %297 = vector.load %arg2[%c1_122, %c0_123, %c0_124, %c2_125] : memref<2x1x2x2432xbf16, #tpu.memory_space<vmem>>, vector<1x1x2x2048xbf16>
    %298 = vector.shape_cast %297 : vector<1x1x2x2048xbf16> to vector<2x2048xbf16>
    %299 = arith.extf %298 : vector<2x2048xbf16> to vector<2x2048xf32>
    %c2_126 = arith.constant 2 : index
    %c0_127 = arith.constant 0 : index
    %c0_128 = arith.constant 0 : index
    %300 = vector.load %arg3[%c2_126, %c0_127, %c0_128] : memref<9x4x2xbf16, #tpu.memory_space<vmem>>, vector<1x4x2xbf16>
    %301 = vector.shape_cast %300 : vector<1x4x2xbf16> to vector<4x2xbf16>
    %302 = arith.extf %301 : vector<4x2xbf16> to vector<4x2xf32>
    %303 = vector.extract_strided_slice %302 {offsets = [0, 0], sizes = [4, 1], strides = [1, 1]} : vector<4x2xf32> to vector<4x1xf32>
    %304 = vector.extract_strided_slice %299 {offsets = [0, 0], sizes = [1, 2048], strides = [1, 1]} : vector<2x2048xf32> to vector<1x2048xf32>
    %305 = vector.broadcast %303 : vector<4x1xf32> to vector<4x2048xf32>
    %306 = vector.broadcast %304 : vector<1x2048xf32> to vector<4x2048xf32>
    %307 = arith.mulf %305, %306 : vector<4x2048xf32>
    %308 = arith.addf %296, %307 : vector<4x2048xf32>
    %309 = vector.extract_strided_slice %302 {offsets = [0, 1], sizes = [4, 1], strides = [1, 1]} : vector<4x2xf32> to vector<4x1xf32>
    %310 = vector.extract_strided_slice %299 {offsets = [1, 0], sizes = [1, 2048], strides = [1, 1]} : vector<2x2048xf32> to vector<1x2048xf32>
    %311 = vector.broadcast %309 : vector<4x1xf32> to vector<4x2048xf32>
    %312 = vector.broadcast %310 : vector<1x2048xf32> to vector<4x2048xf32>
    %313 = arith.mulf %311, %312 : vector<4x2048xf32>
    %314 = arith.addf %308, %313 : vector<4x2048xf32>
    %c1_129 = arith.constant 1 : index
    %c0_130 = arith.constant 0 : index
    %c0_131 = arith.constant 0 : index
    %c128_132 = arith.constant 128 : index
    %315 = vector.load %arg2[%c1_129, %c0_130, %c0_131, %c128_132] : memref<2x1x2x2432xbf16, #tpu.memory_space<vmem>>, vector<1x1x2x2048xbf16>
    %316 = vector.shape_cast %315 : vector<1x1x2x2048xbf16> to vector<2x2048xbf16>
    %317 = arith.extf %316 : vector<2x2048xbf16> to vector<2x2048xf32>
    %c3_133 = arith.constant 3 : index
    %c0_134 = arith.constant 0 : index
    %c0_135 = arith.constant 0 : index
    %318 = vector.load %arg3[%c3_133, %c0_134, %c0_135] : memref<9x4x2xbf16, #tpu.memory_space<vmem>>, vector<1x4x2xbf16>
    %319 = vector.shape_cast %318 : vector<1x4x2xbf16> to vector<4x2xbf16>
    %320 = arith.extf %319 : vector<4x2xbf16> to vector<4x2xf32>
    %321 = vector.extract_strided_slice %320 {offsets = [0, 0], sizes = [4, 1], strides = [1, 1]} : vector<4x2xf32> to vector<4x1xf32>
    %322 = vector.extract_strided_slice %317 {offsets = [0, 0], sizes = [1, 2048], strides = [1, 1]} : vector<2x2048xf32> to vector<1x2048xf32>
    %323 = vector.broadcast %321 : vector<4x1xf32> to vector<4x2048xf32>
    %324 = vector.broadcast %322 : vector<1x2048xf32> to vector<4x2048xf32>
    %325 = arith.mulf %323, %324 : vector<4x2048xf32>
    %326 = arith.addf %314, %325 : vector<4x2048xf32>
    %327 = vector.extract_strided_slice %320 {offsets = [0, 1], sizes = [4, 1], strides = [1, 1]} : vector<4x2xf32> to vector<4x1xf32>
    %328 = vector.extract_strided_slice %317 {offsets = [1, 0], sizes = [1, 2048], strides = [1, 1]} : vector<2x2048xf32> to vector<1x2048xf32>
    %329 = vector.broadcast %327 : vector<4x1xf32> to vector<4x2048xf32>
    %330 = vector.broadcast %328 : vector<1x2048xf32> to vector<4x2048xf32>
    %331 = arith.mulf %329, %330 : vector<4x2048xf32>
    %332 = arith.addf %326, %331 : vector<4x2048xf32>
    %c1_136 = arith.constant 1 : index
    %c0_137 = arith.constant 0 : index
    %c0_138 = arith.constant 0 : index
    %c129_139 = arith.constant 129 : index
    %333 = vector.load %arg2[%c1_136, %c0_137, %c0_138, %c129_139] : memref<2x1x2x2432xbf16, #tpu.memory_space<vmem>>, vector<1x1x2x2048xbf16>
    %334 = vector.shape_cast %333 : vector<1x1x2x2048xbf16> to vector<2x2048xbf16>
    %335 = arith.extf %334 : vector<2x2048xbf16> to vector<2x2048xf32>
    %c4_140 = arith.constant 4 : index
    %c0_141 = arith.constant 0 : index
    %c0_142 = arith.constant 0 : index
    %336 = vector.load %arg3[%c4_140, %c0_141, %c0_142] : memref<9x4x2xbf16, #tpu.memory_space<vmem>>, vector<1x4x2xbf16>
    %337 = vector.shape_cast %336 : vector<1x4x2xbf16> to vector<4x2xbf16>
    %338 = arith.extf %337 : vector<4x2xbf16> to vector<4x2xf32>
    %339 = vector.extract_strided_slice %338 {offsets = [0, 0], sizes = [4, 1], strides = [1, 1]} : vector<4x2xf32> to vector<4x1xf32>
    %340 = vector.extract_strided_slice %335 {offsets = [0, 0], sizes = [1, 2048], strides = [1, 1]} : vector<2x2048xf32> to vector<1x2048xf32>
    %341 = vector.broadcast %339 : vector<4x1xf32> to vector<4x2048xf32>
    %342 = vector.broadcast %340 : vector<1x2048xf32> to vector<4x2048xf32>
    %343 = arith.mulf %341, %342 : vector<4x2048xf32>
    %344 = arith.addf %332, %343 : vector<4x2048xf32>
    %345 = vector.extract_strided_slice %338 {offsets = [0, 1], sizes = [4, 1], strides = [1, 1]} : vector<4x2xf32> to vector<4x1xf32>
    %346 = vector.extract_strided_slice %335 {offsets = [1, 0], sizes = [1, 2048], strides = [1, 1]} : vector<2x2048xf32> to vector<1x2048xf32>
    %347 = vector.broadcast %345 : vector<4x1xf32> to vector<4x2048xf32>
    %348 = vector.broadcast %346 : vector<1x2048xf32> to vector<4x2048xf32>
    %349 = arith.mulf %347, %348 : vector<4x2048xf32>
    %350 = arith.addf %344, %349 : vector<4x2048xf32>
    %c1_143 = arith.constant 1 : index
    %c0_144 = arith.constant 0 : index
    %c0_145 = arith.constant 0 : index
    %c130_146 = arith.constant 130 : index
    %351 = vector.load %arg2[%c1_143, %c0_144, %c0_145, %c130_146] : memref<2x1x2x2432xbf16, #tpu.memory_space<vmem>>, vector<1x1x2x2048xbf16>
    %352 = vector.shape_cast %351 : vector<1x1x2x2048xbf16> to vector<2x2048xbf16>
    %353 = arith.extf %352 : vector<2x2048xbf16> to vector<2x2048xf32>
    %c5_147 = arith.constant 5 : index
    %c0_148 = arith.constant 0 : index
    %c0_149 = arith.constant 0 : index
    %354 = vector.load %arg3[%c5_147, %c0_148, %c0_149] : memref<9x4x2xbf16, #tpu.memory_space<vmem>>, vector<1x4x2xbf16>
    %355 = vector.shape_cast %354 : vector<1x4x2xbf16> to vector<4x2xbf16>
    %356 = arith.extf %355 : vector<4x2xbf16> to vector<4x2xf32>
    %357 = vector.extract_strided_slice %356 {offsets = [0, 0], sizes = [4, 1], strides = [1, 1]} : vector<4x2xf32> to vector<4x1xf32>
    %358 = vector.extract_strided_slice %353 {offsets = [0, 0], sizes = [1, 2048], strides = [1, 1]} : vector<2x2048xf32> to vector<1x2048xf32>
    %359 = vector.broadcast %357 : vector<4x1xf32> to vector<4x2048xf32>
    %360 = vector.broadcast %358 : vector<1x2048xf32> to vector<4x2048xf32>
    %361 = arith.mulf %359, %360 : vector<4x2048xf32>
    %362 = arith.addf %350, %361 : vector<4x2048xf32>
    %363 = vector.extract_strided_slice %356 {offsets = [0, 1], sizes = [4, 1], strides = [1, 1]} : vector<4x2xf32> to vector<4x1xf32>
    %364 = vector.extract_strided_slice %353 {offsets = [1, 0], sizes = [1, 2048], strides = [1, 1]} : vector<2x2048xf32> to vector<1x2048xf32>
    %365 = vector.broadcast %363 : vector<4x1xf32> to vector<4x2048xf32>
    %366 = vector.broadcast %364 : vector<1x2048xf32> to vector<4x2048xf32>
    %367 = arith.mulf %365, %366 : vector<4x2048xf32>
    %368 = arith.addf %362, %367 : vector<4x2048xf32>
    %c1_150 = arith.constant 1 : index
    %c0_151 = arith.constant 0 : index
    %c0_152 = arith.constant 0 : index
    %c256_153 = arith.constant 256 : index
    %369 = vector.load %arg2[%c1_150, %c0_151, %c0_152, %c256_153] : memref<2x1x2x2432xbf16, #tpu.memory_space<vmem>>, vector<1x1x2x2048xbf16>
    %370 = vector.shape_cast %369 : vector<1x1x2x2048xbf16> to vector<2x2048xbf16>
    %371 = arith.extf %370 : vector<2x2048xbf16> to vector<2x2048xf32>
    %c6_154 = arith.constant 6 : index
    %c0_155 = arith.constant 0 : index
    %c0_156 = arith.constant 0 : index
    %372 = vector.load %arg3[%c6_154, %c0_155, %c0_156] : memref<9x4x2xbf16, #tpu.memory_space<vmem>>, vector<1x4x2xbf16>
    %373 = vector.shape_cast %372 : vector<1x4x2xbf16> to vector<4x2xbf16>
    %374 = arith.extf %373 : vector<4x2xbf16> to vector<4x2xf32>
    %375 = vector.extract_strided_slice %374 {offsets = [0, 0], sizes = [4, 1], strides = [1, 1]} : vector<4x2xf32> to vector<4x1xf32>
    %376 = vector.extract_strided_slice %371 {offsets = [0, 0], sizes = [1, 2048], strides = [1, 1]} : vector<2x2048xf32> to vector<1x2048xf32>
    %377 = vector.broadcast %375 : vector<4x1xf32> to vector<4x2048xf32>
    %378 = vector.broadcast %376 : vector<1x2048xf32> to vector<4x2048xf32>
    %379 = arith.mulf %377, %378 : vector<4x2048xf32>
    %380 = arith.addf %368, %379 : vector<4x2048xf32>
    %381 = vector.extract_strided_slice %374 {offsets = [0, 1], sizes = [4, 1], strides = [1, 1]} : vector<4x2xf32> to vector<4x1xf32>
    %382 = vector.extract_strided_slice %371 {offsets = [1, 0], sizes = [1, 2048], strides = [1, 1]} : vector<2x2048xf32> to vector<1x2048xf32>
    %383 = vector.broadcast %381 : vector<4x1xf32> to vector<4x2048xf32>
    %384 = vector.broadcast %382 : vector<1x2048xf32> to vector<4x2048xf32>
    %385 = arith.mulf %383, %384 : vector<4x2048xf32>
    %386 = arith.addf %380, %385 : vector<4x2048xf32>
    %c1_157 = arith.constant 1 : index
    %c0_158 = arith.constant 0 : index
    %c0_159 = arith.constant 0 : index
    %c257_160 = arith.constant 257 : index
    %387 = vector.load %arg2[%c1_157, %c0_158, %c0_159, %c257_160] : memref<2x1x2x2432xbf16, #tpu.memory_space<vmem>>, vector<1x1x2x2048xbf16>
    %388 = vector.shape_cast %387 : vector<1x1x2x2048xbf16> to vector<2x2048xbf16>
    %389 = arith.extf %388 : vector<2x2048xbf16> to vector<2x2048xf32>
    %c7_161 = arith.constant 7 : index
    %c0_162 = arith.constant 0 : index
    %c0_163 = arith.constant 0 : index
    %390 = vector.load %arg3[%c7_161, %c0_162, %c0_163] : memref<9x4x2xbf16, #tpu.memory_space<vmem>>, vector<1x4x2xbf16>
    %391 = vector.shape_cast %390 : vector<1x4x2xbf16> to vector<4x2xbf16>
    %392 = arith.extf %391 : vector<4x2xbf16> to vector<4x2xf32>
    %393 = vector.extract_strided_slice %392 {offsets = [0, 0], sizes = [4, 1], strides = [1, 1]} : vector<4x2xf32> to vector<4x1xf32>
    %394 = vector.extract_strided_slice %389 {offsets = [0, 0], sizes = [1, 2048], strides = [1, 1]} : vector<2x2048xf32> to vector<1x2048xf32>
    %395 = vector.broadcast %393 : vector<4x1xf32> to vector<4x2048xf32>
    %396 = vector.broadcast %394 : vector<1x2048xf32> to vector<4x2048xf32>
    %397 = arith.mulf %395, %396 : vector<4x2048xf32>
    %398 = arith.addf %386, %397 : vector<4x2048xf32>
    %399 = vector.extract_strided_slice %392 {offsets = [0, 1], sizes = [4, 1], strides = [1, 1]} : vector<4x2xf32> to vector<4x1xf32>
    %400 = vector.extract_strided_slice %389 {offsets = [1, 0], sizes = [1, 2048], strides = [1, 1]} : vector<2x2048xf32> to vector<1x2048xf32>
    %401 = vector.broadcast %399 : vector<4x1xf32> to vector<4x2048xf32>
    %402 = vector.broadcast %400 : vector<1x2048xf32> to vector<4x2048xf32>
    %403 = arith.mulf %401, %402 : vector<4x2048xf32>
    %404 = arith.addf %398, %403 : vector<4x2048xf32>
    %c1_164 = arith.constant 1 : index
    %c0_165 = arith.constant 0 : index
    %c0_166 = arith.constant 0 : index
    %c258_167 = arith.constant 258 : index
    %405 = vector.load %arg2[%c1_164, %c0_165, %c0_166, %c258_167] : memref<2x1x2x2432xbf16, #tpu.memory_space<vmem>>, vector<1x1x2x2048xbf16>
    %406 = vector.shape_cast %405 : vector<1x1x2x2048xbf16> to vector<2x2048xbf16>
    %407 = arith.extf %406 : vector<2x2048xbf16> to vector<2x2048xf32>
    %c8_168 = arith.constant 8 : index
    %c0_169 = arith.constant 0 : index
    %c0_170 = arith.constant 0 : index
    %408 = vector.load %arg3[%c8_168, %c0_169, %c0_170] : memref<9x4x2xbf16, #tpu.memory_space<vmem>>, vector<1x4x2xbf16>
    %409 = vector.shape_cast %408 : vector<1x4x2xbf16> to vector<4x2xbf16>
    %410 = arith.extf %409 : vector<4x2xbf16> to vector<4x2xf32>
    %411 = vector.extract_strided_slice %410 {offsets = [0, 0], sizes = [4, 1], strides = [1, 1]} : vector<4x2xf32> to vector<4x1xf32>
    %412 = vector.extract_strided_slice %407 {offsets = [0, 0], sizes = [1, 2048], strides = [1, 1]} : vector<2x2048xf32> to vector<1x2048xf32>
    %413 = vector.broadcast %411 : vector<4x1xf32> to vector<4x2048xf32>
    %414 = vector.broadcast %412 : vector<1x2048xf32> to vector<4x2048xf32>
    %415 = arith.mulf %413, %414 : vector<4x2048xf32>
    %416 = arith.addf %404, %415 : vector<4x2048xf32>
    %417 = vector.extract_strided_slice %410 {offsets = [0, 1], sizes = [4, 1], strides = [1, 1]} : vector<4x2xf32> to vector<4x1xf32>
    %418 = vector.extract_strided_slice %407 {offsets = [1, 0], sizes = [1, 2048], strides = [1, 1]} : vector<2x2048xf32> to vector<1x2048xf32>
    %419 = vector.broadcast %417 : vector<4x1xf32> to vector<4x2048xf32>
    %420 = vector.broadcast %418 : vector<1x2048xf32> to vector<4x2048xf32>
    %421 = arith.mulf %419, %420 : vector<4x2048xf32>
    %422 = arith.addf %416, %421 : vector<4x2048xf32>
    %423 = vector.extract_strided_slice %422 {offsets = [0, 0], sizes = [4, 16], strides = [1, 1]} : vector<4x2048xf32> to vector<4x16xf32>
    %424 = vector.broadcast %0 : vector<4x1xf32> to vector<4x16xf32>
    %425 = arith.addf %423, %424 : vector<4x16xf32>
    %c1_171 = arith.constant 1 : index
    %c0_172 = arith.constant 0 : index
    %c0_173 = arith.constant 0 : index
    %c0_174 = arith.constant 0 : index
    %426 = vector.load %arg5[%c1_171, %c0_172, %c0_173, %c0_174] : memref<2x4x16x16xf32, #tpu.memory_space<vmem>>, vector<1x4x1x16xf32>
    %427 = vector.shape_cast %426 : vector<1x4x1x16xf32> to vector<4x16xf32>
    %428 = vector.shape_cast %425 : vector<4x16xf32> to vector<1x4x1x16xf32>
    tpu.vector_store %arg5[%c1_171, %c0_172, %c0_173, %c0_174], %428 {strides = array<i32>} : memref<2x4x16x16xf32, #tpu.memory_space<vmem>>, vector<1x4x1x16xf32>,
    %429 = vector.extract_strided_slice %422 {offsets = [0, 128], sizes = [4, 16], strides = [1, 1]} : vector<4x2048xf32> to vector<4x16xf32>
    %430 = vector.broadcast %0 : vector<4x1xf32> to vector<4x16xf32>
    %431 = arith.addf %429, %430 : vector<4x16xf32>
    %c1_175 = arith.constant 1 : index
    %c0_176 = arith.constant 0 : index
    %c1_177 = arith.constant 1 : index
    %c0_178 = arith.constant 0 : index
    %432 = vector.load %arg5[%c1_175, %c0_176, %c1_177, %c0_178] : memref<2x4x16x16xf32, #tpu.memory_space<vmem>>, vector<1x4x1x16xf32>
    %433 = vector.shape_cast %432 : vector<1x4x1x16xf32> to vector<4x16xf32>
    %434 = vector.shape_cast %431 : vector<4x16xf32> to vector<1x4x1x16xf32>
    tpu.vector_store %arg5[%c1_175, %c0_176, %c1_177, %c0_178], %434 {strides = array<i32>} : memref<2x4x16x16xf32, #tpu.memory_space<vmem>>, vector<1x4x1x16xf32>,
    %435 = vector.extract_strided_slice %422 {offsets = [0, 256], sizes = [4, 16], strides = [1, 1]} : vector<4x2048xf32> to vector<4x16xf32>
    %436 = vector.broadcast %0 : vector<4x1xf32> to vector<4x16xf32>
    %437 = arith.addf %435, %436 : vector<4x16xf32>
    %c1_179 = arith.constant 1 : index
    %c0_180 = arith.constant 0 : index
    %c2_181 = arith.constant 2 : index
    %c0_182 = arith.constant 0 : index
    %438 = vector.load %arg5[%c1_179, %c0_180, %c2_181, %c0_182] : memref<2x4x16x16xf32, #tpu.memory_space<vmem>>, vector<1x4x1x16xf32>
    %439 = vector.shape_cast %438 : vector<1x4x1x16xf32> to vector<4x16xf32>
    %440 = vector.shape_cast %437 : vector<4x16xf32> to vector<1x4x1x16xf32>
    tpu.vector_store %arg5[%c1_179, %c0_180, %c2_181, %c0_182], %440 {strides = array<i32>} : memref<2x4x16x16xf32, #tpu.memory_space<vmem>>, vector<1x4x1x16xf32>,
    %441 = vector.extract_strided_slice %422 {offsets = [0, 384], sizes = [4, 16], strides = [1, 1]} : vector<4x2048xf32> to vector<4x16xf32>
    %442 = vector.broadcast %0 : vector<4x1xf32> to vector<4x16xf32>
    %443 = arith.addf %441, %442 : vector<4x16xf32>
    %c1_183 = arith.constant 1 : index
    %c0_184 = arith.constant 0 : index
    %c3_185 = arith.constant 3 : index
    %c0_186 = arith.constant 0 : index
    %444 = vector.load %arg5[%c1_183, %c0_184, %c3_185, %c0_186] : memref<2x4x16x16xf32, #tpu.memory_space<vmem>>, vector<1x4x1x16xf32>
    %445 = vector.shape_cast %444 : vector<1x4x1x16xf32> to vector<4x16xf32>
    %446 = vector.shape_cast %443 : vector<4x16xf32> to vector<1x4x1x16xf32>
    tpu.vector_store %arg5[%c1_183, %c0_184, %c3_185, %c0_186], %446 {strides = array<i32>} : memref<2x4x16x16xf32, #tpu.memory_space<vmem>>, vector<1x4x1x16xf32>,
    %447 = vector.extract_strided_slice %422 {offsets = [0, 512], sizes = [4, 16], strides = [1, 1]} : vector<4x2048xf32> to vector<4x16xf32>
    %448 = vector.broadcast %0 : vector<4x1xf32> to vector<4x16xf32>
    %449 = arith.addf %447, %448 : vector<4x16xf32>
    %c1_187 = arith.constant 1 : index
    %c0_188 = arith.constant 0 : index
    %c4_189 = arith.constant 4 : index
    %c0_190 = arith.constant 0 : index
    %450 = vector.load %arg5[%c1_187, %c0_188, %c4_189, %c0_190] : memref<2x4x16x16xf32, #tpu.memory_space<vmem>>, vector<1x4x1x16xf32>
    %451 = vector.shape_cast %450 : vector<1x4x1x16xf32> to vector<4x16xf32>
    %452 = vector.shape_cast %449 : vector<4x16xf32> to vector<1x4x1x16xf32>
    tpu.vector_store %arg5[%c1_187, %c0_188, %c4_189, %c0_190], %452 {strides = array<i32>} : memref<2x4x16x16xf32, #tpu.memory_space<vmem>>, vector<1x4x1x16xf32>,
    %453 = vector.extract_strided_slice %422 {offsets = [0, 640], sizes = [4, 16], strides = [1, 1]} : vector<4x2048xf32> to vector<4x16xf32>
    %454 = vector.broadcast %0 : vector<4x1xf32> to vector<4x16xf32>
    %455 = arith.addf %453, %454 : vector<4x16xf32>
    %c1_191 = arith.constant 1 : index
    %c0_192 = arith.constant 0 : index
    %c5_193 = arith.constant 5 : index
    %c0_194 = arith.constant 0 : index
    %456 = vector.load %arg5[%c1_191, %c0_192, %c5_193, %c0_194] : memref<2x4x16x16xf32, #tpu.memory_space<vmem>>, vector<1x4x1x16xf32>
    %457 = vector.shape_cast %456 : vector<1x4x1x16xf32> to vector<4x16xf32>
    %458 = vector.shape_cast %455 : vector<4x16xf32> to vector<1x4x1x16xf32>
    tpu.vector_store %arg5[%c1_191, %c0_192, %c5_193, %c0_194], %458 {strides = array<i32>} : memref<2x4x16x16xf32, #tpu.memory_space<vmem>>, vector<1x4x1x16xf32>,
    %459 = vector.extract_strided_slice %422 {offsets = [0, 768], sizes = [4, 16], strides = [1, 1]} : vector<4x2048xf32> to vector<4x16xf32>
    %460 = vector.broadcast %0 : vector<4x1xf32> to vector<4x16xf32>
    %461 = arith.addf %459, %460 : vector<4x16xf32>
    %c1_195 = arith.constant 1 : index
    %c0_196 = arith.constant 0 : index
    %c6_197 = arith.constant 6 : index
    %c0_198 = arith.constant 0 : index
    %462 = vector.load %arg5[%c1_195, %c0_196, %c6_197, %c0_198] : memref<2x4x16x16xf32, #tpu.memory_space<vmem>>, vector<1x4x1x16xf32>
    %463 = vector.shape_cast %462 : vector<1x4x1x16xf32> to vector<4x16xf32>
    %464 = vector.shape_cast %461 : vector<4x16xf32> to vector<1x4x1x16xf32>
    tpu.vector_store %arg5[%c1_195, %c0_196, %c6_197, %c0_198], %464 {strides = array<i32>} : memref<2x4x16x16xf32, #tpu.memory_space<vmem>>, vector<1x4x1x16xf32>,
    %465 = vector.extract_strided_slice %422 {offsets = [0, 896], sizes = [4, 16], strides = [1, 1]} : vector<4x2048xf32> to vector<4x16xf32>
    %466 = vector.broadcast %0 : vector<4x1xf32> to vector<4x16xf32>
    %467 = arith.addf %465, %466 : vector<4x16xf32>
    %c1_199 = arith.constant 1 : index
    %c0_200 = arith.constant 0 : index
    %c7_201 = arith.constant 7 : index
    %c0_202 = arith.constant 0 : index
    %468 = vector.load %arg5[%c1_199, %c0_200, %c7_201, %c0_202] : memref<2x4x16x16xf32, #tpu.memory_space<vmem>>, vector<1x4x1x16xf32>
    %469 = vector.shape_cast %468 : vector<1x4x1x16xf32> to vector<4x16xf32>
    %470 = vector.shape_cast %467 : vector<4x16xf32> to vector<1x4x1x16xf32>
    tpu.vector_store %arg5[%c1_199, %c0_200, %c7_201, %c0_202], %470 {strides = array<i32>} : memref<2x4x16x16xf32, #tpu.memory_space<vmem>>, vector<1x4x1x16xf32>,
    %471 = vector.extract_strided_slice %422 {offsets = [0, 1024], sizes = [4, 16], strides = [1, 1]} : vector<4x2048xf32> to vector<4x16xf32>
    %472 = vector.broadcast %0 : vector<4x1xf32> to vector<4x16xf32>
    %473 = arith.addf %471, %472 : vector<4x16xf32>
    %c1_203 = arith.constant 1 : index
    %c0_204 = arith.constant 0 : index
    %c8_205 = arith.constant 8 : index
    %c0_206 = arith.constant 0 : index
    %474 = vector.load %arg5[%c1_203, %c0_204, %c8_205, %c0_206] : memref<2x4x16x16xf32, #tpu.memory_space<vmem>>, vector<1x4x1x16xf32>
    %475 = vector.shape_cast %474 : vector<1x4x1x16xf32> to vector<4x16xf32>
    %476 = vector.shape_cast %473 : vector<4x16xf32> to vector<1x4x1x16xf32>
    tpu.vector_store %arg5[%c1_203, %c0_204, %c8_205, %c0_206], %476 {strides = array<i32>} : memref<2x4x16x16xf32, #tpu.memory_space<vmem>>, vector<1x4x1x16xf32>,
    %477 = vector.extract_strided_slice %422 {offsets = [0, 1152], sizes = [4, 16], strides = [1, 1]} : vector<4x2048xf32> to vector<4x16xf32>
    %478 = vector.broadcast %0 : vector<4x1xf32> to vector<4x16xf32>
    %479 = arith.addf %477, %478 : vector<4x16xf32>
    %c1_207 = arith.constant 1 : index
    %c0_208 = arith.constant 0 : index
    %c9_209 = arith.constant 9 : index
    %c0_210 = arith.constant 0 : index
    %480 = vector.load %arg5[%c1_207, %c0_208, %c9_209, %c0_210] : memref<2x4x16x16xf32, #tpu.memory_space<vmem>>, vector<1x4x1x16xf32>
    %481 = vector.shape_cast %480 : vector<1x4x1x16xf32> to vector<4x16xf32>
    %482 = vector.shape_cast %479 : vector<4x16xf32> to vector<1x4x1x16xf32>
    tpu.vector_store %arg5[%c1_207, %c0_208, %c9_209, %c0_210], %482 {strides = array<i32>} : memref<2x4x16x16xf32, #tpu.memory_space<vmem>>, vector<1x4x1x16xf32>,
    %483 = vector.extract_strided_slice %422 {offsets = [0, 1280], sizes = [4, 16], strides = [1, 1]} : vector<4x2048xf32> to vector<4x16xf32>
    %484 = vector.broadcast %0 : vector<4x1xf32> to vector<4x16xf32>
    %485 = arith.addf %483, %484 : vector<4x16xf32>
    %c1_211 = arith.constant 1 : index
    %c0_212 = arith.constant 0 : index
    %c10_213 = arith.constant 10 : index
    %c0_214 = arith.constant 0 : index
    %486 = vector.load %arg5[%c1_211, %c0_212, %c10_213, %c0_214] : memref<2x4x16x16xf32, #tpu.memory_space<vmem>>, vector<1x4x1x16xf32>
    %487 = vector.shape_cast %486 : vector<1x4x1x16xf32> to vector<4x16xf32>
    %488 = vector.shape_cast %485 : vector<4x16xf32> to vector<1x4x1x16xf32>
    tpu.vector_store %arg5[%c1_211, %c0_212, %c10_213, %c0_214], %488 {strides = array<i32>} : memref<2x4x16x16xf32, #tpu.memory_space<vmem>>, vector<1x4x1x16xf32>,
    %489 = vector.extract_strided_slice %422 {offsets = [0, 1408], sizes = [4, 16], strides = [1, 1]} : vector<4x2048xf32> to vector<4x16xf32>
    %490 = vector.broadcast %0 : vector<4x1xf32> to vector<4x16xf32>
    %491 = arith.addf %489, %490 : vector<4x16xf32>
    %c1_215 = arith.constant 1 : index
    %c0_216 = arith.constant 0 : index
    %c11_217 = arith.constant 11 : index
    %c0_218 = arith.constant 0 : index
    %492 = vector.load %arg5[%c1_215, %c0_216, %c11_217, %c0_218] : memref<2x4x16x16xf32, #tpu.memory_space<vmem>>, vector<1x4x1x16xf32>
    %493 = vector.shape_cast %492 : vector<1x4x1x16xf32> to vector<4x16xf32>
    %494 = vector.shape_cast %491 : vector<4x16xf32> to vector<1x4x1x16xf32>
    tpu.vector_store %arg5[%c1_215, %c0_216, %c11_217, %c0_218], %494 {strides = array<i32>} : memref<2x4x16x16xf32, #tpu.memory_space<vmem>>, vector<1x4x1x16xf32>,
    %495 = vector.extract_strided_slice %422 {offsets = [0, 1536], sizes = [4, 16], strides = [1, 1]} : vector<4x2048xf32> to vector<4x16xf32>
    %496 = vector.broadcast %0 : vector<4x1xf32> to vector<4x16xf32>
    %497 = arith.addf %495, %496 : vector<4x16xf32>
    %c1_219 = arith.constant 1 : index
    %c0_220 = arith.constant 0 : index
    %c12_221 = arith.constant 12 : index
    %c0_222 = arith.constant 0 : index
    %498 = vector.load %arg5[%c1_219, %c0_220, %c12_221, %c0_222] : memref<2x4x16x16xf32, #tpu.memory_space<vmem>>, vector<1x4x1x16xf32>
    %499 = vector.shape_cast %498 : vector<1x4x1x16xf32> to vector<4x16xf32>
    %500 = vector.shape_cast %497 : vector<4x16xf32> to vector<1x4x1x16xf32>
    tpu.vector_store %arg5[%c1_219, %c0_220, %c12_221, %c0_222], %500 {strides = array<i32>} : memref<2x4x16x16xf32, #tpu.memory_space<vmem>>, vector<1x4x1x16xf32>,
    %501 = vector.extract_strided_slice %422 {offsets = [0, 1664], sizes = [4, 16], strides = [1, 1]} : vector<4x2048xf32> to vector<4x16xf32>
    %502 = vector.broadcast %0 : vector<4x1xf32> to vector<4x16xf32>
    %503 = arith.addf %501, %502 : vector<4x16xf32>
    %c1_223 = arith.constant 1 : index
    %c0_224 = arith.constant 0 : index
    %c13_225 = arith.constant 13 : index
    %c0_226 = arith.constant 0 : index
    %504 = vector.load %arg5[%c1_223, %c0_224, %c13_225, %c0_226] : memref<2x4x16x16xf32, #tpu.memory_space<vmem>>, vector<1x4x1x16xf32>
    %505 = vector.shape_cast %504 : vector<1x4x1x16xf32> to vector<4x16xf32>
    %506 = vector.shape_cast %503 : vector<4x16xf32> to vector<1x4x1x16xf32>
    tpu.vector_store %arg5[%c1_223, %c0_224, %c13_225, %c0_226], %506 {strides = array<i32>} : memref<2x4x16x16xf32, #tpu.memory_space<vmem>>, vector<1x4x1x16xf32>,
    %507 = vector.extract_strided_slice %422 {offsets = [0, 1792], sizes = [4, 16], strides = [1, 1]} : vector<4x2048xf32> to vector<4x16xf32>
    %508 = vector.broadcast %0 : vector<4x1xf32> to vector<4x16xf32>
    %509 = arith.addf %507, %508 : vector<4x16xf32>
    %c1_227 = arith.constant 1 : index
    %c0_228 = arith.constant 0 : index
    %c14_229 = arith.constant 14 : index
    %c0_230 = arith.constant 0 : index
    %510 = vector.load %arg5[%c1_227, %c0_228, %c14_229, %c0_230] : memref<2x4x16x16xf32, #tpu.memory_space<vmem>>, vector<1x4x1x16xf32>
    %511 = vector.shape_cast %510 : vector<1x4x1x16xf32> to vector<4x16xf32>
    %512 = vector.shape_cast %509 : vector<4x16xf32> to vector<1x4x1x16xf32>
    tpu.vector_store %arg5[%c1_227, %c0_228, %c14_229, %c0_230], %512 {strides = array<i32>} : memref<2x4x16x16xf32, #tpu.memory_space<vmem>>, vector<1x4x1x16xf32>,
    %513 = vector.extract_strided_slice %422 {offsets = [0, 1920], sizes = [4, 16], strides = [1, 1]} : vector<4x2048xf32> to vector<4x16xf32>
    %514 = vector.broadcast %0 : vector<4x1xf32> to vector<4x16xf32>
    %515 = arith.addf %513, %514 : vector<4x16xf32>
    %c1_231 = arith.constant 1 : index
    %c0_232 = arith.constant 0 : index
    %c15_233 = arith.constant 15 : index
    %c0_234 = arith.constant 0 : index
    %516 = vector.load %arg5[%c1_231, %c0_232, %c15_233, %c0_234] : memref<2x4x16x16xf32, #tpu.memory_space<vmem>>, vector<1x4x1x16xf32>
    %517 = vector.shape_cast %516 : vector<1x4x1x16xf32> to vector<4x16xf32>
    %518 = vector.shape_cast %515 : vector<4x16xf32> to vector<1x4x1x16xf32>
    tpu.vector_store %arg5[%c1_231, %c0_232, %c15_233, %c0_234], %518 {strides = array<i32>} : memref<2x4x16x16xf32, #tpu.memory_space<vmem>>, vector<1x4x1x16xf32>,
    return
  }
  func.func @transform_0(%arg0: i32, %arg1: i32) -> (i32, i32, i32, i32) {
    %c0_i32 = arith.constant 0 : i32
    %c0_i32_0 = arith.constant 0 : i32
    %c0_i32_1 = arith.constant 0 : i32
    return %arg0, %arg1, %c0_i32, %c0_i32_0 : i32, i32, i32, i32
  }
  func.func @transform_1(%arg0: i32, %arg1: i32) -> (i32, i32, i32) {
    %c0_i32 = arith.constant 0 : i32
    %c0_i32_0 = arith.constant 0 : i32
    %c0_i32_1 = arith.constant 0 : i32
    %c0_i32_2 = arith.constant 0 : i32
    return %c0_i32, %c0_i32_0, %c0_i32_1 : i32, i32, i32
  }
  func.func @transform_2(%arg0: i32, %arg1: i32) -> (i32, i32) {
    %c0_i32 = arith.constant 0 : i32
    %c0_i32_0 = arith.constant 0 : i32
    %c0_i32_1 = arith.constant 0 : i32
    return %c0_i32, %c0_i32_0 : i32, i32
  }
  func.func @transform_3(%arg0: i32, %arg1: i32) -> (i32, i32, i32, i32) {
    %c0_i32 = arith.constant 0 : i32
    %c0_i32_0 = arith.constant 0 : i32
    %c0_i32_1 = arith.constant 0 : i32
    return %arg0, %c0_i32, %arg1, %c0_i32_0 : i32, i32, i32, i32
  }
}

</mosaic_0001>

<llo_original>
// kernel: tpu_custom_call.1
$region0: #{tpu_custom_call.1}
  #allocation0 [shape = 'u32[]', space=smem, size = 0x4, offset = 0x4, fixed_abs, tag = 'smem constant byte address 0x4 - core index']
  #allocation1 [shape = 'u32[72,128]{1,0:T(1,128)}', space=vmem, size = 0x9000, scoped, tag = 'internal scratch']
  %s0 = inlined_call_operand.hbm [shape: bf16[4,1,2,2432], index: 0, kind: input, shape index: {}]
  %s1 = inlined_call_operand.vmem [shape: bf16[9,4,2], index: 1, kind: input, shape index: {}]
  %s2 = inlined_call_operand.vmem [shape: f32[4,1], index: 2, kind: input, shape index: {}]
  %s3 = inlined_call_operand.hbm [shape: f32[4,4,16,16], index: 3, kind: output, shape index: {}]
  %s4 = sld [smem:[#allocation0]]
  $region49: #{tpu_custom_call.1} parent=0
    _
  %s6 = ssub.s32 1, %s4
  %s7 = scalar_select 0, %s6, %s4
  $region1: #{tpu_custom_call.1} parent=0
    #allocation2 [shape = 'u8[38912]{0}', space=vmem, size = 0x9800, scoped, tag = 'input window, operand 0']
    #allocation3 [shape = 's32[2]{0}', space=sflag, size = 0x8, scoped, tag = 'scoped memory for tpu_custom_call.1']
    #allocation4 [shape = 's32[2]{0}', space=sflag, size = 0x8, scoped, tag = 'scoped memory for tpu_custom_call.1']
    #allocation5 [shape = 'u8[131072]{0}', space=vmem, size = 0x20000, scoped, tag = 'output window, operand 0']
    %8 = vsyncpa [#allocation3], 0
    %s9 = scalar_lea.sflag [#allocation3], 1
    %10 = vsyncpa %s9, 0
    %11 = vsyncpa [#allocation4], 0
    %s12 = scalar_lea.sflag [#allocation4], 1
    %13 = vsyncpa %s12, 0
    loop: start=0, step=1, limit=4
    $region2: #{tpu_custom_call.1} parent=1 // loop_pre_header
      _
    $region3: #{tpu_custom_call.1} parent=1 // loop_header
      %s15 = sphi 0, %s19
      %p16 = scmp.ge.s32.totalorder %s15, 4
      %s22 = sphi 0, %s34
      %s23 = sphi 0, %s30
      %s24 = sphi 0, %s22
      %s25 = sphi 0, %s23
      %s26 = sphi 0, %s24
      %s27 = sphi 0, %s25
      %s39 = sphi 0, %s41
      %s42 = sphi 0, %s39
      %s43 = sphi 0, %s42
      %s59 = sphi 0, %s43
      %s63 = sphi 0, %s63
      %s65 = sphi 0, %s63
      %s66 = sphi 0, %s65
      %s80 = sphi 0, %s66
      %s84 = sphi 0, %s84
      %s86 = sphi 0, %s84
      %s87 = sphi 0, %s86
      %s101 = sphi 0, %s87
      %s109 = sphi 0, %s111
      %s112 = sphi 0, %s109
      %s113 = sphi 0, %s112
      %s129 = sphi 0, %s113
    $region4: #{tpu_custom_call.1} parent=1 // loop_header_branch
      %18 = sbr.rel (%p16) target = $region8
    $region5: #{tpu_custom_call.1} parent=1 // loop_body
      %s20 = ssub.s32 %s15, 1
      %s21 = ssub.s32 %s15, 2
      %s28 = sadd.s32 1, %s23
      %p29 = scmp.ge.s32.totalorder %s28, 1
      %s30 = scalar_select %p29, 0, %s28
      %s31 = sadd.s32 1, %s22
      %s32 = scalar_select %p29, %s31, %s22
      %p33 = scmp.ge.s32.totalorder %s32, 2
      %s34 = scalar_select %p33, 0, %s32
      %s35 = ssub.s32 %s22, %s34
      %s36 = ssub.s32 %s23, %s30
      %s37 = sor.u32 %s35, %s36
      %p38 = scmp.eq.s32.totalorder %s37, 0
      %s40 = sadd.s32 %s39, 1
      %s41 = scalar_select %p38, %s39, %s40
      %p44 = pneg %p38
      %p45 = scmp.eq.s32.totalorder %s15, 1
      %p46 = por %p44, %p45
      %p47 = scmp.ne.s32.totalorder %s39, %s42
      %p48 = scmp.eq.s32.totalorder %s15, 0
      %p49 = por %p47, %p48
      %p50 = scmp.ne.s32.totalorder %s39, %s42
      %p51 = scmp.eq.s32.totalorder %s20, 1
      %p52 = por %p50, %p51
      %p53 = scmp.ne.s32.totalorder %s42, %s43
      %p54 = scmp.eq.s32.totalorder %s20, 0
      %p55 = por %p53, %p54
      %p56 = scmp.ne.s32.totalorder %s42, %s43
      %p57 = scmp.eq.s32.totalorder %s21, 1
      %p58 = por %p56, %p57
      %p60 = scmp.ne.s32.totalorder %s43, %s59
      %p61 = scmp.eq.s32.totalorder %s21, 0
      %p62 = por %p60, %p61
      %s64 = sadd.s32 %s63, 1
      %p67 = scmp.eq.s32.totalorder %s15, 1
      %p68 = scmp.ne.s32.totalorder %s63, %s65
      %p69 = scmp.eq.s32.totalorder %s15, 0
      %p70 = por %p68, %p69
      %p71 = scmp.ne.s32.totalorder %s63, %s65
      %p72 = scmp.eq.s32.totalorder %s20, 1
      %p73 = por %p71, %p72
      %p74 = scmp.ne.s32.totalorder %s65, %s66
      %p75 = scmp.eq.s32.totalorder %s20, 0
      %p76 = por %p74, %p75
      %p77 = scmp.ne.s32.totalorder %s65, %s66
      %p78 = scmp.eq.s32.totalorder %s21, 1
      %p79 = por %p77, %p78
      %p81 = scmp.ne.s32.totalorder %s66, %s80
      %p82 = scmp.eq.s32.totalorder %s21, 0
      %p83 = por %p81, %p82
      %s85 = sadd.s32 %s84, 1
      %p88 = scmp.eq.s32.totalorder %s15, 1
      %p89 = scmp.ne.s32.totalorder %s84, %s86
      %p90 = scmp.eq.s32.totalorder %s15, 0
      %p91 = por %p89, %p90
      %p92 = scmp.ne.s32.totalorder %s84, %s86
      %p93 = scmp.eq.s32.totalorder %s20, 1
      %p94 = por %p92, %p93
      %p95 = scmp.ne.s32.totalorder %s86, %s87
      %p96 = scmp.eq.s32.totalorder %s20, 0
      %p97 = por %p95, %p96
      %p98 = scmp.ne.s32.totalorder %s86, %s87
      %p99 = scmp.eq.s32.totalorder %s21, 1
      %p100 = por %p98, %p99
      %p102 = scmp.ne.s32.totalorder %s87, %s101
      %p103 = scmp.eq.s32.totalorder %s21, 0
      %p104 = por %p102, %p103
      %s105 = ssub.s32 %s22, %s34
      %s106 = ssub.s32 %s23, %s30
      %s107 = sor.u32 %s105, %s106
      %p108 = scmp.eq.s32.totalorder %s107, 0
      %s110 = sadd.s32 %s109, 1
      %s111 = scalar_select %p108, %s109, %s110
      %p114 = pneg %p108
      %p115 = scmp.eq.s32.totalorder %s15, 1
      %p116 = por %p114, %p115
      %p117 = scmp.ne.s32.totalorder %s109, %s112
      %p118 = scmp.eq.s32.totalorder %s15, 0
      %p119 = por %p117, %p118
      %p120 = scmp.ne.s32.totalorder %s109, %s112
      %p121 = scmp.eq.s32.totalorder %s20, 1
      %p122 = por %p120, %p121
      %p123 = scmp.ne.s32.totalorder %s112, %s113
      %p124 = scmp.eq.s32.totalorder %s20, 0
      %p125 = por %p123, %p124
      %p126 = scmp.ne.s32.totalorder %s112, %s113
      %p127 = scmp.eq.s32.totalorder %s21, 1
      %p128 = por %p126, %p127
      %p130 = scmp.ne.s32.totalorder %s113, %s129
      %p131 = scmp.eq.s32.totalorder %s21, 0
      %p132 = por %p130, %p131
      %p133 = scmp.le.s32.totalorder 1, %s15
      %p134 = scmp.lt.s32.totalorder %s15, 3
      %p135 = pnand %p133, %p134
      %p136 = pneg %p135
      // Predicated region
      $region9: #{tpu_custom_call.1} parent=5 // pred_check
        _
      $region10: #{tpu_custom_call.1} parent=5 // pred_check_branch
        %138 = sbr.rel (%p135) target = $region12
      $region11: #{tpu_custom_call.1} parent=5 // pred_region
        %s139 = ssub.s32 %s15, 1
        // Predicated region
        $region13: #{tpu_custom_call.1} parent=11 // pred_check
          %p140 = pneg %p76
        $region14: #{tpu_custom_call.1} parent=11 // pred_check_branch
          %142 = sbr.rel (%p140) target = $region16
        $region15: #{tpu_custom_call.1} parent=11 // pred_region
          _
        $region16: #{tpu_custom_call.1} parent=11 // pred_fallthru
          _
        // Predicated region
        $region17: #{tpu_custom_call.1} parent=11 // pred_check
          %p143 = pneg %p97
        $region18: #{tpu_custom_call.1} parent=11 // pred_check_branch
          %145 = sbr.rel (%p143) target = $region20
        $region19: #{tpu_custom_call.1} parent=11 // pred_region
          _
        $region20: #{tpu_custom_call.1} parent=11 // pred_fallthru
          _
      $region12: #{tpu_custom_call.1} parent=5 // pred_fallthru
        _
      %p146 = scmp.lt.s32.totalorder %s15, 2
      // Predicated region
      $region21: #{tpu_custom_call.1} parent=5 // pred_check
        %p147 = pneg %p146
      $region22: #{tpu_custom_call.1} parent=5 // pred_check_branch
        %149 = sbr.rel (%p147) target = $region24
      $region23: #{tpu_custom_call.1} parent=5 // pred_region
        // Predicated region
        $region25: #{tpu_custom_call.1} parent=23 // pred_check
          %p150 = pneg %p49
        $region26: #{tpu_custom_call.1} parent=23 // pred_check_branch
          %152 = sbr.rel (%p150) target = $region28
        $region27: #{tpu_custom_call.1} parent=23 // pred_region
          %s153 = sand.u32 %s39, 1
          %s154 = scalar_lea.sflag [#allocation3], %s153
          %s155 = sand.u32 %s39, 1
          %s156 = smul.addr %s155, 38
          %s157 = scalar_lea.vmem [#allocation2], %s156
          %s158 = smul.u32 2, %s22
          %160 = vsyncadd %s154, 0
          %s161 = smul.addr %s23, 19
          %s162 = smul.addr %s158, 19
          %s163 = sadd.s32 %s161, %s162
          %s164 = scalar_lea.hbm %s0, %s163
          %s165 = sshll.u32 %s164, 4
          %s166 = int_to_ptr.hbm [resolvable:$true] %s165
          %s167 = sshll.u32 %s157, 4
          %s168 = int_to_ptr.vmem [resolvable:$true] %s167
          %173 = dma.hbm_to_vmem [thread:$0]  %s166, 608, %s168, %s154, 304, 304, 19
        $region28: #{tpu_custom_call.1} parent=23 // pred_fallthru
          _
      $region24: #{tpu_custom_call.1} parent=5 // pred_fallthru
        _
      %p174 = scmp.le.s32.totalorder 1, %s15
      %p175 = scmp.lt.s32.totalorder %s15, 3
      %p176 = pnand %p174, %p175
      %p177 = pneg %p176
      // Predicated region
      $region29: #{tpu_custom_call.1} parent=5 // pred_check
        _
      $region30: #{tpu_custom_call.1} parent=5 // pred_check_branch
        %179 = sbr.rel (%p176) target = $region32
      $region31: #{tpu_custom_call.1} parent=5 // pred_region
        %s180 = ssub.s32 %s15, 1
        %s181 = sand.u32 %s42, 1
        %s182 = scalar_lea.sflag [#allocation3], %s181
        %s183 = sand.u32 %s42, 1
        %s184 = smul.addr %s183, 38
        %s185 = scalar_lea.vmem [#allocation2], %s184
        // Predicated region
        $region33: #{tpu_custom_call.1} parent=31 // pred_check
          %p186 = pneg %p55
        $region34: #{tpu_custom_call.1} parent=31 // pred_check_branch
          %188 = sbr.rel (%p186) target = $region36
        $region35: #{tpu_custom_call.1} parent=31 // pred_region
          %190 = dma.done %s182, 608
        $region36: #{tpu_custom_call.1} parent=31 // pred_fallthru
          _
        %s191 = sand.u32 %s42, 1
        %s192 = scalar_lea.sflag [#allocation3], %s191
        %s193 = sand.u32 %s42, 1
        %s194 = smul.addr %s193, 38
        %s195 = scalar_lea.vmem [#allocation2], %s194
        %p196 = pneg %p55
        %p197 = pneg %p52
        %p198 = pneg %p76
        %p199 = pneg %p73
        %p200 = pneg %p97
        %p201 = pneg %p94
        %p202 = pneg %p125
        %p203 = pneg %p122
        %s204 = sand.u32 %s112, 1
        %s205 = scalar_lea.sflag [#allocation4], %s204
        %s206 = sand.u32 %s112, 1
        %s207 = smul.addr %s206, 128
        %s208 = scalar_lea.vmem [#allocation5], %s207
        %s209 = smul.u32 2, %s24
        %s210 = smul.u32 2, %s24
        %s211 = smul.u32 2, %s25
        %v212 = vld [vmem:[%s2] sm:$0xf]
        %v213 = vld [vmem:[%s185] sm:$0xff]
        %v214 = vld [vmem:[%s185 + $0x8] sm:$0xff]
        %v215 = vunpack.c.l.bf16 %v213
        %v216 = vunpack.c.h.bf16 %v213
        %v217 = vunpack.c.l.bf16 %v214
        %v218 = vunpack.c.h.bf16 %v214
        %v219 = vld [vmem:[%s1] sm:$0x3]
        %v220 = vunpack.c.l.bf16 %v219
        %222 = vset.pattern.permute.xlu0 0
        %223 = vperm.xlu0 %222, %v220
        %v224 = vpop.permute.xlu0 %223
        %v227 = vunpack.c.l.s4 839922192
        %v228 = vunpack.c.0.s8 %v227
        %v229 = vperm.slane %v224, %v228
        %v234 = vperm.slane %v215, 0
        %v235 = vperm.slane %v215, 2
        %v236 = vperm.slane %v215, 4
        %v237 = vperm.slane %v215, 6
        %v238 = vperm.slane %v216, 0
        %v239 = vperm.slane %v216, 2
        %v240 = vperm.slane %v216, 4
        %v241 = vperm.slane %v216, 6
        %v242 = vperm.slane %v217, 0
        %v243 = vperm.slane %v217, 2
        %v244 = vperm.slane %v217, 4
        %v245 = vperm.slane %v217, 6
        %v246 = vperm.slane %v218, 0
        %v247 = vperm.slane %v218, 2
        %v248 = vperm.slane %v218, 4
        %v249 = vperm.slane %v218, 6
        %v266 = vperm.slane %v234, 0
        %v267 = vperm.slane %v235, 0
        %v268 = vperm.slane %v236, 0
        %v269 = vperm.slane %v237, 0
        %v270 = vperm.slane %v238, 0
        %v271 = vperm.slane %v239, 0
        %v272 = vperm.slane %v240, 0
        %v273 = vperm.slane %v241, 0
        %v274 = vperm.slane %v242, 0
        %v275 = vperm.slane %v243, 0
        %v276 = vperm.slane %v244, 0
        %v277 = vperm.slane %v245, 0
        %v278 = vperm.slane %v246, 0
        %v279 = vperm.slane %v247, 0
        %v280 = vperm.slane %v248, 0
        %v281 = vperm.slane %v249, 0
        %v298 = vrot.slane %v267, 4
        %v299 = vrot.slane %v269, 4
        %v300 = vrot.slane %v271, 4
        %v301 = vrot.slane %v273, 4
        %v302 = vrot.slane %v275, 4
        %v303 = vrot.slane %v277, 4
        %v304 = vrot.slane %v279, 4
        %v305 = vrot.slane %v281, 4
        %vm306 = vcmask 1043456
        %v307 = vsel %vm306, %v266, %v298
        %v308 = vsel %vm306, %v268, %v299
        %v309 = vsel %vm306, %v270, %v300
        %v310 = vsel %vm306, %v272, %v301
        %v311 = vsel %vm306, %v274, %v302
        %v312 = vsel %vm306, %v276, %v303
        %v313 = vsel %vm306, %v278, %v304
        %v314 = vsel %vm306, %v280, %v305
        %v323 = vmul.f32 %v229, %v307
        %v324 = vmul.f32 %v229, %v308
        %v325 = vmul.f32 %v229, %v309
        %v326 = vmul.f32 %v229, %v310
        %v327 = vmul.f32 %v229, %v311
        %v328 = vmul.f32 %v229, %v312
        %v329 = vmul.f32 %v229, %v313
        %v330 = vmul.f32 %v229, %v314
        %v331 = vadd.f32 %v323, 0.0
        %v332 = vadd.f32 %v324, 0.0
        %v333 = vadd.f32 %v325, 0.0
        %v334 = vadd.f32 %v326, 0.0
        %v335 = vadd.f32 %v327, 0.0
        %v336 = vadd.f32 %v328, 0.0
        %v337 = vadd.f32 %v329, 0.0
        %v338 = vadd.f32 %v330, 0.0
        %339 = vset.pattern.permute.xlu0 1
        %340 = vperm.xlu0 %339, %v220
        %v341 = vpop.permute.xlu0 %340
        %v344 = vunpack.c.l.s4 839922192
        %v345 = vunpack.c.0.s8 %v344
        %v346 = vperm.slane %v341, %v345
        %v347 = vperm.slane %v215, 1
        %v348 = vperm.slane %v215, 3
        %v349 = vperm.slane %v215, 5
        %v350 = vperm.slane %v215, 7
        %v351 = vperm.slane %v216, 1
        %v352 = vperm.slane %v216, 3
        %v353 = vperm.slane %v216, 5
        %v354 = vperm.slane %v216, 7
        %v355 = vperm.slane %v217, 1
        %v356 = vperm.slane %v217, 3
        %v357 = vperm.slane %v217, 5
        %v358 = vperm.slane %v217, 7
        %v359 = vperm.slane %v218, 1
        %v360 = vperm.slane %v218, 3
        %v361 = vperm.slane %v218, 5
        %v362 = vperm.slane %v218, 7
        %v379 = vperm.slane %v347, 1
        %v380 = vperm.slane %v348, 1
        %v381 = vperm.slane %v349, 1
        %v382 = vperm.slane %v350, 1
        %v383 = vperm.slane %v351, 1
        %v384 = vperm.slane %v352, 1
        %v385 = vperm.slane %v353, 1
        %v386 = vperm.slane %v354, 1
        %v387 = vperm.slane %v355, 1
        %v388 = vperm.slane %v356, 1
        %v389 = vperm.slane %v357, 1
        %v390 = vperm.slane %v358, 1
        %v391 = vperm.slane %v359, 1
        %v392 = vperm.slane %v360, 1
        %v393 = vperm.slane %v361, 1
        %v394 = vperm.slane %v362, 1
        %v411 = vrot.slane %v380, 4
        %v412 = vrot.slane %v382, 4
        %v413 = vrot.slane %v384, 4
        %v414 = vrot.slane %v386, 4
        %v415 = vrot.slane %v388, 4
        %v416 = vrot.slane %v390, 4
        %v417 = vrot.slane %v392, 4
        %v418 = vrot.slane %v394, 4
        %v419 = vsel %vm306, %v379, %v411
        %v420 = vsel %vm306, %v381, %v412
        %v421 = vsel %vm306, %v383, %v413
        %v422 = vsel %vm306, %v385, %v414
        %v423 = vsel %vm306, %v387, %v415
        %v424 = vsel %vm306, %v389, %v416
        %v425 = vsel %vm306, %v391, %v417
        %v426 = vsel %vm306, %v393, %v418
        %v435 = vmul.f32 %v346, %v419
        %v436 = vmul.f32 %v346, %v420
        %v437 = vmul.f32 %v346, %v421
        %v438 = vmul.f32 %v346, %v422
        %v439 = vmul.f32 %v346, %v423
        %v440 = vmul.f32 %v346, %v424
        %v441 = vmul.f32 %v346, %v425
        %v442 = vmul.f32 %v346, %v426
        %v443 = vadd.f32 %v331, %v435
        %v444 = vadd.f32 %v332, %v436
        %v445 = vadd.f32 %v333, %v437
        %v446 = vadd.f32 %v334, %v438
        %v447 = vadd.f32 %v335, %v439
        %v448 = vadd.f32 %v336, %v440
        %v449 = vadd.f32 %v337, %v441
        %v450 = vadd.f32 %v338, %v442
        %v451 = vld [vmem:[%s185] sm:$0xff]
        %v452 = vld [vmem:[%s185 + $0x8] sm:$0xff]
        %v453 = vld [vmem:[%s185 + $0x10] sm:$0x1]
        %v454 = vunpack.c.l.bf16 %v451
        %v455 = vunpack.c.h.bf16 %v451
        %v456 = vunpack.c.l.bf16 %v452
        %v457 = vunpack.c.h.bf16 %v452
        %v458 = vunpack.c.l.bf16 %v453
        %s459 = scalar_lea.vmem %s1, 2
        %v460 = vld [vmem:[%s459] sm:$0x3]
        %v461 = vunpack.c.l.bf16 %v460
        %463 = vset.pattern.permute.xlu0 0
        %464 = vperm.xlu0 %463, %v461
        %v465 = vpop.permute.xlu0 %464
        %v468 = vunpack.c.l.s4 839922192
        %v469 = vunpack.c.0.s8 %v468
        %v470 = vperm.slane %v465, %v469
        %v476 = vperm.slane %v454, 0
        %v477 = vperm.slane %v454, 2
        %v478 = vperm.slane %v454, 4
        %v479 = vperm.slane %v454, 6
        %v480 = vperm.slane %v455, 0
        %v481 = vperm.slane %v455, 2
        %v482 = vperm.slane %v455, 4
        %v483 = vperm.slane %v455, 6
        %v484 = vperm.slane %v456, 0
        %v485 = vperm.slane %v456, 2
        %v486 = vperm.slane %v456, 4
        %v487 = vperm.slane %v456, 6
        %v488 = vperm.slane %v457, 0
        %v489 = vperm.slane %v457, 2
        %v490 = vperm.slane %v457, 4
        %v491 = vperm.slane %v457, 6
        %v492 = vperm.slane %v458, 0
        %v510 = vperm.slane %v476, 0
        %v511 = vperm.slane %v477, 0
        %v512 = vperm.slane %v478, 0
        %v513 = vperm.slane %v479, 0
        %v514 = vperm.slane %v480, 0
        %v515 = vperm.slane %v481, 0
        %v516 = vperm.slane %v482, 0
        %v517 = vperm.slane %v483, 0
        %v518 = vperm.slane %v484, 0
        %v519 = vperm.slane %v485, 0
        %v520 = vperm.slane %v486, 0
        %v521 = vperm.slane %v487, 0
        %v522 = vperm.slane %v488, 0
        %v523 = vperm.slane %v489, 0
        %v524 = vperm.slane %v490, 0
        %v525 = vperm.slane %v491, 0
        %v526 = vperm.slane %v492, 0
        %v544 = vrot.slane %v511, 4
        %v545 = vrot.slane %v513, 4
        %v546 = vrot.slane %v515, 4
        %v547 = vrot.slane %v517, 4
        %v548 = vrot.slane %v519, 4
        %v549 = vrot.slane %v521, 4
        %v550 = vrot.slane %v523, 4
        %v551 = vrot.slane %v525, 4
        %v552 = vsel %vm306, %v510, %v544
        %v553 = vsel %vm306, %v512, %v545
        %v554 = vsel %vm306, %v514, %v546
        %v555 = vsel %vm306, %v516, %v547
        %v556 = vsel %vm306, %v518, %v548
        %v557 = vsel %vm306, %v520, %v549
        %v558 = vsel %vm306, %v522, %v550
        %v559 = vsel %vm306, %v524, %v551
        %560 = vrot.lane.b32.xlu0 %v552, 127
        %v561 = vpop.permute.xlu0 %560
        %562 = vrot.lane.b32.xlu0 %v553, 127
        %v563 = vpop.permute.xlu0 %562
        %564 = vrot.lane.b32.xlu0 %v554, 127
        %v565 = vpop.permute.xlu0 %564
        %566 = vrot.lane.b32.xlu0 %v555, 127
        %v567 = vpop.permute.xlu0 %566
        %568 = vrot.lane.b32.xlu0 %v556, 127
        %v569 = vpop.permute.xlu0 %568
        %570 = vrot.lane.b32.xlu0 %v557, 127
        %v571 = vpop.permute.xlu0 %570
        %572 = vrot.lane.b32.xlu0 %v558, 127
        %v573 = vpop.permute.xlu0 %572
        %574 = vrot.lane.b32.xlu0 %v559, 127
        %v575 = vpop.permute.xlu0 %574
        %576 = vrot.lane.b32.xlu0 %v526, 127
        %v577 = vpop.permute.xlu0 %576
        %v578 = vrot.slane %v561, 4
        %v579 = vrot.slane %v563, 4
        %v580 = vrot.slane %v565, 4
        %v581 = vrot.slane %v567, 4
        %v582 = vrot.slane %v569, 4
        %v583 = vrot.slane %v571, 4
        %v584 = vrot.slane %v573, 4
        %v585 = vrot.slane %v575, 4
        %v586 = vrot.slane %v577, 4
        %v587 = vsel %vm306, %v578, %v579
        %vm588 = vcmask 1039360
        %v589 = vsel %vm588, %v561, %v587
        %v590 = vsel %vm306, %v579, %v580
        %v591 = vsel %vm588, %v563, %v590
        %v592 = vsel %vm306, %v580, %v581
        %v593 = vsel %vm588, %v565, %v592
        %v594 = vsel %vm306, %v581, %v582
        %v595 = vsel %vm588, %v567, %v594
        %v596 = vsel %vm306, %v582, %v583
        %v597 = vsel %vm588, %v569, %v596
        %v598 = vsel %vm306, %v583, %v584
        %v599 = vsel %vm588, %v571, %v598
        %v600 = vsel %vm306, %v584, %v585
        %v601 = vsel %vm588, %v573, %v600
        %v602 = vsel %vm306, %v585, %v586
        %v603 = vsel %vm588, %v575, %v602
        %v612 = vmul.f32 %v470, %v589
        %v613 = vmul.f32 %v470, %v591
        %v614 = vmul.f32 %v470, %v593
        %v615 = vmul.f32 %v470, %v595
        %v616 = vmul.f32 %v470, %v597
        %v617 = vmul.f32 %v470, %v599
        %v618 = vmul.f32 %v470, %v601
        %v619 = vmul.f32 %v470, %v603
        %v620 = vadd.f32 %v443, %v612
        %v621 = vadd.f32 %v444, %v613
        %v622 = vadd.f32 %v445, %v614
        %v623 = vadd.f32 %v446, %v615
        %v624 = vadd.f32 %v447, %v616
        %v625 = vadd.f32 %v448, %v617
        %v626 = vadd.f32 %v449, %v618
        %v627 = vadd.f32 %v450, %v619
        %628 = vset.pattern.permute.xlu0 1
        %629 = vperm.xlu0 %628, %v461
        %v630 = vpop.permute.xlu0 %629
        %v633 = vunpack.c.l.s4 839922192
        %v634 = vunpack.c.0.s8 %v633
        %v635 = vperm.slane %v630, %v634
        %v636 = vperm.slane %v454, 1
        %v637 = vperm.slane %v454, 3
        %v638 = vperm.slane %v454, 5
        %v639 = vperm.slane %v454, 7
        %v640 = vperm.slane %v455, 1
        %v641 = vperm.slane %v455, 3
        %v642 = vperm.slane %v455, 5
        %v643 = vperm.slane %v455, 7
        %v644 = vperm.slane %v456, 1
        %v645 = vperm.slane %v456, 3
        %v646 = vperm.slane %v456, 5
        %v647 = vperm.slane %v456, 7
        %v648 = vperm.slane %v457, 1
        %v649 = vperm.slane %v457, 3
        %v650 = vperm.slane %v457, 5
        %v651 = vperm.slane %v457, 7
        %v652 = vperm.slane %v458, 1
        %v670 = vperm.slane %v636, 1
        %v671 = vperm.slane %v637, 1
        %v672 = vperm.slane %v638, 1
        %v673 = vperm.slane %v639, 1
        %v674 = vperm.slane %v640, 1
        %v675 = vperm.slane %v641, 1
        %v676 = vperm.slane %v642, 1
        %v677 = vperm.slane %v643, 1
        %v678 = vperm.slane %v644, 1
        %v679 = vperm.slane %v645, 1
        %v680 = vperm.slane %v646, 1
        %v681 = vperm.slane %v647, 1
        %v682 = vperm.slane %v648, 1
        %v683 = vperm.slane %v649, 1
        %v684 = vperm.slane %v650, 1
        %v685 = vperm.slane %v651, 1
        %v686 = vperm.slane %v652, 1
        %v704 = vrot.slane %v671, 4
        %v705 = vrot.slane %v673, 4
        %v706 = vrot.slane %v675, 4
        %v707 = vrot.slane %v677, 4
        %v708 = vrot.slane %v679, 4
        %v709 = vrot.slane %v681, 4
        %v710 = vrot.slane %v683, 4
        %v711 = vrot.slane %v685, 4
        %v712 = vsel %vm306, %v670, %v704
        %v713 = vsel %vm306, %v672, %v705
        %v714 = vsel %vm306, %v674, %v706
        %v715 = vsel %vm306, %v676, %v707
        %v716 = vsel %vm306, %v678, %v708
        %v717 = vsel %vm306, %v680, %v709
        %v718 = vsel %vm306, %v682, %v710
        %v719 = vsel %vm306, %v684, %v711
        %720 = vrot.lane.b32.xlu0 %v712, 127
        %v721 = vpop.permute.xlu0 %720
        %722 = vrot.lane.b32.xlu0 %v713, 127
        %v723 = vpop.permute.xlu0 %722
        %724 = vrot.lane.b32.xlu0 %v714, 127
        %v725 = vpop.permute.xlu0 %724
        %726 = vrot.lane.b32.xlu0 %v715, 127
        %v727 = vpop.permute.xlu0 %726
        %728 = vrot.lane.b32.xlu0 %v716, 127
        %v729 = vpop.permute.xlu0 %728
        %730 = vrot.lane.b32.xlu0 %v717, 127
        %v731 = vpop.permute.xlu0 %730
        %732 = vrot.lane.b32.xlu0 %v718, 127
        %v733 = vpop.permute.xlu0 %732
        %734 = vrot.lane.b32.xlu0 %v719, 127
        %v735 = vpop.permute.xlu0 %734
        %736 = vrot.lane.b32.xlu0 %v686, 127
        %v737 = vpop.permute.xlu0 %736
        %v738 = vrot.slane %v721, 4
        %v739 = vrot.slane %v723, 4
        %v740 = vrot.slane %v725, 4
        %v741 = vrot.slane %v727, 4
        %v742 = vrot.slane %v729, 4
        %v743 = vrot.slane %v731, 4
        %v744 = vrot.slane %v733, 4
        %v745 = vrot.slane %v735, 4
        %v746 = vrot.slane %v737, 4
        %v747 = vsel %vm306, %v738, %v739
        %v748 = vsel %vm588, %v721, %v747
        %v749 = vsel %vm306, %v739, %v740
        %v750 = vsel %vm588, %v723, %v749
        %v751 = vsel %vm306, %v740, %v741
        %v752 = vsel %vm588, %v725, %v751
        %v753 = vsel %vm306, %v741, %v742
        %v754 = vsel %vm588, %v727, %v753
        %v755 = vsel %vm306, %v742, %v743
        %v756 = vsel %vm588, %v729, %v755
        %v757 = vsel %vm306, %v743, %v744
        %v758 = vsel %vm588, %v731, %v757
        %v759 = vsel %vm306, %v744, %v745
        %v760 = vsel %vm588, %v733, %v759
        %v761 = vsel %vm306, %v745, %v746
        %v762 = vsel %vm588, %v735, %v761
        %v771 = vmul.f32 %v635, %v748
        %v772 = vmul.f32 %v635, %v750
        %v773 = vmul.f32 %v635, %v752
        %v774 = vmul.f32 %v635, %v754
        %v775 = vmul.f32 %v635, %v756
        %v776 = vmul.f32 %v635, %v758
        %v777 = vmul.f32 %v635, %v760
        %v778 = vmul.f32 %v635, %v762
        %v779 = vadd.f32 %v620, %v771
        %v780 = vadd.f32 %v621, %v772
        %v781 = vadd.f32 %v622, %v773
        %v782 = vadd.f32 %v623, %v774
        %v783 = vadd.f32 %v624, %v775
        %v784 = vadd.f32 %v625, %v776
        %v785 = vadd.f32 %v626, %v777
        %v786 = vadd.f32 %v627, %v778
        %s787 = scalar_lea.vmem %s1, 4
        %v788 = vld [vmem:[%s787] sm:$0x3]
        %v789 = vunpack.c.l.bf16 %v788
        %791 = vset.pattern.permute.xlu0 0
        %792 = vperm.xlu0 %791, %v789
        %v793 = vpop.permute.xlu0 %792
        %v796 = vunpack.c.l.s4 839922192
        %v797 = vunpack.c.0.s8 %v796
        %v798 = vperm.slane %v793, %v797
        %799 = vrot.lane.b32.xlu0 %v552, 126
        %v800 = vpop.permute.xlu0 %799
        %801 = vrot.lane.b32.xlu0 %v553, 126
        %v802 = vpop.permute.xlu0 %801
        %803 = vrot.lane.b32.xlu0 %v554, 126
        %v804 = vpop.permute.xlu0 %803
        %805 = vrot.lane.b32.xlu0 %v555, 126
        %v806 = vpop.permute.xlu0 %805
        %807 = vrot.lane.b32.xlu0 %v556, 126
        %v808 = vpop.permute.xlu0 %807
        %809 = vrot.lane.b32.xlu0 %v557, 126
        %v810 = vpop.permute.xlu0 %809
        %811 = vrot.lane.b32.xlu0 %v558, 126
        %v812 = vpop.permute.xlu0 %811
        %813 = vrot.lane.b32.xlu0 %v559, 126
        %v814 = vpop.permute.xlu0 %813
        %815 = vrot.lane.b32.xlu0 %v526, 126
        %v816 = vpop.permute.xlu0 %815
        %v817 = vrot.slane %v800, 4
        %v818 = vrot.slane %v802, 4
        %v819 = vrot.slane %v804, 4
        %v820 = vrot.slane %v806, 4
        %v821 = vrot.slane %v808, 4
        %v822 = vrot.slane %v810, 4
        %v823 = vrot.slane %v812, 4
        %v824 = vrot.slane %v814, 4
        %v825 = vrot.slane %v816, 4
        %v826 = vsel %vm306, %v817, %v818
        %vm827 = vcmask 1031168
        %v828 = vsel %vm827, %v800, %v826
        %v829 = vsel %vm306, %v818, %v819
        %v830 = vsel %vm827, %v802, %v829
        %v831 = vsel %vm306, %v819, %v820
        %v832 = vsel %vm827, %v804, %v831
        %v833 = vsel %vm306, %v820, %v821
        %v834 = vsel %vm827, %v806, %v833
        %v835 = vsel %vm306, %v821, %v822
        %v836 = vsel %vm827, %v808, %v835
        %v837 = vsel %vm306, %v822, %v823
        %v838 = vsel %vm827, %v810, %v837
        %v839 = vsel %vm306, %v823, %v824
        %v840 = vsel %vm827, %v812, %v839
        %v841 = vsel %vm306, %v824, %v825
        %v842 = vsel %vm827, %v814, %v841
        %v851 = vmul.f32 %v798, %v828
        %v852 = vmul.f32 %v798, %v830
        %v853 = vmul.f32 %v798, %v832
        %v854 = vmul.f32 %v798, %v834
        %v855 = vmul.f32 %v798, %v836
        %v856 = vmul.f32 %v798, %v838
        %v857 = vmul.f32 %v798, %v840
        %v858 = vmul.f32 %v798, %v842
        %v859 = vadd.f32 %v779, %v851
        %v860 = vadd.f32 %v780, %v852
        %v861 = vadd.f32 %v781, %v853
        %v862 = vadd.f32 %v782, %v854
        %v863 = vadd.f32 %v783, %v855
        %v864 = vadd.f32 %v784, %v856
        %v865 = vadd.f32 %v785, %v857
        %v866 = vadd.f32 %v786, %v858
        %867 = vset.pattern.permute.xlu0 1
        %868 = vperm.xlu0 %867, %v789
        %v869 = vpop.permute.xlu0 %868
        %v872 = vunpack.c.l.s4 839922192
        %v873 = vunpack.c.0.s8 %v872
        %v874 = vperm.slane %v869, %v873
        %875 = vrot.lane.b32.xlu0 %v712, 126
        %v876 = vpop.permute.xlu0 %875
        %877 = vrot.lane.b32.xlu0 %v713, 126
        %v878 = vpop.permute.xlu0 %877
        %879 = vrot.lane.b32.xlu0 %v714, 126
        %v880 = vpop.permute.xlu0 %879
        %881 = vrot.lane.b32.xlu0 %v715, 126
        %v882 = vpop.permute.xlu0 %881
        %883 = vrot.lane.b32.xlu0 %v716, 126
        %v884 = vpop.permute.xlu0 %883
        %885 = vrot.lane.b32.xlu0 %v717, 126
        %v886 = vpop.permute.xlu0 %885
        %887 = vrot.lane.b32.xlu0 %v718, 126
        %v888 = vpop.permute.xlu0 %887
        %889 = vrot.lane.b32.xlu0 %v719, 126
        %v890 = vpop.permute.xlu0 %889
        %891 = vrot.lane.b32.xlu0 %v686, 126
        %v892 = vpop.permute.xlu0 %891
        %v893 = vrot.slane %v876, 4
        %v894 = vrot.slane %v878, 4
        %v895 = vrot.slane %v880, 4
        %v896 = vrot.slane %v882, 4
        %v897 = vrot.slane %v884, 4
        %v898 = vrot.slane %v886, 4
        %v899 = vrot.slane %v888, 4
        %v900 = vrot.slane %v890, 4
        %v901 = vrot.slane %v892, 4
        %v902 = vsel %vm306, %v893, %v894
        %v903 = vsel %vm827, %v876, %v902
        %v904 = vsel %vm306, %v894, %v895
        %v905 = vsel %vm827, %v878, %v904
        %v906 = vsel %vm306, %v895, %v896
        %v907 = vsel %vm827, %v880, %v906
        %v908 = vsel %vm306, %v896, %v897
        %v909 = vsel %vm827, %v882, %v908
        %v910 = vsel %vm306, %v897, %v898
        %v911 = vsel %vm827, %v884, %v910
        %v912 = vsel %vm306, %v898, %v899
        %v913 = vsel %vm827, %v886, %v912
        %v914 = vsel %vm306, %v899, %v900
        %v915 = vsel %vm827, %v888, %v914
        %v916 = vsel %vm306, %v900, %v901
        %v917 = vsel %vm827, %v890, %v916
        %v926 = vmul.f32 %v874, %v903
        %v927 = vmul.f32 %v874, %v905
        %v928 = vmul.f32 %v874, %v907
        %v929 = vmul.f32 %v874, %v909
        %v930 = vmul.f32 %v874, %v911
        %v931 = vmul.f32 %v874, %v913
        %v932 = vmul.f32 %v874, %v915
        %v933 = vmul.f32 %v874, %v917
        %v934 = vadd.f32 %v859, %v926
        %v935 = vadd.f32 %v860, %v927
        %v936 = vadd.f32 %v861, %v928
        %v937 = vadd.f32 %v862, %v929
        %v938 = vadd.f32 %v863, %v930
        %v939 = vadd.f32 %v864, %v931
        %v940 = vadd.f32 %v865, %v932
        %v941 = vadd.f32 %v866, %v933
        %v942 = vld [vmem:[%s185 + $0x1] sm:$0xff]
        %v943 = vld [vmem:[%s185 + $0x9] sm:$0xff]
        %v944 = vunpack.c.l.bf16 %v942
        %v945 = vunpack.c.h.bf16 %v942
        %v946 = vunpack.c.l.bf16 %v943
        %v947 = vunpack.c.h.bf16 %v943
        %s948 = scalar_lea.vmem %s1, 6
        %v949 = vld [vmem:[%s948] sm:$0x3]
        %v950 = vunpack.c.l.bf16 %v949
        %952 = vset.pattern.permute.xlu0 0
        %953 = vperm.xlu0 %952, %v950
        %v954 = vpop.permute.xlu0 %953
        %v957 = vunpack.c.l.s4 839922192
        %v958 = vunpack.c.0.s8 %v957
        %v959 = vperm.slane %v954, %v958
        %v964 = vperm.slane %v944, 0
        %v965 = vperm.slane %v944, 2
        %v966 = vperm.slane %v944, 4
        %v967 = vperm.slane %v944, 6
        %v968 = vperm.slane %v945, 0
        %v969 = vperm.slane %v945, 2
        %v970 = vperm.slane %v945, 4
        %v971 = vperm.slane %v945, 6
        %v972 = vperm.slane %v946, 0
        %v973 = vperm.slane %v946, 2
        %v974 = vperm.slane %v946, 4
        %v975 = vperm.slane %v946, 6
        %v976 = vperm.slane %v947, 0
        %v977 = vperm.slane %v947, 2
        %v978 = vperm.slane %v947, 4
        %v979 = vperm.slane %v947, 6
        %v996 = vperm.slane %v964, 0
        %v997 = vperm.slane %v965, 0
        %v998 = vperm.slane %v966, 0
        %v999 = vperm.slane %v967, 0
        %v1000 = vperm.slane %v968, 0
        %v1001 = vperm.slane %v969, 0
        %v1002 = vperm.slane %v970, 0
        %v1003 = vperm.slane %v971, 0
        %v1004 = vperm.slane %v972, 0
        %v1005 = vperm.slane %v973, 0
        %v1006 = vperm.slane %v974, 0
        %v1007 = vperm.slane %v975, 0
        %v1008 = vperm.slane %v976, 0
        %v1009 = vperm.slane %v977, 0
        %v1010 = vperm.slane %v978, 0
        %v1011 = vperm.slane %v979, 0
        %v1028 = vrot.slane %v997, 4
        %v1029 = vrot.slane %v999, 4
        %v1030 = vrot.slane %v1001, 4
        %v1031 = vrot.slane %v1003, 4
        %v1032 = vrot.slane %v1005, 4
        %v1033 = vrot.slane %v1007, 4
        %v1034 = vrot.slane %v1009, 4
        %v1035 = vrot.slane %v1011, 4
        %v1036 = vsel %vm306, %v996, %v1028
        %v1037 = vsel %vm306, %v998, %v1029
        %v1038 = vsel %vm306, %v1000, %v1030
        %v1039 = vsel %vm306, %v1002, %v1031
        %v1040 = vsel %vm306, %v1004, %v1032
        %v1041 = vsel %vm306, %v1006, %v1033
        %v1042 = vsel %vm306, %v1008, %v1034
        %v1043 = vsel %vm306, %v1010, %v1035
        %v1052 = vmul.f32 %v959, %v1036
        %v1053 = vmul.f32 %v959, %v1037
        %v1054 = vmul.f32 %v959, %v1038
        %v1055 = vmul.f32 %v959, %v1039
        %v1056 = vmul.f32 %v959, %v1040
        %v1057 = vmul.f32 %v959, %v1041
        %v1058 = vmul.f32 %v959, %v1042
        %v1059 = vmul.f32 %v959, %v1043
        %v1060 = vadd.f32 %v934, %v1052
        %v1061 = vadd.f32 %v935, %v1053
        %v1062 = vadd.f32 %v936, %v1054
        %v1063 = vadd.f32 %v937, %v1055
        %v1064 = vadd.f32 %v938, %v1056
        %v1065 = vadd.f32 %v939, %v1057
        %v1066 = vadd.f32 %v940, %v1058
        %v1067 = vadd.f32 %v941, %v1059
        %1068 = vset.pattern.permute.xlu0 1
        %1069 = vperm.xlu0 %1068, %v950
        %v1070 = vpop.permute.xlu0 %1069
        %v1073 = vunpack.c.l.s4 839922192
        %v1074 = vunpack.c.0.s8 %v1073
        %v1075 = vperm.slane %v1070, %v1074
        %v1076 = vperm.slane %v944, 1
        %v1077 = vperm.slane %v944, 3
        %v1078 = vperm.slane %v944, 5
        %v1079 = vperm.slane %v944, 7
        %v1080 = vperm.slane %v945, 1
        %v1081 = vperm.slane %v945, 3
        %v1082 = vperm.slane %v945, 5
        %v1083 = vperm.slane %v945, 7
        %v1084 = vperm.slane %v946, 1
        %v1085 = vperm.slane %v946, 3
        %v1086 = vperm.slane %v946, 5
        %v1087 = vperm.slane %v946, 7
        %v1088 = vperm.slane %v947, 1
        %v1089 = vperm.slane %v947, 3
        %v1090 = vperm.slane %v947, 5
        %v1091 = vperm.slane %v947, 7
        %v1108 = vperm.slane %v1076, 1
        %v1109 = vperm.slane %v1077, 1
        %v1110 = vperm.slane %v1078, 1
        %v1111 = vperm.slane %v1079, 1
        %v1112 = vperm.slane %v1080, 1
        %v1113 = vperm.slane %v1081, 1
        %v1114 = vperm.slane %v1082, 1
        %v1115 = vperm.slane %v1083, 1
        %v1116 = vperm.slane %v1084, 1
        %v1117 = vperm.slane %v1085, 1
        %v1118 = vperm.slane %v1086, 1
        %v1119 = vperm.slane %v1087, 1
        %v1120 = vperm.slane %v1088, 1
        %v1121 = vperm.slane %v1089, 1
        %v1122 = vperm.slane %v1090, 1
        %v1123 = vperm.slane %v1091, 1
        %v1140 = vrot.slane %v1109, 4
        %v1141 = vrot.slane %v1111, 4
        %v1142 = vrot.slane %v1113, 4
        %v1143 = vrot.slane %v1115, 4
        %v1144 = vrot.slane %v1117, 4
        %v1145 = vrot.slane %v1119, 4
        %v1146 = vrot.slane %v1121, 4
        %v1147 = vrot.slane %v1123, 4
        %v1148 = vsel %vm306, %v1108, %v1140
        %v1149 = vsel %vm306, %v1110, %v1141
        %v1150 = vsel %vm306, %v1112, %v1142
        %v1151 = vsel %vm306, %v1114, %v1143
        %v1152 = vsel %vm306, %v1116, %v1144
        %v1153 = vsel %vm306, %v1118, %v1145
        %v1154 = vsel %vm306, %v1120, %v1146
        %v1155 = vsel %vm306, %v1122, %v1147
        %v1164 = vmul.f32 %v1075, %v1148
        %v1165 = vmul.f32 %v1075, %v1149
        %v1166 = vmul.f32 %v1075, %v1150
        %v1167 = vmul.f32 %v1075, %v1151
        %v1168 = vmul.f32 %v1075, %v1152
        %v1169 = vmul.f32 %v1075, %v1153
        %v1170 = vmul.f32 %v1075, %v1154
        %v1171 = vmul.f32 %v1075, %v1155
        %v1172 = vadd.f32 %v1060, %v1164
        %v1173 = vadd.f32 %v1061, %v1165
        %v1174 = vadd.f32 %v1062, %v1166
        %v1175 = vadd.f32 %v1063, %v1167
        %v1176 = vadd.f32 %v1064, %v1168
        %v1177 = vadd.f32 %v1065, %v1169
        %v1178 = vadd.f32 %v1066, %v1170
        %v1179 = vadd.f32 %v1067, %v1171
        %v1180 = vld [vmem:[%s185 + $0x1] sm:$0xff]
        %v1181 = vld [vmem:[%s185 + $0x9] sm:$0xff]
        %v1182 = vld [vmem:[%s185 + $0x11] sm:$0x1]
        %v1183 = vunpack.c.l.bf16 %v1180
        %v1184 = vunpack.c.h.bf16 %v1180
        %v1185 = vunpack.c.l.bf16 %v1181
        %v1186 = vunpack.c.h.bf16 %v1181
        %v1187 = vunpack.c.l.bf16 %v1182
        %s1188 = scalar_lea.vmem %s1, 8
        %v1189 = vld [vmem:[%s1188] sm:$0x3]
        %v1190 = vunpack.c.l.bf16 %v1189
        %1192 = vset.pattern.permute.xlu0 0
        %1193 = vperm.xlu0 %1192, %v1190
        %v1194 = vpop.permute.xlu0 %1193
        %v1197 = vunpack.c.l.s4 839922192
        %v1198 = vunpack.c.0.s8 %v1197
        %v1199 = vperm.slane %v1194, %v1198
        %v1205 = vperm.slane %v1183, 0
        %v1206 = vperm.slane %v1183, 2
        %v1207 = vperm.slane %v1183, 4
        %v1208 = vperm.slane %v1183, 6
        %v1209 = vperm.slane %v1184, 0
        %v1210 = vperm.slane %v1184, 2
        %v1211 = vperm.slane %v1184, 4
        %v1212 = vperm.slane %v1184, 6
        %v1213 = vperm.slane %v1185, 0
        %v1214 = vperm.slane %v1185, 2
        %v1215 = vperm.slane %v1185, 4
        %v1216 = vperm.slane %v1185, 6
        %v1217 = vperm.slane %v1186, 0
        %v1218 = vperm.slane %v1186, 2
        %v1219 = vperm.slane %v1186, 4
        %v1220 = vperm.slane %v1186, 6
        %v1221 = vperm.slane %v1187, 0
        %v1239 = vperm.slane %v1205, 0
        %v1240 = vperm.slane %v1206, 0
        %v1241 = vperm.slane %v1207, 0
        %v1242 = vperm.slane %v1208, 0
        %v1243 = vperm.slane %v1209, 0
        %v1244 = vperm.slane %v1210, 0
        %v1245 = vperm.slane %v1211, 0
        %v1246 = vperm.slane %v1212, 0
        %v1247 = vperm.slane %v1213, 0
        %v1248 = vperm.slane %v1214, 0
        %v1249 = vperm.slane %v1215, 0
        %v1250 = vperm.slane %v1216, 0
        %v1251 = vperm.slane %v1217, 0
        %v1252 = vperm.slane %v1218, 0
        %v1253 = vperm.slane %v1219, 0
        %v1254 = vperm.slane %v1220, 0
        %v1255 = vperm.slane %v1221, 0
        %v1273 = vrot.slane %v1240, 4
        %v1274 = vrot.slane %v1242, 4
        %v1275 = vrot.slane %v1244, 4
        %v1276 = vrot.slane %v1246, 4
        %v1277 = vrot.slane %v1248, 4
        %v1278 = vrot.slane %v1250, 4
        %v1279 = vrot.slane %v1252, 4
        %v1280 = vrot.slane %v1254, 4
        %v1281 = vsel %vm306, %v1239, %v1273
        %v1282 = vsel %vm306, %v1241, %v1274
        %v1283 = vsel %vm306, %v1243, %v1275
        %v1284 = vsel %vm306, %v1245, %v1276
        %v1285 = vsel %vm306, %v1247, %v1277
        %v1286 = vsel %vm306, %v1249, %v1278
        %v1287 = vsel %vm306, %v1251, %v1279
        %v1288 = vsel %vm306, %v1253, %v1280
        %1289 = vrot.lane.b32.xlu0 %v1281, 127
        %v1290 = vpop.permute.xlu0 %1289
        %1291 = vrot.lane.b32.xlu0 %v1282, 127
        %v1292 = vpop.permute.xlu0 %1291
        %1293 = vrot.lane.b32.xlu0 %v1283, 127
        %v1294 = vpop.permute.xlu0 %1293
        %1295 = vrot.lane.b32.xlu0 %v1284, 127
        %v1296 = vpop.permute.xlu0 %1295
        %1297 = vrot.lane.b32.xlu0 %v1285, 127
        %v1298 = vpop.permute.xlu0 %1297
        %1299 = vrot.lane.b32.xlu0 %v1286, 127
        %v1300 = vpop.permute.xlu0 %1299
        %1301 = vrot.lane.b32.xlu0 %v1287, 127
        %v1302 = vpop.permute.xlu0 %1301
        %1303 = vrot.lane.b32.xlu0 %v1288, 127
        %v1304 = vpop.permute.xlu0 %1303
        %1305 = vrot.lane.b32.xlu0 %v1255, 127
        %v1306 = vpop.permute.xlu0 %1305
        %v1307 = vrot.slane %v1290, 4
        %v1308 = vrot.slane %v1292, 4
        %v1309 = vrot.slane %v1294, 4
        %v1310 = vrot.slane %v1296, 4
        %v1311 = vrot.slane %v1298, 4
        %v1312 = vrot.slane %v1300, 4
        %v1313 = vrot.slane %v1302, 4
        %v1314 = vrot.slane %v1304, 4
        %v1315 = vrot.slane %v1306, 4
        %v1316 = vsel %vm306, %v1307, %v1308
        %v1317 = vsel %vm588, %v1290, %v1316
        %v1318 = vsel %vm306, %v1308, %v1309
        %v1319 = vsel %vm588, %v1292, %v1318
        %v1320 = vsel %vm306, %v1309, %v1310
        %v1321 = vsel %vm588, %v1294, %v1320
        %v1322 = vsel %vm306, %v1310, %v1311
        %v1323 = vsel %vm588, %v1296, %v1322
        %v1324 = vsel %vm306, %v1311, %v1312
        %v1325 = vsel %vm588, %v1298, %v1324
        %v1326 = vsel %vm306, %v1312, %v1313
        %v1327 = vsel %vm588, %v1300, %v1326
        %v1328 = vsel %vm306, %v1313, %v1314
        %v1329 = vsel %vm588, %v1302, %v1328
        %v1330 = vsel %vm306, %v1314, %v1315
        %v1331 = vsel %vm588, %v1304, %v1330
        %v1340 = vmul.f32 %v1199, %v1317
        %v1341 = vmul.f32 %v1199, %v1319
        %v1342 = vmul.f32 %v1199, %v1321
        %v1343 = vmul.f32 %v1199, %v1323
        %v1344 = vmul.f32 %v1199, %v1325
        %v1345 = vmul.f32 %v1199, %v1327
        %v1346 = vmul.f32 %v1199, %v1329
        %v1347 = vmul.f32 %v1199, %v1331
        %v1348 = vadd.f32 %v1172, %v1340
        %v1349 = vadd.f32 %v1173, %v1341
        %v1350 = vadd.f32 %v1174, %v1342
        %v1351 = vadd.f32 %v1175, %v1343
        %v1352 = vadd.f32 %v1176, %v1344
        %v1353 = vadd.f32 %v1177, %v1345
        %v1354 = vadd.f32 %v1178, %v1346
        %v1355 = vadd.f32 %v1179, %v1347
        %1356 = vset.pattern.permute.xlu0 1
        %1357 = vperm.xlu0 %1356, %v1190
        %v1358 = vpop.permute.xlu0 %1357
        %v1361 = vunpack.c.l.s4 839922192
        %v1362 = vunpack.c.0.s8 %v1361
        %v1363 = vperm.slane %v1358, %v1362
        %v1364 = vperm.slane %v1183, 1
        %v1365 = vperm.slane %v1183, 3
        %v1366 = vperm.slane %v1183, 5
        %v1367 = vperm.slane %v1183, 7
        %v1368 = vperm.slane %v1184, 1
        %v1369 = vperm.slane %v1184, 3
        %v1370 = vperm.slane %v1184, 5
        %v1371 = vperm.slane %v1184, 7
        %v1372 = vperm.slane %v1185, 1
        %v1373 = vperm.slane %v1185, 3
        %v1374 = vperm.slane %v1185, 5
        %v1375 = vperm.slane %v1185, 7
        %v1376 = vperm.slane %v1186, 1
        %v1377 = vperm.slane %v1186, 3
        %v1378 = vperm.slane %v1186, 5
        %v1379 = vperm.slane %v1186, 7
        %v1380 = vperm.slane %v1187, 1
        %v1398 = vperm.slane %v1364, 1
        %v1399 = vperm.slane %v1365, 1
        %v1400 = vperm.slane %v1366, 1
        %v1401 = vperm.slane %v1367, 1
        %v1402 = vperm.slane %v1368, 1
        %v1403 = vperm.slane %v1369, 1
        %v1404 = vperm.slane %v1370, 1
        %v1405 = vperm.slane %v1371, 1
        %v1406 = vperm.slane %v1372, 1
        %v1407 = vperm.slane %v1373, 1
        %v1408 = vperm.slane %v1374, 1
        %v1409 = vperm.slane %v1375, 1
        %v1410 = vperm.slane %v1376, 1
        %v1411 = vperm.slane %v1377, 1
        %v1412 = vperm.slane %v1378, 1
        %v1413 = vperm.slane %v1379, 1
        %v1414 = vperm.slane %v1380, 1
        %v1432 = vrot.slane %v1399, 4
        %v1433 = vrot.slane %v1401, 4
        %v1434 = vrot.slane %v1403, 4
        %v1435 = vrot.slane %v1405, 4
        %v1436 = vrot.slane %v1407, 4
        %v1437 = vrot.slane %v1409, 4
        %v1438 = vrot.slane %v1411, 4
        %v1439 = vrot.slane %v1413, 4
        %v1440 = vsel %vm306, %v1398, %v1432
        %v1441 = vsel %vm306, %v1400, %v1433
        %v1442 = vsel %vm306, %v1402, %v1434
        %v1443 = vsel %vm306, %v1404, %v1435
        %v1444 = vsel %vm306, %v1406, %v1436
        %v1445 = vsel %vm306, %v1408, %v1437
        %v1446 = vsel %vm306, %v1410, %v1438
        %v1447 = vsel %vm306, %v1412, %v1439
        %1448 = vrot.lane.b32.xlu0 %v1440, 127
        %v1449 = vpop.permute.xlu0 %1448
        %1450 = vrot.lane.b32.xlu0 %v1441, 127
        %v1451 = vpop.permute.xlu0 %1450
        %1452 = vrot.lane.b32.xlu0 %v1442, 127
        %v1453 = vpop.permute.xlu0 %1452
        %1454 = vrot.lane.b32.xlu0 %v1443, 127
        %v1455 = vpop.permute.xlu0 %1454
        %1456 = vrot.lane.b32.xlu0 %v1444, 127
        %v1457 = vpop.permute.xlu0 %1456
        %1458 = vrot.lane.b32.xlu0 %v1445, 127
        %v1459 = vpop.permute.xlu0 %1458
        %1460 = vrot.lane.b32.xlu0 %v1446, 127
        %v1461 = vpop.permute.xlu0 %1460
        %1462 = vrot.lane.b32.xlu0 %v1447, 127
        %v1463 = vpop.permute.xlu0 %1462
        %1464 = vrot.lane.b32.xlu0 %v1414, 127
        %v1465 = vpop.permute.xlu0 %1464
        %v1466 = vrot.slane %v1449, 4
        %v1467 = vrot.slane %v1451, 4
        %v1468 = vrot.slane %v1453, 4
        %v1469 = vrot.slane %v1455, 4
        %v1470 = vrot.slane %v1457, 4
        %v1471 = vrot.slane %v1459, 4
        %v1472 = vrot.slane %v1461, 4
        %v1473 = vrot.slane %v1463, 4
        %v1474 = vrot.slane %v1465, 4
        %v1475 = vsel %vm306, %v1466, %v1467
        %v1476 = vsel %vm588, %v1449, %v1475
        %v1477 = vsel %vm306, %v1467, %v1468
        %v1478 = vsel %vm588, %v1451, %v1477
        %v1479 = vsel %vm306, %v1468, %v1469
        %v1480 = vsel %vm588, %v1453, %v1479
        %v1481 = vsel %vm306, %v1469, %v1470
        %v1482 = vsel %vm588, %v1455, %v1481
        %v1483 = vsel %vm306, %v1470, %v1471
        %v1484 = vsel %vm588, %v1457, %v1483
        %v1485 = vsel %vm306, %v1471, %v1472
        %v1486 = vsel %vm588, %v1459, %v1485
        %v1487 = vsel %vm306, %v1472, %v1473
        %v1488 = vsel %vm588, %v1461, %v1487
        %v1489 = vsel %vm306, %v1473, %v1474
        %v1490 = vsel %vm588, %v1463, %v1489
        %v1499 = vmul.f32 %v1363, %v1476
        %v1500 = vmul.f32 %v1363, %v1478
        %v1501 = vmul.f32 %v1363, %v1480
        %v1502 = vmul.f32 %v1363, %v1482
        %v1503 = vmul.f32 %v1363, %v1484
        %v1504 = vmul.f32 %v1363, %v1486
        %v1505 = vmul.f32 %v1363, %v1488
        %v1506 = vmul.f32 %v1363, %v1490
        %v1507 = vadd.f32 %v1348, %v1499
        %v1508 = vadd.f32 %v1349, %v1500
        %v1509 = vadd.f32 %v1350, %v1501
        %v1510 = vadd.f32 %v1351, %v1502
        %v1511 = vadd.f32 %v1352, %v1503
        %v1512 = vadd.f32 %v1353, %v1504
        %v1513 = vadd.f32 %v1354, %v1505
        %v1514 = vadd.f32 %v1355, %v1506
        %s1515 = scalar_lea.vmem %s1, 10
        %v1516 = vld [vmem:[%s1515] sm:$0x3]
        %v1517 = vunpack.c.l.bf16 %v1516
        %1519 = vset.pattern.permute.xlu0 0
        %1520 = vperm.xlu0 %1519, %v1517
        %v1521 = vpop.permute.xlu0 %1520
        %v1524 = vunpack.c.l.s4 839922192
        %v1525 = vunpack.c.0.s8 %v1524
        %v1526 = vperm.slane %v1521, %v1525
        %1527 = vrot.lane.b32.xlu0 %v1281, 126
        %v1528 = vpop.permute.xlu0 %1527
        %1529 = vrot.lane.b32.xlu0 %v1282, 126
        %v1530 = vpop.permute.xlu0 %1529
        %1531 = vrot.lane.b32.xlu0 %v1283, 126
        %v1532 = vpop.permute.xlu0 %1531
        %1533 = vrot.lane.b32.xlu0 %v1284, 126
        %v1534 = vpop.permute.xlu0 %1533
        %1535 = vrot.lane.b32.xlu0 %v1285, 126
        %v1536 = vpop.permute.xlu0 %1535
        %1537 = vrot.lane.b32.xlu0 %v1286, 126
        %v1538 = vpop.permute.xlu0 %1537
        %1539 = vrot.lane.b32.xlu0 %v1287, 126
        %v1540 = vpop.permute.xlu0 %1539
        %1541 = vrot.lane.b32.xlu0 %v1288, 126
        %v1542 = vpop.permute.xlu0 %1541
        %1543 = vrot.lane.b32.xlu0 %v1255, 126
        %v1544 = vpop.permute.xlu0 %1543
        %v1545 = vrot.slane %v1528, 4
        %v1546 = vrot.slane %v1530, 4
        %v1547 = vrot.slane %v1532, 4
        %v1548 = vrot.slane %v1534, 4
        %v1549 = vrot.slane %v1536, 4
        %v1550 = vrot.slane %v1538, 4
        %v1551 = vrot.slane %v1540, 4
        %v1552 = vrot.slane %v1542, 4
        %v1553 = vrot.slane %v1544, 4
        %v1554 = vsel %vm306, %v1545, %v1546
        %v1555 = vsel %vm827, %v1528, %v1554
        %v1556 = vsel %vm306, %v1546, %v1547
        %v1557 = vsel %vm827, %v1530, %v1556
        %v1558 = vsel %vm306, %v1547, %v1548
        %v1559 = vsel %vm827, %v1532, %v1558
        %v1560 = vsel %vm306, %v1548, %v1549
        %v1561 = vsel %vm827, %v1534, %v1560
        %v1562 = vsel %vm306, %v1549, %v1550
        %v1563 = vsel %vm827, %v1536, %v1562
        %v1564 = vsel %vm306, %v1550, %v1551
        %v1565 = vsel %vm827, %v1538, %v1564
        %v1566 = vsel %vm306, %v1551, %v1552
        %v1567 = vsel %vm827, %v1540, %v1566
        %v1568 = vsel %vm306, %v1552, %v1553
        %v1569 = vsel %vm827, %v1542, %v1568
        %v1578 = vmul.f32 %v1526, %v1555
        %v1579 = vmul.f32 %v1526, %v1557
        %v1580 = vmul.f32 %v1526, %v1559
        %v1581 = vmul.f32 %v1526, %v1561
        %v1582 = vmul.f32 %v1526, %v1563
        %v1583 = vmul.f32 %v1526, %v1565
        %v1584 = vmul.f32 %v1526, %v1567
        %v1585 = vmul.f32 %v1526, %v1569
        %v1586 = vadd.f32 %v1507, %v1578
        %v1587 = vadd.f32 %v1508, %v1579
        %v1588 = vadd.f32 %v1509, %v1580
        %v1589 = vadd.f32 %v1510, %v1581
        %v1590 = vadd.f32 %v1511, %v1582
        %v1591 = vadd.f32 %v1512, %v1583
        %v1592 = vadd.f32 %v1513, %v1584
        %v1593 = vadd.f32 %v1514, %v1585
        %1594 = vset.pattern.permute.xlu0 1
        %1595 = vperm.xlu0 %1594, %v1517
        %v1596 = vpop.permute.xlu0 %1595
        %v1599 = vunpack.c.l.s4 839922192
        %v1600 = vunpack.c.0.s8 %v1599
        %v1601 = vperm.slane %v1596, %v1600
        %1602 = vrot.lane.b32.xlu0 %v1440, 126
        %v1603 = vpop.permute.xlu0 %1602
        %1604 = vrot.lane.b32.xlu0 %v1441, 126
        %v1605 = vpop.permute.xlu0 %1604
        %1606 = vrot.lane.b32.xlu0 %v1442, 126
        %v1607 = vpop.permute.xlu0 %1606
        %1608 = vrot.lane.b32.xlu0 %v1443, 126
        %v1609 = vpop.permute.xlu0 %1608
        %1610 = vrot.lane.b32.xlu0 %v1444, 126
        %v1611 = vpop.permute.xlu0 %1610
        %1612 = vrot.lane.b32.xlu0 %v1445, 126
        %v1613 = vpop.permute.xlu0 %1612
        %1614 = vrot.lane.b32.xlu0 %v1446, 126
        %v1615 = vpop.permute.xlu0 %1614
        %1616 = vrot.lane.b32.xlu0 %v1447, 126
        %v1617 = vpop.permute.xlu0 %1616
        %1618 = vrot.lane.b32.xlu0 %v1414, 126
        %v1619 = vpop.permute.xlu0 %1618
        %v1620 = vrot.slane %v1603, 4
        %v1621 = vrot.slane %v1605, 4
        %v1622 = vrot.slane %v1607, 4
        %v1623 = vrot.slane %v1609, 4
        %v1624 = vrot.slane %v1611, 4
        %v1625 = vrot.slane %v1613, 4
        %v1626 = vrot.slane %v1615, 4
        %v1627 = vrot.slane %v1617, 4
        %v1628 = vrot.slane %v1619, 4
        %v1629 = vsel %vm306, %v1620, %v1621
        %v1630 = vsel %vm827, %v1603, %v1629
        %v1631 = vsel %vm306, %v1621, %v1622
        %v1632 = vsel %vm827, %v1605, %v1631
        %v1633 = vsel %vm306, %v1622, %v1623
        %v1634 = vsel %vm827, %v1607, %v1633
        %v1635 = vsel %vm306, %v1623, %v1624
        %v1636 = vsel %vm827, %v1609, %v1635
        %v1637 = vsel %vm306, %v1624, %v1625
        %v1638 = vsel %vm827, %v1611, %v1637
        %v1639 = vsel %vm306, %v1625, %v1626
        %v1640 = vsel %vm827, %v1613, %v1639
        %v1641 = vsel %vm306, %v1626, %v1627
        %v1642 = vsel %vm827, %v1615, %v1641
        %v1643 = vsel %vm306, %v1627, %v1628
        %v1644 = vsel %vm827, %v1617, %v1643
        %v1653 = vmul.f32 %v1601, %v1630
        %v1654 = vmul.f32 %v1601, %v1632
        %v1655 = vmul.f32 %v1601, %v1634
        %v1656 = vmul.f32 %v1601, %v1636
        %v1657 = vmul.f32 %v1601, %v1638
        %v1658 = vmul.f32 %v1601, %v1640
        %v1659 = vmul.f32 %v1601, %v1642
        %v1660 = vmul.f32 %v1601, %v1644
        %v1661 = vadd.f32 %v1586, %v1653
        %v1662 = vadd.f32 %v1587, %v1654
        %v1663 = vadd.f32 %v1588, %v1655
        %v1664 = vadd.f32 %v1589, %v1656
        %v1665 = vadd.f32 %v1590, %v1657
        %v1666 = vadd.f32 %v1591, %v1658
        %v1667 = vadd.f32 %v1592, %v1659
        %v1668 = vadd.f32 %v1593, %v1660
        %v1669 = vld [vmem:[%s185 + $0x2] sm:$0xff]
        %v1670 = vld [vmem:[%s185 + $0xa] sm:$0xff]
        %v1671 = vunpack.c.l.bf16 %v1669
        %v1672 = vunpack.c.h.bf16 %v1669
        %v1673 = vunpack.c.l.bf16 %v1670
        %v1674 = vunpack.c.h.bf16 %v1670
        %s1675 = scalar_lea.vmem %s1, 12
        %v1676 = vld [vmem:[%s1675] sm:$0x3]
        %v1677 = vunpack.c.l.bf16 %v1676
        %1679 = vset.pattern.permute.xlu0 0
        %1680 = vperm.xlu0 %1679, %v1677
        %v1681 = vpop.permute.xlu0 %1680
        %v1684 = vunpack.c.l.s4 839922192
        %v1685 = vunpack.c.0.s8 %v1684
        %v1686 = vperm.slane %v1681, %v1685
        %v1691 = vperm.slane %v1671, 0
        %v1692 = vperm.slane %v1671, 2
        %v1693 = vperm.slane %v1671, 4
        %v1694 = vperm.slane %v1671, 6
        %v1695 = vperm.slane %v1672, 0
        %v1696 = vperm.slane %v1672, 2
        %v1697 = vperm.slane %v1672, 4
        %v1698 = vperm.slane %v1672, 6
        %v1699 = vperm.slane %v1673, 0
        %v1700 = vperm.slane %v1673, 2
        %v1701 = vperm.slane %v1673, 4
        %v1702 = vperm.slane %v1673, 6
        %v1703 = vperm.slane %v1674, 0
        %v1704 = vperm.slane %v1674, 2
        %v1705 = vperm.slane %v1674, 4
        %v1706 = vperm.slane %v1674, 6
        %v1723 = vperm.slane %v1691, 0
        %v1724 = vperm.slane %v1692, 0
        %v1725 = vperm.slane %v1693, 0
        %v1726 = vperm.slane %v1694, 0
        %v1727 = vperm.slane %v1695, 0
        %v1728 = vperm.slane %v1696, 0
        %v1729 = vperm.slane %v1697, 0
        %v1730 = vperm.slane %v1698, 0
        %v1731 = vperm.slane %v1699, 0
        %v1732 = vperm.slane %v1700, 0
        %v1733 = vperm.slane %v1701, 0
        %v1734 = vperm.slane %v1702, 0
        %v1735 = vperm.slane %v1703, 0
        %v1736 = vperm.slane %v1704, 0
        %v1737 = vperm.slane %v1705, 0
        %v1738 = vperm.slane %v1706, 0
        %v1755 = vrot.slane %v1724, 4
        %v1756 = vrot.slane %v1726, 4
        %v1757 = vrot.slane %v1728, 4
        %v1758 = vrot.slane %v1730, 4
        %v1759 = vrot.slane %v1732, 4
        %v1760 = vrot.slane %v1734, 4
        %v1761 = vrot.slane %v1736, 4
        %v1762 = vrot.slane %v1738, 4
        %v1763 = vsel %vm306, %v1723, %v1755
        %v1764 = vsel %vm306, %v1725, %v1756
        %v1765 = vsel %vm306, %v1727, %v1757
        %v1766 = vsel %vm306, %v1729, %v1758
        %v1767 = vsel %vm306, %v1731, %v1759
        %v1768 = vsel %vm306, %v1733, %v1760
        %v1769 = vsel %vm306, %v1735, %v1761
        %v1770 = vsel %vm306, %v1737, %v1762
        %v1779 = vmul.f32 %v1686, %v1763
        %v1780 = vmul.f32 %v1686, %v1764
        %v1781 = vmul.f32 %v1686, %v1765
        %v1782 = vmul.f32 %v1686, %v1766
        %v1783 = vmul.f32 %v1686, %v1767
        %v1784 = vmul.f32 %v1686, %v1768
        %v1785 = vmul.f32 %v1686, %v1769
        %v1786 = vmul.f32 %v1686, %v1770
        %v1787 = vadd.f32 %v1661, %v1779
        %v1788 = vadd.f32 %v1662, %v1780
        %v1789 = vadd.f32 %v1663, %v1781
        %v1790 = vadd.f32 %v1664, %v1782
        %v1791 = vadd.f32 %v1665, %v1783
        %v1792 = vadd.f32 %v1666, %v1784
        %v1793 = vadd.f32 %v1667, %v1785
        %v1794 = vadd.f32 %v1668, %v1786
        %1795 = vset.pattern.permute.xlu0 1
        %1796 = vperm.xlu0 %1795, %v1677
        %v1797 = vpop.permute.xlu0 %1796
        %v1800 = vunpack.c.l.s4 839922192
        %v1801 = vunpack.c.0.s8 %v1800
        %v1802 = vperm.slane %v1797, %v1801
        %v1803 = vperm.slane %v1671, 1
        %v1804 = vperm.slane %v1671, 3
        %v1805 = vperm.slane %v1671, 5
        %v1806 = vperm.slane %v1671, 7
        %v1807 = vperm.slane %v1672, 1
        %v1808 = vperm.slane %v1672, 3
        %v1809 = vperm.slane %v1672, 5
        %v1810 = vperm.slane %v1672, 7
        %v1811 = vperm.slane %v1673, 1
        %v1812 = vperm.slane %v1673, 3
        %v1813 = vperm.slane %v1673, 5
        %v1814 = vperm.slane %v1673, 7
        %v1815 = vperm.slane %v1674, 1
        %v1816 = vperm.slane %v1674, 3
        %v1817 = vperm.slane %v1674, 5
        %v1818 = vperm.slane %v1674, 7
        %v1835 = vperm.slane %v1803, 1
        %v1836 = vperm.slane %v1804, 1
        %v1837 = vperm.slane %v1805, 1
        %v1838 = vperm.slane %v1806, 1
        %v1839 = vperm.slane %v1807, 1
        %v1840 = vperm.slane %v1808, 1
        %v1841 = vperm.slane %v1809, 1
        %v1842 = vperm.slane %v1810, 1
        %v1843 = vperm.slane %v1811, 1
        %v1844 = vperm.slane %v1812, 1
        %v1845 = vperm.slane %v1813, 1
        %v1846 = vperm.slane %v1814, 1
        %v1847 = vperm.slane %v1815, 1
        %v1848 = vperm.slane %v1816, 1
        %v1849 = vperm.slane %v1817, 1
        %v1850 = vperm.slane %v1818, 1
        %v1867 = vrot.slane %v1836, 4
        %v1868 = vrot.slane %v1838, 4
        %v1869 = vrot.slane %v1840, 4
        %v1870 = vrot.slane %v1842, 4
        %v1871 = vrot.slane %v1844, 4
        %v1872 = vrot.slane %v1846, 4
        %v1873 = vrot.slane %v1848, 4
        %v1874 = vrot.slane %v1850, 4
        %v1875 = vsel %vm306, %v1835, %v1867
        %v1876 = vsel %vm306, %v1837, %v1868
        %v1877 = vsel %vm306, %v1839, %v1869
        %v1878 = vsel %vm306, %v1841, %v1870
        %v1879 = vsel %vm306, %v1843, %v1871
        %v1880 = vsel %vm306, %v1845, %v1872
        %v1881 = vsel %vm306, %v1847, %v1873
        %v1882 = vsel %vm306, %v1849, %v1874
        %v1891 = vmul.f32 %v1802, %v1875
        %v1892 = vmul.f32 %v1802, %v1876
        %v1893 = vmul.f32 %v1802, %v1877
        %v1894 = vmul.f32 %v1802, %v1878
        %v1895 = vmul.f32 %v1802, %v1879
        %v1896 = vmul.f32 %v1802, %v1880
        %v1897 = vmul.f32 %v1802, %v1881
        %v1898 = vmul.f32 %v1802, %v1882
        %v1899 = vadd.f32 %v1787, %v1891
        %v1900 = vadd.f32 %v1788, %v1892
        %v1901 = vadd.f32 %v1789, %v1893
        %v1902 = vadd.f32 %v1790, %v1894
        %v1903 = vadd.f32 %v1791, %v1895
        %v1904 = vadd.f32 %v1792, %v1896
        %v1905 = vadd.f32 %v1793, %v1897
        %v1906 = vadd.f32 %v1794, %v1898
        %v1907 = vld [vmem:[%s185 + $0x2] sm:$0xff]
        %v1908 = vld [vmem:[%s185 + $0xa] sm:$0xff]
        %v1909 = vld [vmem:[%s185 + $0x12] sm:$0x1]
        %v1910 = vunpack.c.l.bf16 %v1907
        %v1911 = vunpack.c.h.bf16 %v1907
        %v1912 = vunpack.c.l.bf16 %v1908
        %v1913 = vunpack.c.h.bf16 %v1908
        %v1914 = vunpack.c.l.bf16 %v1909
        %s1915 = scalar_lea.vmem %s1, 14
        %v1916 = vld [vmem:[%s1915] sm:$0x3]
        %v1917 = vunpack.c.l.bf16 %v1916
        %1919 = vset.pattern.permute.xlu0 0
        %1920 = vperm.xlu0 %1919, %v1917
        %v1921 = vpop.permute.xlu0 %1920
        %v1924 = vunpack.c.l.s4 839922192
        %v1925 = vunpack.c.0.s8 %v1924
        %v1926 = vperm.slane %v1921, %v1925
        %v1932 = vperm.slane %v1910, 0
        %v1933 = vperm.slane %v1910, 2
        %v1934 = vperm.slane %v1910, 4
        %v1935 = vperm.slane %v1910, 6
        %v1936 = vperm.slane %v1911, 0
        %v1937 = vperm.slane %v1911, 2
        %v1938 = vperm.slane %v1911, 4
        %v1939 = vperm.slane %v1911, 6
        %v1940 = vperm.slane %v1912, 0
        %v1941 = vperm.slane %v1912, 2
        %v1942 = vperm.slane %v1912, 4
        %v1943 = vperm.slane %v1912, 6
        %v1944 = vperm.slane %v1913, 0
        %v1945 = vperm.slane %v1913, 2
        %v1946 = vperm.slane %v1913, 4
        %v1947 = vperm.slane %v1913, 6
        %v1948 = vperm.slane %v1914, 0
        %v1966 = vperm.slane %v1932, 0
        %v1967 = vperm.slane %v1933, 0
        %v1968 = vperm.slane %v1934, 0
        %v1969 = vperm.slane %v1935, 0
        %v1970 = vperm.slane %v1936, 0
        %v1971 = vperm.slane %v1937, 0
        %v1972 = vperm.slane %v1938, 0
        %v1973 = vperm.slane %v1939, 0
        %v1974 = vperm.slane %v1940, 0
        %v1975 = vperm.slane %v1941, 0
        %v1976 = vperm.slane %v1942, 0
        %v1977 = vperm.slane %v1943, 0
        %v1978 = vperm.slane %v1944, 0
        %v1979 = vperm.slane %v1945, 0
        %v1980 = vperm.slane %v1946, 0
        %v1981 = vperm.slane %v1947, 0
        %v1982 = vperm.slane %v1948, 0
        %v2000 = vrot.slane %v1967, 4
        %v2001 = vrot.slane %v1969, 4
        %v2002 = vrot.slane %v1971, 4
        %v2003 = vrot.slane %v1973, 4
        %v2004 = vrot.slane %v1975, 4
        %v2005 = vrot.slane %v1977, 4
        %v2006 = vrot.slane %v1979, 4
        %v2007 = vrot.slane %v1981, 4
        %v2008 = vsel %vm306, %v1966, %v2000
        %v2009 = vsel %vm306, %v1968, %v2001
        %v2010 = vsel %vm306, %v1970, %v2002
        %v2011 = vsel %vm306, %v1972, %v2003
        %v2012 = vsel %vm306, %v1974, %v2004
        %v2013 = vsel %vm306, %v1976, %v2005
        %v2014 = vsel %vm306, %v1978, %v2006
        %v2015 = vsel %vm306, %v1980, %v2007
        %2016 = vrot.lane.b32.xlu0 %v2008, 127
        %v2017 = vpop.permute.xlu0 %2016
        %2018 = vrot.lane.b32.xlu0 %v2009, 127
        %v2019 = vpop.permute.xlu0 %2018
        %2020 = vrot.lane.b32.xlu0 %v2010, 127
        %v2021 = vpop.permute.xlu0 %2020
        %2022 = vrot.lane.b32.xlu0 %v2011, 127
        %v2023 = vpop.permute.xlu0 %2022
        %2024 = vrot.lane.b32.xlu0 %v2012, 127
        %v2025 = vpop.permute.xlu0 %2024
        %2026 = vrot.lane.b32.xlu0 %v2013, 127
        %v2027 = vpop.permute.xlu0 %2026
        %2028 = vrot.lane.b32.xlu0 %v2014, 127
        %v2029 = vpop.permute.xlu0 %2028
        %2030 = vrot.lane.b32.xlu0 %v2015, 127
        %v2031 = vpop.permute.xlu0 %2030
        %2032 = vrot.lane.b32.xlu0 %v1982, 127
        %v2033 = vpop.permute.xlu0 %2032
        %v2034 = vrot.slane %v2017, 4
        %v2035 = vrot.slane %v2019, 4
        %v2036 = vrot.slane %v2021, 4
        %v2037 = vrot.slane %v2023, 4
        %v2038 = vrot.slane %v2025, 4
        %v2039 = vrot.slane %v2027, 4
        %v2040 = vrot.slane %v2029, 4
        %v2041 = vrot.slane %v2031, 4
        %v2042 = vrot.slane %v2033, 4
        %v2043 = vsel %vm306, %v2034, %v2035
        %v2044 = vsel %vm588, %v2017, %v2043
        %v2045 = vsel %vm306, %v2035, %v2036
        %v2046 = vsel %vm588, %v2019, %v2045
        %v2047 = vsel %vm306, %v2036, %v2037
        %v2048 = vsel %vm588, %v2021, %v2047
        %v2049 = vsel %vm306, %v2037, %v2038
        %v2050 = vsel %vm588, %v2023, %v2049
        %v2051 = vsel %vm306, %v2038, %v2039
        %v2052 = vsel %vm588, %v2025, %v2051
        %v2053 = vsel %vm306, %v2039, %v2040
        %v2054 = vsel %vm588, %v2027, %v2053
        %v2055 = vsel %vm306, %v2040, %v2041
        %v2056 = vsel %vm588, %v2029, %v2055
        %v2057 = vsel %vm306, %v2041, %v2042
        %v2058 = vsel %vm588, %v2031, %v2057
        %v2067 = vmul.f32 %v1926, %v2044
        %v2068 = vmul.f32 %v1926, %v2046
        %v2069 = vmul.f32 %v1926, %v2048
        %v2070 = vmul.f32 %v1926, %v2050
        %v2071 = vmul.f32 %v1926, %v2052
        %v2072 = vmul.f32 %v1926, %v2054
        %v2073 = vmul.f32 %v1926, %v2056
        %v2074 = vmul.f32 %v1926, %v2058
        %v2075 = vadd.f32 %v1899, %v2067
        %v2076 = vadd.f32 %v1900, %v2068
        %v2077 = vadd.f32 %v1901, %v2069
        %v2078 = vadd.f32 %v1902, %v2070
        %v2079 = vadd.f32 %v1903, %v2071
        %v2080 = vadd.f32 %v1904, %v2072
        %v2081 = vadd.f32 %v1905, %v2073
        %v2082 = vadd.f32 %v1906, %v2074
        %2083 = vset.pattern.permute.xlu0 1
        %2084 = vperm.xlu0 %2083, %v1917
        %v2085 = vpop.permute.xlu0 %2084
        %v2088 = vunpack.c.l.s4 839922192
        %v2089 = vunpack.c.0.s8 %v2088
        %v2090 = vperm.slane %v2085, %v2089
        %v2091 = vperm.slane %v1910, 1
        %v2092 = vperm.slane %v1910, 3
        %v2093 = vperm.slane %v1910, 5
        %v2094 = vperm.slane %v1910, 7
        %v2095 = vperm.slane %v1911, 1
        %v2096 = vperm.slane %v1911, 3
        %v2097 = vperm.slane %v1911, 5
        %v2098 = vperm.slane %v1911, 7
        %v2099 = vperm.slane %v1912, 1
        %v2100 = vperm.slane %v1912, 3
        %v2101 = vperm.slane %v1912, 5
        %v2102 = vperm.slane %v1912, 7
        %v2103 = vperm.slane %v1913, 1
        %v2104 = vperm.slane %v1913, 3
        %v2105 = vperm.slane %v1913, 5
        %v2106 = vperm.slane %v1913, 7
        %v2107 = vperm.slane %v1914, 1
        %v2125 = vperm.slane %v2091, 1
        %v2126 = vperm.slane %v2092, 1
        %v2127 = vperm.slane %v2093, 1
        %v2128 = vperm.slane %v2094, 1
        %v2129 = vperm.slane %v2095, 1
        %v2130 = vperm.slane %v2096, 1
        %v2131 = vperm.slane %v2097, 1
        %v2132 = vperm.slane %v2098, 1
        %v2133 = vperm.slane %v2099, 1
        %v2134 = vperm.slane %v2100, 1
        %v2135 = vperm.slane %v2101, 1
        %v2136 = vperm.slane %v2102, 1
        %v2137 = vperm.slane %v2103, 1
        %v2138 = vperm.slane %v2104, 1
        %v2139 = vperm.slane %v2105, 1
        %v2140 = vperm.slane %v2106, 1
        %v2141 = vperm.slane %v2107, 1
        %v2159 = vrot.slane %v2126, 4
        %v2160 = vrot.slane %v2128, 4
        %v2161 = vrot.slane %v2130, 4
        %v2162 = vrot.slane %v2132, 4
        %v2163 = vrot.slane %v2134, 4
        %v2164 = vrot.slane %v2136, 4
        %v2165 = vrot.slane %v2138, 4
        %v2166 = vrot.slane %v2140, 4
        %v2167 = vsel %vm306, %v2125, %v2159
        %v2168 = vsel %vm306, %v2127, %v2160
        %v2169 = vsel %vm306, %v2129, %v2161
        %v2170 = vsel %vm306, %v2131, %v2162
        %v2171 = vsel %vm306, %v2133, %v2163
        %v2172 = vsel %vm306, %v2135, %v2164
        %v2173 = vsel %vm306, %v2137, %v2165
        %v2174 = vsel %vm306, %v2139, %v2166
        %2175 = vrot.lane.b32.xlu0 %v2167, 127
        %v2176 = vpop.permute.xlu0 %2175
        %2177 = vrot.lane.b32.xlu0 %v2168, 127
        %v2178 = vpop.permute.xlu0 %2177
        %2179 = vrot.lane.b32.xlu0 %v2169, 127
        %v2180 = vpop.permute.xlu0 %2179
        %2181 = vrot.lane.b32.xlu0 %v2170, 127
        %v2182 = vpop.permute.xlu0 %2181
        %2183 = vrot.lane.b32.xlu0 %v2171, 127
        %v2184 = vpop.permute.xlu0 %2183
        %2185 = vrot.lane.b32.xlu0 %v2172, 127
        %v2186 = vpop.permute.xlu0 %2185
        %2187 = vrot.lane.b32.xlu0 %v2173, 127
        %v2188 = vpop.permute.xlu0 %2187
        %2189 = vrot.lane.b32.xlu0 %v2174, 127
        %v2190 = vpop.permute.xlu0 %2189
        %2191 = vrot.lane.b32.xlu0 %v2141, 127
        %v2192 = vpop.permute.xlu0 %2191
        %v2193 = vrot.slane %v2176, 4
        %v2194 = vrot.slane %v2178, 4
        %v2195 = vrot.slane %v2180, 4
        %v2196 = vrot.slane %v2182, 4
        %v2197 = vrot.slane %v2184, 4
        %v2198 = vrot.slane %v2186, 4
        %v2199 = vrot.slane %v2188, 4
        %v2200 = vrot.slane %v2190, 4
        %v2201 = vrot.slane %v2192, 4
        %v2202 = vsel %vm306, %v2193, %v2194
        %v2203 = vsel %vm588, %v2176, %v2202
        %v2204 = vsel %vm306, %v2194, %v2195
        %v2205 = vsel %vm588, %v2178, %v2204
        %v2206 = vsel %vm306, %v2195, %v2196
        %v2207 = vsel %vm588, %v2180, %v2206
        %v2208 = vsel %vm306, %v2196, %v2197
        %v2209 = vsel %vm588, %v2182, %v2208
        %v2210 = vsel %vm306, %v2197, %v2198
        %v2211 = vsel %vm588, %v2184, %v2210
        %v2212 = vsel %vm306, %v2198, %v2199
        %v2213 = vsel %vm588, %v2186, %v2212
        %v2214 = vsel %vm306, %v2199, %v2200
        %v2215 = vsel %vm588, %v2188, %v2214
        %v2216 = vsel %vm306, %v2200, %v2201
        %v2217 = vsel %vm588, %v2190, %v2216
        %v2226 = vmul.f32 %v2090, %v2203
        %v2227 = vmul.f32 %v2090, %v2205
        %v2228 = vmul.f32 %v2090, %v2207
        %v2229 = vmul.f32 %v2090, %v2209
        %v2230 = vmul.f32 %v2090, %v2211
        %v2231 = vmul.f32 %v2090, %v2213
        %v2232 = vmul.f32 %v2090, %v2215
        %v2233 = vmul.f32 %v2090, %v2217
        %v2234 = vadd.f32 %v2075, %v2226
        %v2235 = vadd.f32 %v2076, %v2227
        %v2236 = vadd.f32 %v2077, %v2228
        %v2237 = vadd.f32 %v2078, %v2229
        %v2238 = vadd.f32 %v2079, %v2230
        %v2239 = vadd.f32 %v2080, %v2231
        %v2240 = vadd.f32 %v2081, %v2232
        %v2241 = vadd.f32 %v2082, %v2233
        %s2242 = scalar_lea.vmem %s1, 16
        %v2243 = vld [vmem:[%s2242] sm:$0x3]
        %v2244 = vunpack.c.l.bf16 %v2243
        %2246 = vset.pattern.permute.xlu0 0
        %2247 = vperm.xlu0 %2246, %v2244
        %v2248 = vpop.permute.xlu0 %2247
        %v2251 = vunpack.c.l.s4 839922192
        %v2252 = vunpack.c.0.s8 %v2251
        %v2253 = vperm.slane %v2248, %v2252
        %2254 = vrot.lane.b32.xlu0 %v2008, 126
        %v2255 = vpop.permute.xlu0 %2254
        %2256 = vrot.lane.b32.xlu0 %v2009, 126
        %v2257 = vpop.permute.xlu0 %2256
        %2258 = vrot.lane.b32.xlu0 %v2010, 126
        %v2259 = vpop.permute.xlu0 %2258
        %2260 = vrot.lane.b32.xlu0 %v2011, 126
        %v2261 = vpop.permute.xlu0 %2260
        %2262 = vrot.lane.b32.xlu0 %v2012, 126
        %v2263 = vpop.permute.xlu0 %2262
        %2264 = vrot.lane.b32.xlu0 %v2013, 126
        %v2265 = vpop.permute.xlu0 %2264
        %2266 = vrot.lane.b32.xlu0 %v2014, 126
        %v2267 = vpop.permute.xlu0 %2266
        %2268 = vrot.lane.b32.xlu0 %v2015, 126
        %v2269 = vpop.permute.xlu0 %2268
        %2270 = vrot.lane.b32.xlu0 %v1982, 126
        %v2271 = vpop.permute.xlu0 %2270
        %v2272 = vrot.slane %v2255, 4
        %v2273 = vrot.slane %v2257, 4
        %v2274 = vrot.slane %v2259, 4
        %v2275 = vrot.slane %v2261, 4
        %v2276 = vrot.slane %v2263, 4
        %v2277 = vrot.slane %v2265, 4
        %v2278 = vrot.slane %v2267, 4
        %v2279 = vrot.slane %v2269, 4
        %v2280 = vrot.slane %v2271, 4
        %v2281 = vsel %vm306, %v2272, %v2273
        %v2282 = vsel %vm827, %v2255, %v2281
        %v2283 = vsel %vm306, %v2273, %v2274
        %v2284 = vsel %vm827, %v2257, %v2283
        %v2285 = vsel %vm306, %v2274, %v2275
        %v2286 = vsel %vm827, %v2259, %v2285
        %v2287 = vsel %vm306, %v2275, %v2276
        %v2288 = vsel %vm827, %v2261, %v2287
        %v2289 = vsel %vm306, %v2276, %v2277
        %v2290 = vsel %vm827, %v2263, %v2289
        %v2291 = vsel %vm306, %v2277, %v2278
        %v2292 = vsel %vm827, %v2265, %v2291
        %v2293 = vsel %vm306, %v2278, %v2279
        %v2294 = vsel %vm827, %v2267, %v2293
        %v2295 = vsel %vm306, %v2279, %v2280
        %v2296 = vsel %vm827, %v2269, %v2295
        %v2305 = vmul.f32 %v2253, %v2282
        %v2306 = vmul.f32 %v2253, %v2284
        %v2307 = vmul.f32 %v2253, %v2286
        %v2308 = vmul.f32 %v2253, %v2288
        %v2309 = vmul.f32 %v2253, %v2290
        %v2310 = vmul.f32 %v2253, %v2292
        %v2311 = vmul.f32 %v2253, %v2294
        %v2312 = vmul.f32 %v2253, %v2296
        %v2313 = vadd.f32 %v2234, %v2305
        %v2314 = vadd.f32 %v2235, %v2306
        %v2315 = vadd.f32 %v2236, %v2307
        %v2316 = vadd.f32 %v2237, %v2308
        %v2317 = vadd.f32 %v2238, %v2309
        %v2318 = vadd.f32 %v2239, %v2310
        %v2319 = vadd.f32 %v2240, %v2311
        %v2320 = vadd.f32 %v2241, %v2312
        %2321 = vset.pattern.permute.xlu0 1
        %2322 = vperm.xlu0 %2321, %v2244
        %v2323 = vpop.permute.xlu0 %2322
        %v2326 = vunpack.c.l.s4 839922192
        %v2327 = vunpack.c.0.s8 %v2326
        %v2328 = vperm.slane %v2323, %v2327
        %2329 = vrot.lane.b32.xlu0 %v2167, 126
        %v2330 = vpop.permute.xlu0 %2329
        %2331 = vrot.lane.b32.xlu0 %v2168, 126
        %v2332 = vpop.permute.xlu0 %2331
        %2333 = vrot.lane.b32.xlu0 %v2169, 126
        %v2334 = vpop.permute.xlu0 %2333
        %2335 = vrot.lane.b32.xlu0 %v2170, 126
        %v2336 = vpop.permute.xlu0 %2335
        %2337 = vrot.lane.b32.xlu0 %v2171, 126
        %v2338 = vpop.permute.xlu0 %2337
        %2339 = vrot.lane.b32.xlu0 %v2172, 126
        %v2340 = vpop.permute.xlu0 %2339
        %2341 = vrot.lane.b32.xlu0 %v2173, 126
        %v2342 = vpop.permute.xlu0 %2341
        %2343 = vrot.lane.b32.xlu0 %v2174, 126
        %v2344 = vpop.permute.xlu0 %2343
        %2345 = vrot.lane.b32.xlu0 %v2141, 126
        %v2346 = vpop.permute.xlu0 %2345
        %v2347 = vrot.slane %v2330, 4
        %v2348 = vrot.slane %v2332, 4
        %v2349 = vrot.slane %v2334, 4
        %v2350 = vrot.slane %v2336, 4
        %v2351 = vrot.slane %v2338, 4
        %v2352 = vrot.slane %v2340, 4
        %v2353 = vrot.slane %v2342, 4
        %v2354 = vrot.slane %v2344, 4
        %v2355 = vrot.slane %v2346, 4
        %v2356 = vsel %vm306, %v2347, %v2348
        %v2357 = vsel %vm827, %v2330, %v2356
        %v2358 = vsel %vm306, %v2348, %v2349
        %v2359 = vsel %vm827, %v2332, %v2358
        %v2360 = vsel %vm306, %v2349, %v2350
        %v2361 = vsel %vm827, %v2334, %v2360
        %v2362 = vsel %vm306, %v2350, %v2351
        %v2363 = vsel %vm827, %v2336, %v2362
        %v2364 = vsel %vm306, %v2351, %v2352
        %v2365 = vsel %vm827, %v2338, %v2364
        %v2366 = vsel %vm306, %v2352, %v2353
        %v2367 = vsel %vm827, %v2340, %v2366
        %v2368 = vsel %vm306, %v2353, %v2354
        %v2369 = vsel %vm827, %v2342, %v2368
        %v2370 = vsel %vm306, %v2354, %v2355
        %v2371 = vsel %vm827, %v2344, %v2370
        %v2380 = vmul.f32 %v2328, %v2357
        %v2381 = vmul.f32 %v2328, %v2359
        %v2382 = vmul.f32 %v2328, %v2361
        %v2383 = vmul.f32 %v2328, %v2363
        %v2384 = vmul.f32 %v2328, %v2365
        %v2385 = vmul.f32 %v2328, %v2367
        %v2386 = vmul.f32 %v2328, %v2369
        %v2387 = vmul.f32 %v2328, %v2371
        %v2388 = vadd.f32 %v2313, %v2380
        %v2389 = vadd.f32 %v2314, %v2381
        %v2390 = vadd.f32 %v2315, %v2382
        %v2391 = vadd.f32 %v2316, %v2383
        %v2392 = vadd.f32 %v2317, %v2384
        %v2393 = vadd.f32 %v2318, %v2385
        %v2394 = vadd.f32 %v2319, %v2386
        %v2395 = vadd.f32 %v2320, %v2387
        %2397 = vset.pattern.permute.xlu0 0
        %2398 = vperm.xlu0 %2397, %v212
        %v2399 = vpop.permute.xlu0 %2398
        %v2401 = vadd.f32 %v2388, %v2399
        %v2403 = vrot.slane %v2401, 3
        %vm2404 = vcmask 1040384
        %v2405 = vsel %vm2404, %v2401, %v2403
        %vm2406 = vcmask 1041409
        %v2407 = vsel %vm2406, %v2401, %v2403
        %v2408 = vrot.slane %v2407, 1
        %vm2409 = vcmask 1042434
        %v2410 = vsel %vm2409, %v2401, %v2403
        %v2411 = vrot.slane %v2410, 2
        %vm2412 = vcmask 1043459
        %v2413 = vsel %vm2412, %v2401, %v2403
        %v2414 = vrot.slane %v2413, 3
        %vm2419 = vcmask 122880
        %2420 = vst.msk [vmem:[%s208] sm:$0x1] %vm2419, %v2405
        %2421 = vst.msk [vmem:[%s208 + $0x10] sm:$0x1] %vm2419, %v2408
        %2422 = vst.msk [vmem:[%s208 + $0x20] sm:$0x1] %vm2419, %v2411
        %2423 = vst.msk [vmem:[%s208 + $0x30] sm:$0x1] %vm2419, %v2414
        %v2425 = vrot.slane %v2388, 4
        %v2427 = vadd.f32 %v2425, %v2399
        %v2429 = vrot.slane %v2427, 3
        %v2430 = vsel %vm2404, %v2427, %v2429
        %v2431 = vsel %vm2406, %v2427, %v2429
        %v2432 = vrot.slane %v2431, 1
        %v2433 = vsel %vm2409, %v2427, %v2429
        %v2434 = vrot.slane %v2433, 2
        %v2435 = vsel %vm2412, %v2427, %v2429
        %v2436 = vrot.slane %v2435, 3
        %2441 = vst.msk [vmem:[%s208 + $0x1] sm:$0x1] %vm2419, %v2430
        %2442 = vst.msk [vmem:[%s208 + $0x11] sm:$0x1] %vm2419, %v2432
        %2443 = vst.msk [vmem:[%s208 + $0x21] sm:$0x1] %vm2419, %v2434
        %2444 = vst.msk [vmem:[%s208 + $0x31] sm:$0x1] %vm2419, %v2436
        %v2445 = vadd.f32 %v2389, %v2399
        %v2447 = vrot.slane %v2445, 3
        %v2448 = vsel %vm2404, %v2445, %v2447
        %v2449 = vsel %vm2406, %v2445, %v2447
        %v2450 = vrot.slane %v2449, 1
        %v2451 = vsel %vm2409, %v2445, %v2447
        %v2452 = vrot.slane %v2451, 2
        %v2453 = vsel %vm2412, %v2445, %v2447
        %v2454 = vrot.slane %v2453, 3
        %2459 = vst.msk [vmem:[%s208 + $0x2] sm:$0x1] %vm2419, %v2448
        %2460 = vst.msk [vmem:[%s208 + $0x12] sm:$0x1] %vm2419, %v2450
        %2461 = vst.msk [vmem:[%s208 + $0x22] sm:$0x1] %vm2419, %v2452
        %2462 = vst.msk [vmem:[%s208 + $0x32] sm:$0x1] %vm2419, %v2454
        %v2464 = vrot.slane %v2389, 4
        %v2466 = vadd.f32 %v2464, %v2399
        %v2468 = vrot.slane %v2466, 3
        %v2469 = vsel %vm2404, %v2466, %v2468
        %v2470 = vsel %vm2406, %v2466, %v2468
        %v2471 = vrot.slane %v2470, 1
        %v2472 = vsel %vm2409, %v2466, %v2468
        %v2473 = vrot.slane %v2472, 2
        %v2474 = vsel %vm2412, %v2466, %v2468
        %v2475 = vrot.slane %v2474, 3
        %2480 = vst.msk [vmem:[%s208 + $0x3] sm:$0x1] %vm2419, %v2469
        %2481 = vst.msk [vmem:[%s208 + $0x13] sm:$0x1] %vm2419, %v2471
        %2482 = vst.msk [vmem:[%s208 + $0x23] sm:$0x1] %vm2419, %v2473
        %2483 = vst.msk [vmem:[%s208 + $0x33] sm:$0x1] %vm2419, %v2475
        %v2484 = vadd.f32 %v2390, %v2399
        %v2486 = vrot.slane %v2484, 3
        %v2487 = vsel %vm2404, %v2484, %v2486
        %v2488 = vsel %vm2406, %v2484, %v2486
        %v2489 = vrot.slane %v2488, 1
        %v2490 = vsel %vm2409, %v2484, %v2486
        %v2491 = vrot.slane %v2490, 2
        %v2492 = vsel %vm2412, %v2484, %v2486
        %v2493 = vrot.slane %v2492, 3
        %2498 = vst.msk [vmem:[%s208 + $0x4] sm:$0x1] %vm2419, %v2487
        %2499 = vst.msk [vmem:[%s208 + $0x14] sm:$0x1] %vm2419, %v2489
        %2500 = vst.msk [vmem:[%s208 + $0x24] sm:$0x1] %vm2419, %v2491
        %2501 = vst.msk [vmem:[%s208 + $0x34] sm:$0x1] %vm2419, %v2493
        %v2503 = vrot.slane %v2390, 4
        %v2505 = vadd.f32 %v2503, %v2399
        %v2507 = vrot.slane %v2505, 3
        %v2508 = vsel %vm2404, %v2505, %v2507
        %v2509 = vsel %vm2406, %v2505, %v2507
        %v2510 = vrot.slane %v2509, 1
        %v2511 = vsel %vm2409, %v2505, %v2507
        %v2512 = vrot.slane %v2511, 2
        %v2513 = vsel %vm2412, %v2505, %v2507
        %v2514 = vrot.slane %v2513, 3
        %2519 = vst.msk [vmem:[%s208 + $0x5] sm:$0x1] %vm2419, %v2508
        %2520 = vst.msk [vmem:[%s208 + $0x15] sm:$0x1] %vm2419, %v2510
        %2521 = vst.msk [vmem:[%s208 + $0x25] sm:$0x1] %vm2419, %v2512
        %2522 = vst.msk [vmem:[%s208 + $0x35] sm:$0x1] %vm2419, %v2514
        %v2523 = vadd.f32 %v2391, %v2399
        %v2525 = vrot.slane %v2523, 3
        %v2526 = vsel %vm2404, %v2523, %v2525
        %v2527 = vsel %vm2406, %v2523, %v2525
        %v2528 = vrot.slane %v2527, 1
        %v2529 = vsel %vm2409, %v2523, %v2525
        %v2530 = vrot.slane %v2529, 2
        %v2531 = vsel %vm2412, %v2523, %v2525
        %v2532 = vrot.slane %v2531, 3
        %2537 = vst.msk [vmem:[%s208 + $0x6] sm:$0x1] %vm2419, %v2526
        %2538 = vst.msk [vmem:[%s208 + $0x16] sm:$0x1] %vm2419, %v2528
        %2539 = vst.msk [vmem:[%s208 + $0x26] sm:$0x1] %vm2419, %v2530
        %2540 = vst.msk [vmem:[%s208 + $0x36] sm:$0x1] %vm2419, %v2532
        %v2542 = vrot.slane %v2391, 4
        %v2544 = vadd.f32 %v2542, %v2399
        %v2546 = vrot.slane %v2544, 3
        %v2547 = vsel %vm2404, %v2544, %v2546
        %v2548 = vsel %vm2406, %v2544, %v2546
        %v2549 = vrot.slane %v2548, 1
        %v2550 = vsel %vm2409, %v2544, %v2546
        %v2551 = vrot.slane %v2550, 2
        %v2552 = vsel %vm2412, %v2544, %v2546
        %v2553 = vrot.slane %v2552, 3
        %2558 = vst.msk [vmem:[%s208 + $0x7] sm:$0x1] %vm2419, %v2547
        %2559 = vst.msk [vmem:[%s208 + $0x17] sm:$0x1] %vm2419, %v2549
        %2560 = vst.msk [vmem:[%s208 + $0x27] sm:$0x1] %vm2419, %v2551
        %2561 = vst.msk [vmem:[%s208 + $0x37] sm:$0x1] %vm2419, %v2553
        %v2562 = vadd.f32 %v2392, %v2399
        %v2564 = vrot.slane %v2562, 3
        %v2565 = vsel %vm2404, %v2562, %v2564
        %v2566 = vsel %vm2406, %v2562, %v2564
        %v2567 = vrot.slane %v2566, 1
        %v2568 = vsel %vm2409, %v2562, %v2564
        %v2569 = vrot.slane %v2568, 2
        %v2570 = vsel %vm2412, %v2562, %v2564
        %v2571 = vrot.slane %v2570, 3
        %2576 = vst.msk [vmem:[%s208 + $0x8] sm:$0x1] %vm2419, %v2565
        %2577 = vst.msk [vmem:[%s208 + $0x18] sm:$0x1] %vm2419, %v2567
        %2578 = vst.msk [vmem:[%s208 + $0x28] sm:$0x1] %vm2419, %v2569
        %2579 = vst.msk [vmem:[%s208 + $0x38] sm:$0x1] %vm2419, %v2571
        %v2581 = vrot.slane %v2392, 4
        %v2583 = vadd.f32 %v2581, %v2399
        %v2585 = vrot.slane %v2583, 3
        %v2586 = vsel %vm2404, %v2583, %v2585
        %v2587 = vsel %vm2406, %v2583, %v2585
        %v2588 = vrot.slane %v2587, 1
        %v2589 = vsel %vm2409, %v2583, %v2585
        %v2590 = vrot.slane %v2589, 2
        %v2591 = vsel %vm2412, %v2583, %v2585
        %v2592 = vrot.slane %v2591, 3
        %2597 = vst.msk [vmem:[%s208 + $0x9] sm:$0x1] %vm2419, %v2586
        %2598 = vst.msk [vmem:[%s208 + $0x19] sm:$0x1] %vm2419, %v2588
        %2599 = vst.msk [vmem:[%s208 + $0x29] sm:$0x1] %vm2419, %v2590
        %2600 = vst.msk [vmem:[%s208 + $0x39] sm:$0x1] %vm2419, %v2592
        %v2601 = vadd.f32 %v2393, %v2399
        %v2603 = vrot.slane %v2601, 3
        %v2604 = vsel %vm2404, %v2601, %v2603
        %v2605 = vsel %vm2406, %v2601, %v2603
        %v2606 = vrot.slane %v2605, 1
        %v2607 = vsel %vm2409, %v2601, %v2603
        %v2608 = vrot.slane %v2607, 2
        %v2609 = vsel %vm2412, %v2601, %v2603
        %v2610 = vrot.slane %v2609, 3
        %2615 = vst.msk [vmem:[%s208 + $0xa] sm:$0x1] %vm2419, %v2604
        %2616 = vst.msk [vmem:[%s208 + $0x1a] sm:$0x1] %vm2419, %v2606
        %2617 = vst.msk [vmem:[%s208 + $0x2a] sm:$0x1] %vm2419, %v2608
        %2618 = vst.msk [vmem:[%s208 + $0x3a] sm:$0x1] %vm2419, %v2610
        %v2620 = vrot.slane %v2393, 4
        %v2622 = vadd.f32 %v2620, %v2399
        %v2624 = vrot.slane %v2622, 3
        %v2625 = vsel %vm2404, %v2622, %v2624
        %v2626 = vsel %vm2406, %v2622, %v2624
        %v2627 = vrot.slane %v2626, 1
        %v2628 = vsel %vm2409, %v2622, %v2624
        %v2629 = vrot.slane %v2628, 2
        %v2630 = vsel %vm2412, %v2622, %v2624
        %v2631 = vrot.slane %v2630, 3
        %2636 = vst.msk [vmem:[%s208 + $0xb] sm:$0x1] %vm2419, %v2625
        %2637 = vst.msk [vmem:[%s208 + $0x1b] sm:$0x1] %vm2419, %v2627
        %2638 = vst.msk [vmem:[%s208 + $0x2b] sm:$0x1] %vm2419, %v2629
        %2639 = vst.msk [vmem:[%s208 + $0x3b] sm:$0x1] %vm2419, %v2631
        %v2640 = vadd.f32 %v2394, %v2399
        %v2642 = vrot.slane %v2640, 3
        %v2643 = vsel %vm2404, %v2640, %v2642
        %v2644 = vsel %vm2406, %v2640, %v2642
        %v2645 = vrot.slane %v2644, 1
        %v2646 = vsel %vm2409, %v2640, %v2642
        %v2647 = vrot.slane %v2646, 2
        %v2648 = vsel %vm2412, %v2640, %v2642
        %v2649 = vrot.slane %v2648, 3
        %2654 = vst.msk [vmem:[%s208 + $0xc] sm:$0x1] %vm2419, %v2643
        %2655 = vst.msk [vmem:[%s208 + $0x1c] sm:$0x1] %vm2419, %v2645
        %2656 = vst.msk [vmem:[%s208 + $0x2c] sm:$0x1] %vm2419, %v2647
        %2657 = vst.msk [vmem:[%s208 + $0x3c] sm:$0x1] %vm2419, %v2649
        %v2659 = vrot.slane %v2394, 4
        %v2661 = vadd.f32 %v2659, %v2399
        %v2663 = vrot.slane %v2661, 3
        %v2664 = vsel %vm2404, %v2661, %v2663
        %v2665 = vsel %vm2406, %v2661, %v2663
        %v2666 = vrot.slane %v2665, 1
        %v2667 = vsel %vm2409, %v2661, %v2663
        %v2668 = vrot.slane %v2667, 2
        %v2669 = vsel %vm2412, %v2661, %v2663
        %v2670 = vrot.slane %v2669, 3
        %2675 = vst.msk [vmem:[%s208 + $0xd] sm:$0x1] %vm2419, %v2664
        %2676 = vst.msk [vmem:[%s208 + $0x1d] sm:$0x1] %vm2419, %v2666
        %2677 = vst.msk [vmem:[%s208 + $0x2d] sm:$0x1] %vm2419, %v2668
        %2678 = vst.msk [vmem:[%s208 + $0x3d] sm:$0x1] %vm2419, %v2670
        %v2679 = vadd.f32 %v2395, %v2399
        %v2681 = vrot.slane %v2679, 3
        %v2682 = vsel %vm2404, %v2679, %v2681
        %v2683 = vsel %vm2406, %v2679, %v2681
        %v2684 = vrot.slane %v2683, 1
        %v2685 = vsel %vm2409, %v2679, %v2681
        %v2686 = vrot.slane %v2685, 2
        %v2687 = vsel %vm2412, %v2679, %v2681
        %v2688 = vrot.slane %v2687, 3
        %2693 = vst.msk [vmem:[%s208 + $0xe] sm:$0x1] %vm2419, %v2682
        %2694 = vst.msk [vmem:[%s208 + $0x1e] sm:$0x1] %vm2419, %v2684
        %2695 = vst.msk [vmem:[%s208 + $0x2e] sm:$0x1] %vm2419, %v2686
        %2696 = vst.msk [vmem:[%s208 + $0x3e] sm:$0x1] %vm2419, %v2688
        %v2698 = vrot.slane %v2395, 4
        %v2700 = vadd.f32 %v2698, %v2399
        %v2702 = vrot.slane %v2700, 3
        %v2703 = vsel %vm2404, %v2700, %v2702
        %v2704 = vsel %vm2406, %v2700, %v2702
        %v2705 = vrot.slane %v2704, 1
        %v2706 = vsel %vm2409, %v2700, %v2702
        %v2707 = vrot.slane %v2706, 2
        %v2708 = vsel %vm2412, %v2700, %v2702
        %v2709 = vrot.slane %v2708, 3
        %2714 = vst.msk [vmem:[%s208 + $0xf] sm:$0x1] %vm2419, %v2703
        %2715 = vst.msk [vmem:[%s208 + $0x1f] sm:$0x1] %vm2419, %v2705
        %2716 = vst.msk [vmem:[%s208 + $0x2f] sm:$0x1] %vm2419, %v2707
        %2717 = vst.msk [vmem:[%s208 + $0x3f] sm:$0x1] %vm2419, %v2709
        %s2718 = scalar_lea.vmem %s185, 19 [#allocation2]
        %v2719 = vld [vmem:[%s2718] sm:$0xff]
        %v2720 = vld [vmem:[%s2718 + $0x8] sm:$0xff]
        %v2721 = vunpack.c.l.bf16 %v2719
        %v2722 = vunpack.c.h.bf16 %v2719
        %v2723 = vunpack.c.l.bf16 %v2720
        %v2724 = vunpack.c.h.bf16 %v2720
        %v2725 = vld [vmem:[%s1] sm:$0x3]
        %v2726 = vunpack.c.l.bf16 %v2725
        %2728 = vset.pattern.permute.xlu0 0
        %2729 = vperm.xlu0 %2728, %v2726
        %v2730 = vpop.permute.xlu0 %2729
        %v2733 = vunpack.c.l.s4 839922192
        %v2734 = vunpack.c.0.s8 %v2733
        %v2735 = vperm.slane %v2730, %v2734
        %v2740 = vperm.slane %v2721, 0
        %v2741 = vperm.slane %v2721, 2
        %v2742 = vperm.slane %v2721, 4
        %v2743 = vperm.slane %v2721, 6
        %v2744 = vperm.slane %v2722, 0
        %v2745 = vperm.slane %v2722, 2
        %v2746 = vperm.slane %v2722, 4
        %v2747 = vperm.slane %v2722, 6
        %v2748 = vperm.slane %v2723, 0
        %v2749 = vperm.slane %v2723, 2
        %v2750 = vperm.slane %v2723, 4
        %v2751 = vperm.slane %v2723, 6
        %v2752 = vperm.slane %v2724, 0
        %v2753 = vperm.slane %v2724, 2
        %v2754 = vperm.slane %v2724, 4
        %v2755 = vperm.slane %v2724, 6
        %v2772 = vperm.slane %v2740, 0
        %v2773 = vperm.slane %v2741, 0
        %v2774 = vperm.slane %v2742, 0
        %v2775 = vperm.slane %v2743, 0
        %v2776 = vperm.slane %v2744, 0
        %v2777 = vperm.slane %v2745, 0
        %v2778 = vperm.slane %v2746, 0
        %v2779 = vperm.slane %v2747, 0
        %v2780 = vperm.slane %v2748, 0
        %v2781 = vperm.slane %v2749, 0
        %v2782 = vperm.slane %v2750, 0
        %v2783 = vperm.slane %v2751, 0
        %v2784 = vperm.slane %v2752, 0
        %v2785 = vperm.slane %v2753, 0
        %v2786 = vperm.slane %v2754, 0
        %v2787 = vperm.slane %v2755, 0
        %v2804 = vrot.slane %v2773, 4
        %v2805 = vrot.slane %v2775, 4
        %v2806 = vrot.slane %v2777, 4
        %v2807 = vrot.slane %v2779, 4
        %v2808 = vrot.slane %v2781, 4
        %v2809 = vrot.slane %v2783, 4
        %v2810 = vrot.slane %v2785, 4
        %v2811 = vrot.slane %v2787, 4
        %v2812 = vsel %vm306, %v2772, %v2804
        %v2813 = vsel %vm306, %v2774, %v2805
        %v2814 = vsel %vm306, %v2776, %v2806
        %v2815 = vsel %vm306, %v2778, %v2807
        %v2816 = vsel %vm306, %v2780, %v2808
        %v2817 = vsel %vm306, %v2782, %v2809
        %v2818 = vsel %vm306, %v2784, %v2810
        %v2819 = vsel %vm306, %v2786, %v2811
        %v2828 = vmul.f32 %v2735, %v2812
        %v2829 = vmul.f32 %v2735, %v2813
        %v2830 = vmul.f32 %v2735, %v2814
        %v2831 = vmul.f32 %v2735, %v2815
        %v2832 = vmul.f32 %v2735, %v2816
        %v2833 = vmul.f32 %v2735, %v2817
        %v2834 = vmul.f32 %v2735, %v2818
        %v2835 = vmul.f32 %v2735, %v2819
        %v2836 = vadd.f32 %v2828, 0.0
        %v2837 = vadd.f32 %v2829, 0.0
        %v2838 = vadd.f32 %v2830, 0.0
        %v2839 = vadd.f32 %v2831, 0.0
        %v2840 = vadd.f32 %v2832, 0.0
        %v2841 = vadd.f32 %v2833, 0.0
        %v2842 = vadd.f32 %v2834, 0.0
        %v2843 = vadd.f32 %v2835, 0.0
        %2844 = vset.pattern.permute.xlu0 1
        %2845 = vperm.xlu0 %2844, %v2726
        %v2846 = vpop.permute.xlu0 %2845
        %v2849 = vunpack.c.l.s4 839922192
        %v2850 = vunpack.c.0.s8 %v2849
        %v2851 = vperm.slane %v2846, %v2850
        %v2852 = vperm.slane %v2721, 1
        %v2853 = vperm.slane %v2721, 3
        %v2854 = vperm.slane %v2721, 5
        %v2855 = vperm.slane %v2721, 7
        %v2856 = vperm.slane %v2722, 1
        %v2857 = vperm.slane %v2722, 3
        %v2858 = vperm.slane %v2722, 5
        %v2859 = vperm.slane %v2722, 7
        %v2860 = vperm.slane %v2723, 1
        %v2861 = vperm.slane %v2723, 3
        %v2862 = vperm.slane %v2723, 5
        %v2863 = vperm.slane %v2723, 7
        %v2864 = vperm.slane %v2724, 1
        %v2865 = vperm.slane %v2724, 3
        %v2866 = vperm.slane %v2724, 5
        %v2867 = vperm.slane %v2724, 7
        %v2884 = vperm.slane %v2852, 1
        %v2885 = vperm.slane %v2853, 1
        %v2886 = vperm.slane %v2854, 1
        %v2887 = vperm.slane %v2855, 1
        %v2888 = vperm.slane %v2856, 1
        %v2889 = vperm.slane %v2857, 1
        %v2890 = vperm.slane %v2858, 1
        %v2891 = vperm.slane %v2859, 1
        %v2892 = vperm.slane %v2860, 1
        %v2893 = vperm.slane %v2861, 1
        %v2894 = vperm.slane %v2862, 1
        %v2895 = vperm.slane %v2863, 1
        %v2896 = vperm.slane %v2864, 1
        %v2897 = vperm.slane %v2865, 1
        %v2898 = vperm.slane %v2866, 1
        %v2899 = vperm.slane %v2867, 1
        %v2916 = vrot.slane %v2885, 4
        %v2917 = vrot.slane %v2887, 4
        %v2918 = vrot.slane %v2889, 4
        %v2919 = vrot.slane %v2891, 4
        %v2920 = vrot.slane %v2893, 4
        %v2921 = vrot.slane %v2895, 4
        %v2922 = vrot.slane %v2897, 4
        %v2923 = vrot.slane %v2899, 4
        %v2924 = vsel %vm306, %v2884, %v2916
        %v2925 = vsel %vm306, %v2886, %v2917
        %v2926 = vsel %vm306, %v2888, %v2918
        %v2927 = vsel %vm306, %v2890, %v2919
        %v2928 = vsel %vm306, %v2892, %v2920
        %v2929 = vsel %vm306, %v2894, %v2921
        %v2930 = vsel %vm306, %v2896, %v2922
        %v2931 = vsel %vm306, %v2898, %v2923
        %v2940 = vmul.f32 %v2851, %v2924
        %v2941 = vmul.f32 %v2851, %v2925
        %v2942 = vmul.f32 %v2851, %v2926
        %v2943 = vmul.f32 %v2851, %v2927
        %v2944 = vmul.f32 %v2851, %v2928
        %v2945 = vmul.f32 %v2851, %v2929
        %v2946 = vmul.f32 %v2851, %v2930
        %v2947 = vmul.f32 %v2851, %v2931
        %v2948 = vadd.f32 %v2836, %v2940
        %v2949 = vadd.f32 %v2837, %v2941
        %v2950 = vadd.f32 %v2838, %v2942
        %v2951 = vadd.f32 %v2839, %v2943
        %v2952 = vadd.f32 %v2840, %v2944
        %v2953 = vadd.f32 %v2841, %v2945
        %v2954 = vadd.f32 %v2842, %v2946
        %v2955 = vadd.f32 %v2843, %v2947
        %v2956 = vld [vmem:[%s2718] sm:$0xff]
        %v2957 = vld [vmem:[%s2718 + $0x8] sm:$0xff]
        %v2958 = vld [vmem:[%s2718 + $0x10] sm:$0x1]
        %v2959 = vunpack.c.l.bf16 %v2956
        %v2960 = vunpack.c.h.bf16 %v2956
        %v2961 = vunpack.c.l.bf16 %v2957
        %v2962 = vunpack.c.h.bf16 %v2957
        %v2963 = vunpack.c.l.bf16 %v2958
        %v2964 = vld [vmem:[%s459] sm:$0x3]
        %v2965 = vunpack.c.l.bf16 %v2964
        %2967 = vset.pattern.permute.xlu0 0
        %2968 = vperm.xlu0 %2967, %v2965
        %v2969 = vpop.permute.xlu0 %2968
        %v2972 = vunpack.c.l.s4 839922192
        %v2973 = vunpack.c.0.s8 %v2972
        %v2974 = vperm.slane %v2969, %v2973
        %v2980 = vperm.slane %v2959, 0
        %v2981 = vperm.slane %v2959, 2
        %v2982 = vperm.slane %v2959, 4
        %v2983 = vperm.slane %v2959, 6
        %v2984 = vperm.slane %v2960, 0
        %v2985 = vperm.slane %v2960, 2
        %v2986 = vperm.slane %v2960, 4
        %v2987 = vperm.slane %v2960, 6
        %v2988 = vperm.slane %v2961, 0
        %v2989 = vperm.slane %v2961, 2
        %v2990 = vperm.slane %v2961, 4
        %v2991 = vperm.slane %v2961, 6
        %v2992 = vperm.slane %v2962, 0
        %v2993 = vperm.slane %v2962, 2
        %v2994 = vperm.slane %v2962, 4
        %v2995 = vperm.slane %v2962, 6
        %v2996 = vperm.slane %v2963, 0
        %v3014 = vperm.slane %v2980, 0
        %v3015 = vperm.slane %v2981, 0
        %v3016 = vperm.slane %v2982, 0
        %v3017 = vperm.slane %v2983, 0
        %v3018 = vperm.slane %v2984, 0
        %v3019 = vperm.slane %v2985, 0
        %v3020 = vperm.slane %v2986, 0
        %v3021 = vperm.slane %v2987, 0
        %v3022 = vperm.slane %v2988, 0
        %v3023 = vperm.slane %v2989, 0
        %v3024 = vperm.slane %v2990, 0
        %v3025 = vperm.slane %v2991, 0
        %v3026 = vperm.slane %v2992, 0
        %v3027 = vperm.slane %v2993, 0
        %v3028 = vperm.slane %v2994, 0
        %v3029 = vperm.slane %v2995, 0
        %v3030 = vperm.slane %v2996, 0
        %v3048 = vrot.slane %v3015, 4
        %v3049 = vrot.slane %v3017, 4
        %v3050 = vrot.slane %v3019, 4
        %v3051 = vrot.slane %v3021, 4
        %v3052 = vrot.slane %v3023, 4
        %v3053 = vrot.slane %v3025, 4
        %v3054 = vrot.slane %v3027, 4
        %v3055 = vrot.slane %v3029, 4
        %v3056 = vsel %vm306, %v3014, %v3048
        %v3057 = vsel %vm306, %v3016, %v3049
        %v3058 = vsel %vm306, %v3018, %v3050
        %v3059 = vsel %vm306, %v3020, %v3051
        %v3060 = vsel %vm306, %v3022, %v3052
        %v3061 = vsel %vm306, %v3024, %v3053
        %v3062 = vsel %vm306, %v3026, %v3054
        %v3063 = vsel %vm306, %v3028, %v3055
        %3064 = vrot.lane.b32.xlu0 %v3056, 127
        %v3065 = vpop.permute.xlu0 %3064
        %3066 = vrot.lane.b32.xlu0 %v3057, 127
        %v3067 = vpop.permute.xlu0 %3066
        %3068 = vrot.lane.b32.xlu0 %v3058, 127
        %v3069 = vpop.permute.xlu0 %3068
        %3070 = vrot.lane.b32.xlu0 %v3059, 127
        %v3071 = vpop.permute.xlu0 %3070
        %3072 = vrot.lane.b32.xlu0 %v3060, 127
        %v3073 = vpop.permute.xlu0 %3072
        %3074 = vrot.lane.b32.xlu0 %v3061, 127
        %v3075 = vpop.permute.xlu0 %3074
        %3076 = vrot.lane.b32.xlu0 %v3062, 127
        %v3077 = vpop.permute.xlu0 %3076
        %3078 = vrot.lane.b32.xlu0 %v3063, 127
        %v3079 = vpop.permute.xlu0 %3078
        %3080 = vrot.lane.b32.xlu0 %v3030, 127
        %v3081 = vpop.permute.xlu0 %3080
        %v3082 = vrot.slane %v3065, 4
        %v3083 = vrot.slane %v3067, 4
        %v3084 = vrot.slane %v3069, 4
        %v3085 = vrot.slane %v3071, 4
        %v3086 = vrot.slane %v3073, 4
        %v3087 = vrot.slane %v3075, 4
        %v3088 = vrot.slane %v3077, 4
        %v3089 = vrot.slane %v3079, 4
        %v3090 = vrot.slane %v3081, 4
        %v3091 = vsel %vm306, %v3082, %v3083
        %v3092 = vsel %vm588, %v3065, %v3091
        %v3093 = vsel %vm306, %v3083, %v3084
        %v3094 = vsel %vm588, %v3067, %v3093
        %v3095 = vsel %vm306, %v3084, %v3085
        %v3096 = vsel %vm588, %v3069, %v3095
        %v3097 = vsel %vm306, %v3085, %v3086
        %v3098 = vsel %vm588, %v3071, %v3097
        %v3099 = vsel %vm306, %v3086, %v3087
        %v3100 = vsel %vm588, %v3073, %v3099
        %v3101 = vsel %vm306, %v3087, %v3088
        %v3102 = vsel %vm588, %v3075, %v3101
        %v3103 = vsel %vm306, %v3088, %v3089
        %v3104 = vsel %vm588, %v3077, %v3103
        %v3105 = vsel %vm306, %v3089, %v3090
        %v3106 = vsel %vm588, %v3079, %v3105
        %v3115 = vmul.f32 %v2974, %v3092
        %v3116 = vmul.f32 %v2974, %v3094
        %v3117 = vmul.f32 %v2974, %v3096
        %v3118 = vmul.f32 %v2974, %v3098
        %v3119 = vmul.f32 %v2974, %v3100
        %v3120 = vmul.f32 %v2974, %v3102
        %v3121 = vmul.f32 %v2974, %v3104
        %v3122 = vmul.f32 %v2974, %v3106
        %v3123 = vadd.f32 %v2948, %v3115
        %v3124 = vadd.f32 %v2949, %v3116
        %v3125 = vadd.f32 %v2950, %v3117
        %v3126 = vadd.f32 %v2951, %v3118
        %v3127 = vadd.f32 %v2952, %v3119
        %v3128 = vadd.f32 %v2953, %v3120
        %v3129 = vadd.f32 %v2954, %v3121
        %v3130 = vadd.f32 %v2955, %v3122
        %3131 = vset.pattern.permute.xlu0 1
        %3132 = vperm.xlu0 %3131, %v2965
        %v3133 = vpop.permute.xlu0 %3132
        %v3136 = vunpack.c.l.s4 839922192
        %v3137 = vunpack.c.0.s8 %v3136
        %v3138 = vperm.slane %v3133, %v3137
        %v3139 = vperm.slane %v2959, 1
        %v3140 = vperm.slane %v2959, 3
        %v3141 = vperm.slane %v2959, 5
        %v3142 = vperm.slane %v2959, 7
        %v3143 = vperm.slane %v2960, 1
        %v3144 = vperm.slane %v2960, 3
        %v3145 = vperm.slane %v2960, 5
        %v3146 = vperm.slane %v2960, 7
        %v3147 = vperm.slane %v2961, 1
        %v3148 = vperm.slane %v2961, 3
        %v3149 = vperm.slane %v2961, 5
        %v3150 = vperm.slane %v2961, 7
        %v3151 = vperm.slane %v2962, 1
        %v3152 = vperm.slane %v2962, 3
        %v3153 = vperm.slane %v2962, 5
        %v3154 = vperm.slane %v2962, 7
        %v3155 = vperm.slane %v2963, 1
        %v3173 = vperm.slane %v3139, 1
        %v3174 = vperm.slane %v3140, 1
        %v3175 = vperm.slane %v3141, 1
        %v3176 = vperm.slane %v3142, 1
        %v3177 = vperm.slane %v3143, 1
        %v3178 = vperm.slane %v3144, 1
        %v3179 = vperm.slane %v3145, 1
        %v3180 = vperm.slane %v3146, 1
        %v3181 = vperm.slane %v3147, 1
        %v3182 = vperm.slane %v3148, 1
        %v3183 = vperm.slane %v3149, 1
        %v3184 = vperm.slane %v3150, 1
        %v3185 = vperm.slane %v3151, 1
        %v3186 = vperm.slane %v3152, 1
        %v3187 = vperm.slane %v3153, 1
        %v3188 = vperm.slane %v3154, 1
        %v3189 = vperm.slane %v3155, 1
        %v3207 = vrot.slane %v3174, 4
        %v3208 = vrot.slane %v3176, 4
        %v3209 = vrot.slane %v3178, 4
        %v3210 = vrot.slane %v3180, 4
        %v3211 = vrot.slane %v3182, 4
        %v3212 = vrot.slane %v3184, 4
        %v3213 = vrot.slane %v3186, 4
        %v3214 = vrot.slane %v3188, 4
        %v3215 = vsel %vm306, %v3173, %v3207
        %v3216 = vsel %vm306, %v3175, %v3208
        %v3217 = vsel %vm306, %v3177, %v3209
        %v3218 = vsel %vm306, %v3179, %v3210
        %v3219 = vsel %vm306, %v3181, %v3211
        %v3220 = vsel %vm306, %v3183, %v3212
        %v3221 = vsel %vm306, %v3185, %v3213
        %v3222 = vsel %vm306, %v3187, %v3214
        %3223 = vrot.lane.b32.xlu0 %v3215, 127
        %v3224 = vpop.permute.xlu0 %3223
        %3225 = vrot.lane.b32.xlu0 %v3216, 127
        %v3226 = vpop.permute.xlu0 %3225
        %3227 = vrot.lane.b32.xlu0 %v3217, 127
        %v3228 = vpop.permute.xlu0 %3227
        %3229 = vrot.lane.b32.xlu0 %v3218, 127
        %v3230 = vpop.permute.xlu0 %3229
        %3231 = vrot.lane.b32.xlu0 %v3219, 127
        %v3232 = vpop.permute.xlu0 %3231
        %3233 = vrot.lane.b32.xlu0 %v3220, 127
        %v3234 = vpop.permute.xlu0 %3233
        %3235 = vrot.lane.b32.xlu0 %v3221, 127
        %v3236 = vpop.permute.xlu0 %3235
        %3237 = vrot.lane.b32.xlu0 %v3222, 127
        %v3238 = vpop.permute.xlu0 %3237
        %3239 = vrot.lane.b32.xlu0 %v3189, 127
        %v3240 = vpop.permute.xlu0 %3239
        %v3241 = vrot.slane %v3224, 4
        %v3242 = vrot.slane %v3226, 4
        %v3243 = vrot.slane %v3228, 4
        %v3244 = vrot.slane %v3230, 4
        %v3245 = vrot.slane %v3232, 4
        %v3246 = vrot.slane %v3234, 4
        %v3247 = vrot.slane %v3236, 4
        %v3248 = vrot.slane %v3238, 4
        %v3249 = vrot.slane %v3240, 4
        %v3250 = vsel %vm306, %v3241, %v3242
        %v3251 = vsel %vm588, %v3224, %v3250
        %v3252 = vsel %vm306, %v3242, %v3243
        %v3253 = vsel %vm588, %v3226, %v3252
        %v3254 = vsel %vm306, %v3243, %v3244
        %v3255 = vsel %vm588, %v3228, %v3254
        %v3256 = vsel %vm306, %v3244, %v3245
        %v3257 = vsel %vm588, %v3230, %v3256
        %v3258 = vsel %vm306, %v3245, %v3246
        %v3259 = vsel %vm588, %v3232, %v3258
        %v3260 = vsel %vm306, %v3246, %v3247
        %v3261 = vsel %vm588, %v3234, %v3260
        %v3262 = vsel %vm306, %v3247, %v3248
        %v3263 = vsel %vm588, %v3236, %v3262
        %v3264 = vsel %vm306, %v3248, %v3249
        %v3265 = vsel %vm588, %v3238, %v3264
        %v3274 = vmul.f32 %v3138, %v3251
        %v3275 = vmul.f32 %v3138, %v3253
        %v3276 = vmul.f32 %v3138, %v3255
        %v3277 = vmul.f32 %v3138, %v3257
        %v3278 = vmul.f32 %v3138, %v3259
        %v3279 = vmul.f32 %v3138, %v3261
        %v3280 = vmul.f32 %v3138, %v3263
        %v3281 = vmul.f32 %v3138, %v3265
        %v3282 = vadd.f32 %v3123, %v3274
        %v3283 = vadd.f32 %v3124, %v3275
        %v3284 = vadd.f32 %v3125, %v3276
        %v3285 = vadd.f32 %v3126, %v3277
        %v3286 = vadd.f32 %v3127, %v3278
        %v3287 = vadd.f32 %v3128, %v3279
        %v3288 = vadd.f32 %v3129, %v3280
        %v3289 = vadd.f32 %v3130, %v3281
        %v3290 = vld [vmem:[%s787] sm:$0x3]
        %v3291 = vunpack.c.l.bf16 %v3290
        %3293 = vset.pattern.permute.xlu0 0
        %3294 = vperm.xlu0 %3293, %v3291
        %v3295 = vpop.permute.xlu0 %3294
        %v3298 = vunpack.c.l.s4 839922192
        %v3299 = vunpack.c.0.s8 %v3298
        %v3300 = vperm.slane %v3295, %v3299
        %3301 = vrot.lane.b32.xlu0 %v3056, 126
        %v3302 = vpop.permute.xlu0 %3301
        %3303 = vrot.lane.b32.xlu0 %v3057, 126
        %v3304 = vpop.permute.xlu0 %3303
        %3305 = vrot.lane.b32.xlu0 %v3058, 126
        %v3306 = vpop.permute.xlu0 %3305
        %3307 = vrot.lane.b32.xlu0 %v3059, 126
        %v3308 = vpop.permute.xlu0 %3307
        %3309 = vrot.lane.b32.xlu0 %v3060, 126
        %v3310 = vpop.permute.xlu0 %3309
        %3311 = vrot.lane.b32.xlu0 %v3061, 126
        %v3312 = vpop.permute.xlu0 %3311
        %3313 = vrot.lane.b32.xlu0 %v3062, 126
        %v3314 = vpop.permute.xlu0 %3313
        %3315 = vrot.lane.b32.xlu0 %v3063, 126
        %v3316 = vpop.permute.xlu0 %3315
        %3317 = vrot.lane.b32.xlu0 %v3030, 126
        %v3318 = vpop.permute.xlu0 %3317
        %v3319 = vrot.slane %v3302, 4
        %v3320 = vrot.slane %v3304, 4
        %v3321 = vrot.slane %v3306, 4
        %v3322 = vrot.slane %v3308, 4
        %v3323 = vrot.slane %v3310, 4
        %v3324 = vrot.slane %v3312, 4
        %v3325 = vrot.slane %v3314, 4
        %v3326 = vrot.slane %v3316, 4
        %v3327 = vrot.slane %v3318, 4
        %v3328 = vsel %vm306, %v3319, %v3320
        %v3329 = vsel %vm827, %v3302, %v3328
        %v3330 = vsel %vm306, %v3320, %v3321
        %v3331 = vsel %vm827, %v3304, %v3330
        %v3332 = vsel %vm306, %v3321, %v3322
        %v3333 = vsel %vm827, %v3306, %v3332
        %v3334 = vsel %vm306, %v3322, %v3323
        %v3335 = vsel %vm827, %v3308, %v3334
        %v3336 = vsel %vm306, %v3323, %v3324
        %v3337 = vsel %vm827, %v3310, %v3336
        %v3338 = vsel %vm306, %v3324, %v3325
        %v3339 = vsel %vm827, %v3312, %v3338
        %v3340 = vsel %vm306, %v3325, %v3326
        %v3341 = vsel %vm827, %v3314, %v3340
        %v3342 = vsel %vm306, %v3326, %v3327
        %v3343 = vsel %vm827, %v3316, %v3342
        %v3352 = vmul.f32 %v3300, %v3329
        %v3353 = vmul.f32 %v3300, %v3331
        %v3354 = vmul.f32 %v3300, %v3333
        %v3355 = vmul.f32 %v3300, %v3335
        %v3356 = vmul.f32 %v3300, %v3337
        %v3357 = vmul.f32 %v3300, %v3339
        %v3358 = vmul.f32 %v3300, %v3341
        %v3359 = vmul.f32 %v3300, %v3343
        %v3360 = vadd.f32 %v3282, %v3352
        %v3361 = vadd.f32 %v3283, %v3353
        %v3362 = vadd.f32 %v3284, %v3354
        %v3363 = vadd.f32 %v3285, %v3355
        %v3364 = vadd.f32 %v3286, %v3356
        %v3365 = vadd.f32 %v3287, %v3357
        %v3366 = vadd.f32 %v3288, %v3358
        %v3367 = vadd.f32 %v3289, %v3359
        %3368 = vset.pattern.permute.xlu0 1
        %3369 = vperm.xlu0 %3368, %v3291
        %v3370 = vpop.permute.xlu0 %3369
        %v3373 = vunpack.c.l.s4 839922192
        %v3374 = vunpack.c.0.s8 %v3373
        %v3375 = vperm.slane %v3370, %v3374
        %3376 = vrot.lane.b32.xlu0 %v3215, 126
        %v3377 = vpop.permute.xlu0 %3376
        %3378 = vrot.lane.b32.xlu0 %v3216, 126
        %v3379 = vpop.permute.xlu0 %3378
        %3380 = vrot.lane.b32.xlu0 %v3217, 126
        %v3381 = vpop.permute.xlu0 %3380
        %3382 = vrot.lane.b32.xlu0 %v3218, 126
        %v3383 = vpop.permute.xlu0 %3382
        %3384 = vrot.lane.b32.xlu0 %v3219, 126
        %v3385 = vpop.permute.xlu0 %3384
        %3386 = vrot.lane.b32.xlu0 %v3220, 126
        %v3387 = vpop.permute.xlu0 %3386
        %3388 = vrot.lane.b32.xlu0 %v3221, 126
        %v3389 = vpop.permute.xlu0 %3388
        %3390 = vrot.lane.b32.xlu0 %v3222, 126
        %v3391 = vpop.permute.xlu0 %3390
        %3392 = vrot.lane.b32.xlu0 %v3189, 126
        %v3393 = vpop.permute.xlu0 %3392
        %v3394 = vrot.slane %v3377, 4
        %v3395 = vrot.slane %v3379, 4
        %v3396 = vrot.slane %v3381, 4
        %v3397 = vrot.slane %v3383, 4
        %v3398 = vrot.slane %v3385, 4
        %v3399 = vrot.slane %v3387, 4
        %v3400 = vrot.slane %v3389, 4
        %v3401 = vrot.slane %v3391, 4
        %v3402 = vrot.slane %v3393, 4
        %v3403 = vsel %vm306, %v3394, %v3395
        %v3404 = vsel %vm827, %v3377, %v3403
        %v3405 = vsel %vm306, %v3395, %v3396
        %v3406 = vsel %vm827, %v3379, %v3405
        %v3407 = vsel %vm306, %v3396, %v3397
        %v3408 = vsel %vm827, %v3381, %v3407
        %v3409 = vsel %vm306, %v3397, %v3398
        %v3410 = vsel %vm827, %v3383, %v3409
        %v3411 = vsel %vm306, %v3398, %v3399
        %v3412 = vsel %vm827, %v3385, %v3411
        %v3413 = vsel %vm306, %v3399, %v3400
        %v3414 = vsel %vm827, %v3387, %v3413
        %v3415 = vsel %vm306, %v3400, %v3401
        %v3416 = vsel %vm827, %v3389, %v3415
        %v3417 = vsel %vm306, %v3401, %v3402
        %v3418 = vsel %vm827, %v3391, %v3417
        %v3427 = vmul.f32 %v3375, %v3404
        %v3428 = vmul.f32 %v3375, %v3406
        %v3429 = vmul.f32 %v3375, %v3408
        %v3430 = vmul.f32 %v3375, %v3410
        %v3431 = vmul.f32 %v3375, %v3412
        %v3432 = vmul.f32 %v3375, %v3414
        %v3433 = vmul.f32 %v3375, %v3416
        %v3434 = vmul.f32 %v3375, %v3418
        %v3435 = vadd.f32 %v3360, %v3427
        %v3436 = vadd.f32 %v3361, %v3428
        %v3437 = vadd.f32 %v3362, %v3429
        %v3438 = vadd.f32 %v3363, %v3430
        %v3439 = vadd.f32 %v3364, %v3431
        %v3440 = vadd.f32 %v3365, %v3432
        %v3441 = vadd.f32 %v3366, %v3433
        %v3442 = vadd.f32 %v3367, %v3434
        %v3443 = vld [vmem:[%s2718 + $0x1] sm:$0xff]
        %v3444 = vld [vmem:[%s2718 + $0x9] sm:$0xff]
        %v3445 = vunpack.c.l.bf16 %v3443
        %v3446 = vunpack.c.h.bf16 %v3443
        %v3447 = vunpack.c.l.bf16 %v3444
        %v3448 = vunpack.c.h.bf16 %v3444
        %v3449 = vld [vmem:[%s948] sm:$0x3]
        %v3450 = vunpack.c.l.bf16 %v3449
        %3452 = vset.pattern.permute.xlu0 0
        %3453 = vperm.xlu0 %3452, %v3450
        %v3454 = vpop.permute.xlu0 %3453
        %v3457 = vunpack.c.l.s4 839922192
        %v3458 = vunpack.c.0.s8 %v3457
        %v3459 = vperm.slane %v3454, %v3458
        %v3464 = vperm.slane %v3445, 0
        %v3465 = vperm.slane %v3445, 2
        %v3466 = vperm.slane %v3445, 4
        %v3467 = vperm.slane %v3445, 6
        %v3468 = vperm.slane %v3446, 0
        %v3469 = vperm.slane %v3446, 2
        %v3470 = vperm.slane %v3446, 4
        %v3471 = vperm.slane %v3446, 6
        %v3472 = vperm.slane %v3447, 0
        %v3473 = vperm.slane %v3447, 2
        %v3474 = vperm.slane %v3447, 4
        %v3475 = vperm.slane %v3447, 6
        %v3476 = vperm.slane %v3448, 0
        %v3477 = vperm.slane %v3448, 2
        %v3478 = vperm.slane %v3448, 4
        %v3479 = vperm.slane %v3448, 6
        %v3496 = vperm.slane %v3464, 0
        %v3497 = vperm.slane %v3465, 0
        %v3498 = vperm.slane %v3466, 0
        %v3499 = vperm.slane %v3467, 0
        %v3500 = vperm.slane %v3468, 0
        %v3501 = vperm.slane %v3469, 0
        %v3502 = vperm.slane %v3470, 0
        %v3503 = vperm.slane %v3471, 0
        %v3504 = vperm.slane %v3472, 0
        %v3505 = vperm.slane %v3473, 0
        %v3506 = vperm.slane %v3474, 0
        %v3507 = vperm.slane %v3475, 0
        %v3508 = vperm.slane %v3476, 0
        %v3509 = vperm.slane %v3477, 0
        %v3510 = vperm.slane %v3478, 0
        %v3511 = vperm.slane %v3479, 0
        %v3528 = vrot.slane %v3497, 4
        %v3529 = vrot.slane %v3499, 4
        %v3530 = vrot.slane %v3501, 4
        %v3531 = vrot.slane %v3503, 4
        %v3532 = vrot.slane %v3505, 4
        %v3533 = vrot.slane %v3507, 4
        %v3534 = vrot.slane %v3509, 4
        %v3535 = vrot.slane %v3511, 4
        %v3536 = vsel %vm306, %v3496, %v3528
        %v3537 = vsel %vm306, %v3498, %v3529
        %v3538 = vsel %vm306, %v3500, %v3530
        %v3539 = vsel %vm306, %v3502, %v3531
        %v3540 = vsel %vm306, %v3504, %v3532
        %v3541 = vsel %vm306, %v3506, %v3533
        %v3542 = vsel %vm306, %v3508, %v3534
        %v3543 = vsel %vm306, %v3510, %v3535
        %v3552 = vmul.f32 %v3459, %v3536
        %v3553 = vmul.f32 %v3459, %v3537
        %v3554 = vmul.f32 %v3459, %v3538
        %v3555 = vmul.f32 %v3459, %v3539
        %v3556 = vmul.f32 %v3459, %v3540
        %v3557 = vmul.f32 %v3459, %v3541
        %v3558 = vmul.f32 %v3459, %v3542
        %v3559 = vmul.f32 %v3459, %v3543
        %v3560 = vadd.f32 %v3435, %v3552
        %v3561 = vadd.f32 %v3436, %v3553
        %v3562 = vadd.f32 %v3437, %v3554
        %v3563 = vadd.f32 %v3438, %v3555
        %v3564 = vadd.f32 %v3439, %v3556
        %v3565 = vadd.f32 %v3440, %v3557
        %v3566 = vadd.f32 %v3441, %v3558
        %v3567 = vadd.f32 %v3442, %v3559
        %3568 = vset.pattern.permute.xlu0 1
        %3569 = vperm.xlu0 %3568, %v3450
        %v3570 = vpop.permute.xlu0 %3569
        %v3573 = vunpack.c.l.s4 839922192
        %v3574 = vunpack.c.0.s8 %v3573
        %v3575 = vperm.slane %v3570, %v3574
        %v3576 = vperm.slane %v3445, 1
        %v3577 = vperm.slane %v3445, 3
        %v3578 = vperm.slane %v3445, 5
        %v3579 = vperm.slane %v3445, 7
        %v3580 = vperm.slane %v3446, 1
        %v3581 = vperm.slane %v3446, 3
        %v3582 = vperm.slane %v3446, 5
        %v3583 = vperm.slane %v3446, 7
        %v3584 = vperm.slane %v3447, 1
        %v3585 = vperm.slane %v3447, 3
        %v3586 = vperm.slane %v3447, 5
        %v3587 = vperm.slane %v3447, 7
        %v3588 = vperm.slane %v3448, 1
        %v3589 = vperm.slane %v3448, 3
        %v3590 = vperm.slane %v3448, 5
        %v3591 = vperm.slane %v3448, 7
        %v3608 = vperm.slane %v3576, 1
        %v3609 = vperm.slane %v3577, 1
        %v3610 = vperm.slane %v3578, 1
        %v3611 = vperm.slane %v3579, 1
        %v3612 = vperm.slane %v3580, 1
        %v3613 = vperm.slane %v3581, 1
        %v3614 = vperm.slane %v3582, 1
        %v3615 = vperm.slane %v3583, 1
        %v3616 = vperm.slane %v3584, 1
        %v3617 = vperm.slane %v3585, 1
        %v3618 = vperm.slane %v3586, 1
        %v3619 = vperm.slane %v3587, 1
        %v3620 = vperm.slane %v3588, 1
        %v3621 = vperm.slane %v3589, 1
        %v3622 = vperm.slane %v3590, 1
        %v3623 = vperm.slane %v3591, 1
        %v3640 = vrot.slane %v3609, 4
        %v3641 = vrot.slane %v3611, 4
        %v3642 = vrot.slane %v3613, 4
        %v3643 = vrot.slane %v3615, 4
        %v3644 = vrot.slane %v3617, 4
        %v3645 = vrot.slane %v3619, 4
        %v3646 = vrot.slane %v3621, 4
        %v3647 = vrot.slane %v3623, 4
        %v3648 = vsel %vm306, %v3608, %v3640
        %v3649 = vsel %vm306, %v3610, %v3641
        %v3650 = vsel %vm306, %v3612, %v3642
        %v3651 = vsel %vm306, %v3614, %v3643
        %v3652 = vsel %vm306, %v3616, %v3644
        %v3653 = vsel %vm306, %v3618, %v3645
        %v3654 = vsel %vm306, %v3620, %v3646
        %v3655 = vsel %vm306, %v3622, %v3647
        %v3664 = vmul.f32 %v3575, %v3648
        %v3665 = vmul.f32 %v3575, %v3649
        %v3666 = vmul.f32 %v3575, %v3650
        %v3667 = vmul.f32 %v3575, %v3651
        %v3668 = vmul.f32 %v3575, %v3652
        %v3669 = vmul.f32 %v3575, %v3653
        %v3670 = vmul.f32 %v3575, %v3654
        %v3671 = vmul.f32 %v3575, %v3655
        %v3672 = vadd.f32 %v3560, %v3664
        %v3673 = vadd.f32 %v3561, %v3665
        %v3674 = vadd.f32 %v3562, %v3666
        %v3675 = vadd.f32 %v3563, %v3667
        %v3676 = vadd.f32 %v3564, %v3668
        %v3677 = vadd.f32 %v3565, %v3669
        %v3678 = vadd.f32 %v3566, %v3670
        %v3679 = vadd.f32 %v3567, %v3671
        %v3680 = vld [vmem:[%s2718 + $0x1] sm:$0xff]
        %v3681 = vld [vmem:[%s2718 + $0x9] sm:$0xff]
        %v3682 = vld [vmem:[%s2718 + $0x11] sm:$0x1]
        %v3683 = vunpack.c.l.bf16 %v3680
        %v3684 = vunpack.c.h.bf16 %v3680
        %v3685 = vunpack.c.l.bf16 %v3681
        %v3686 = vunpack.c.h.bf16 %v3681
        %v3687 = vunpack.c.l.bf16 %v3682
        %v3688 = vld [vmem:[%s1188] sm:$0x3]
        %v3689 = vunpack.c.l.bf16 %v3688
        %3691 = vset.pattern.permute.xlu0 0
        %3692 = vperm.xlu0 %3691, %v3689
        %v3693 = vpop.permute.xlu0 %3692
        %v3696 = vunpack.c.l.s4 839922192
        %v3697 = vunpack.c.0.s8 %v3696
        %v3698 = vperm.slane %v3693, %v3697
        %v3704 = vperm.slane %v3683, 0
        %v3705 = vperm.slane %v3683, 2
        %v3706 = vperm.slane %v3683, 4
        %v3707 = vperm.slane %v3683, 6
        %v3708 = vperm.slane %v3684, 0
        %v3709 = vperm.slane %v3684, 2
        %v3710 = vperm.slane %v3684, 4
        %v3711 = vperm.slane %v3684, 6
        %v3712 = vperm.slane %v3685, 0
        %v3713 = vperm.slane %v3685, 2
        %v3714 = vperm.slane %v3685, 4
        %v3715 = vperm.slane %v3685, 6
        %v3716 = vperm.slane %v3686, 0
        %v3717 = vperm.slane %v3686, 2
        %v3718 = vperm.slane %v3686, 4
        %v3719 = vperm.slane %v3686, 6
        %v3720 = vperm.slane %v3687, 0
        %v3738 = vperm.slane %v3704, 0
        %v3739 = vperm.slane %v3705, 0
        %v3740 = vperm.slane %v3706, 0
        %v3741 = vperm.slane %v3707, 0
        %v3742 = vperm.slane %v3708, 0
        %v3743 = vperm.slane %v3709, 0
        %v3744 = vperm.slane %v3710, 0
        %v3745 = vperm.slane %v3711, 0
        %v3746 = vperm.slane %v3712, 0
        %v3747 = vperm.slane %v3713, 0
        %v3748 = vperm.slane %v3714, 0
        %v3749 = vperm.slane %v3715, 0
        %v3750 = vperm.slane %v3716, 0
        %v3751 = vperm.slane %v3717, 0
        %v3752 = vperm.slane %v3718, 0
        %v3753 = vperm.slane %v3719, 0
        %v3754 = vperm.slane %v3720, 0
        %v3772 = vrot.slane %v3739, 4
        %v3773 = vrot.slane %v3741, 4
        %v3774 = vrot.slane %v3743, 4
        %v3775 = vrot.slane %v3745, 4
        %v3776 = vrot.slane %v3747, 4
        %v3777 = vrot.slane %v3749, 4
        %v3778 = vrot.slane %v3751, 4
        %v3779 = vrot.slane %v3753, 4
        %v3780 = vsel %vm306, %v3738, %v3772
        %v3781 = vsel %vm306, %v3740, %v3773
        %v3782 = vsel %vm306, %v3742, %v3774
        %v3783 = vsel %vm306, %v3744, %v3775
        %v3784 = vsel %vm306, %v3746, %v3776
        %v3785 = vsel %vm306, %v3748, %v3777
        %v3786 = vsel %vm306, %v3750, %v3778
        %v3787 = vsel %vm306, %v3752, %v3779
        %3788 = vrot.lane.b32.xlu0 %v3780, 127
        %v3789 = vpop.permute.xlu0 %3788
        %3790 = vrot.lane.b32.xlu0 %v3781, 127
        %v3791 = vpop.permute.xlu0 %3790
        %3792 = vrot.lane.b32.xlu0 %v3782, 127
        %v3793 = vpop.permute.xlu0 %3792
        %3794 = vrot.lane.b32.xlu0 %v3783, 127
        %v3795 = vpop.permute.xlu0 %3794
        %3796 = vrot.lane.b32.xlu0 %v3784, 127
        %v3797 = vpop.permute.xlu0 %3796
        %3798 = vrot.lane.b32.xlu0 %v3785, 127
        %v3799 = vpop.permute.xlu0 %3798
        %3800 = vrot.lane.b32.xlu0 %v3786, 127
        %v3801 = vpop.permute.xlu0 %3800
        %3802 = vrot.lane.b32.xlu0 %v3787, 127
        %v3803 = vpop.permute.xlu0 %3802
        %3804 = vrot.lane.b32.xlu0 %v3754, 127
        %v3805 = vpop.permute.xlu0 %3804
        %v3806 = vrot.slane %v3789, 4
        %v3807 = vrot.slane %v3791, 4
        %v3808 = vrot.slane %v3793, 4
        %v3809 = vrot.slane %v3795, 4
        %v3810 = vrot.slane %v3797, 4
        %v3811 = vrot.slane %v3799, 4
        %v3812 = vrot.slane %v3801, 4
        %v3813 = vrot.slane %v3803, 4
        %v3814 = vrot.slane %v3805, 4
        %v3815 = vsel %vm306, %v3806, %v3807
        %v3816 = vsel %vm588, %v3789, %v3815
        %v3817 = vsel %vm306, %v3807, %v3808
        %v3818 = vsel %vm588, %v3791, %v3817
        %v3819 = vsel %vm306, %v3808, %v3809
        %v3820 = vsel %vm588, %v3793, %v3819
        %v3821 = vsel %vm306, %v3809, %v3810
        %v3822 = vsel %vm588, %v3795, %v3821
        %v3823 = vsel %vm306, %v3810, %v3811
        %v3824 = vsel %vm588, %v3797, %v3823
        %v3825 = vsel %vm306, %v3811, %v3812
        %v3826 = vsel %vm588, %v3799, %v3825
        %v3827 = vsel %vm306, %v3812, %v3813
        %v3828 = vsel %vm588, %v3801, %v3827
        %v3829 = vsel %vm306, %v3813, %v3814
        %v3830 = vsel %vm588, %v3803, %v3829
        %v3839 = vmul.f32 %v3698, %v3816
        %v3840 = vmul.f32 %v3698, %v3818
        %v3841 = vmul.f32 %v3698, %v3820
        %v3842 = vmul.f32 %v3698, %v3822
        %v3843 = vmul.f32 %v3698, %v3824
        %v3844 = vmul.f32 %v3698, %v3826
        %v3845 = vmul.f32 %v3698, %v3828
        %v3846 = vmul.f32 %v3698, %v3830
        %v3847 = vadd.f32 %v3672, %v3839
        %v3848 = vadd.f32 %v3673, %v3840
        %v3849 = vadd.f32 %v3674, %v3841
        %v3850 = vadd.f32 %v3675, %v3842
        %v3851 = vadd.f32 %v3676, %v3843
        %v3852 = vadd.f32 %v3677, %v3844
        %v3853 = vadd.f32 %v3678, %v3845
        %v3854 = vadd.f32 %v3679, %v3846
        %3855 = vset.pattern.permute.xlu0 1
        %3856 = vperm.xlu0 %3855, %v3689
        %v3857 = vpop.permute.xlu0 %3856
        %v3860 = vunpack.c.l.s4 839922192
        %v3861 = vunpack.c.0.s8 %v3860
        %v3862 = vperm.slane %v3857, %v3861
        %v3863 = vperm.slane %v3683, 1
        %v3864 = vperm.slane %v3683, 3
        %v3865 = vperm.slane %v3683, 5
        %v3866 = vperm.slane %v3683, 7
        %v3867 = vperm.slane %v3684, 1
        %v3868 = vperm.slane %v3684, 3
        %v3869 = vperm.slane %v3684, 5
        %v3870 = vperm.slane %v3684, 7
        %v3871 = vperm.slane %v3685, 1
        %v3872 = vperm.slane %v3685, 3
        %v3873 = vperm.slane %v3685, 5
        %v3874 = vperm.slane %v3685, 7
        %v3875 = vperm.slane %v3686, 1
        %v3876 = vperm.slane %v3686, 3
        %v3877 = vperm.slane %v3686, 5
        %v3878 = vperm.slane %v3686, 7
        %v3879 = vperm.slane %v3687, 1
        %v3897 = vperm.slane %v3863, 1
        %v3898 = vperm.slane %v3864, 1
        %v3899 = vperm.slane %v3865, 1
        %v3900 = vperm.slane %v3866, 1
        %v3901 = vperm.slane %v3867, 1
        %v3902 = vperm.slane %v3868, 1
        %v3903 = vperm.slane %v3869, 1
        %v3904 = vperm.slane %v3870, 1
        %v3905 = vperm.slane %v3871, 1
        %v3906 = vperm.slane %v3872, 1
        %v3907 = vperm.slane %v3873, 1
        %v3908 = vperm.slane %v3874, 1
        %v3909 = vperm.slane %v3875, 1
        %v3910 = vperm.slane %v3876, 1
        %v3911 = vperm.slane %v3877, 1
        %v3912 = vperm.slane %v3878, 1
        %v3913 = vperm.slane %v3879, 1
        %v3931 = vrot.slane %v3898, 4
        %v3932 = vrot.slane %v3900, 4
        %v3933 = vrot.slane %v3902, 4
        %v3934 = vrot.slane %v3904, 4
        %v3935 = vrot.slane %v3906, 4
        %v3936 = vrot.slane %v3908, 4
        %v3937 = vrot.slane %v3910, 4
        %v3938 = vrot.slane %v3912, 4
        %v3939 = vsel %vm306, %v3897, %v3931
        %v3940 = vsel %vm306, %v3899, %v3932
        %v3941 = vsel %vm306, %v3901, %v3933
        %v3942 = vsel %vm306, %v3903, %v3934
        %v3943 = vsel %vm306, %v3905, %v3935
        %v3944 = vsel %vm306, %v3907, %v3936
        %v3945 = vsel %vm306, %v3909, %v3937
        %v3946 = vsel %vm306, %v3911, %v3938
        %3947 = vrot.lane.b32.xlu0 %v3939, 127
        %v3948 = vpop.permute.xlu0 %3947
        %3949 = vrot.lane.b32.xlu0 %v3940, 127
        %v3950 = vpop.permute.xlu0 %3949
        %3951 = vrot.lane.b32.xlu0 %v3941, 127
        %v3952 = vpop.permute.xlu0 %3951
        %3953 = vrot.lane.b32.xlu0 %v3942, 127
        %v3954 = vpop.permute.xlu0 %3953
        %3955 = vrot.lane.b32.xlu0 %v3943, 127
        %v3956 = vpop.permute.xlu0 %3955
        %3957 = vrot.lane.b32.xlu0 %v3944, 127
        %v3958 = vpop.permute.xlu0 %3957
        %3959 = vrot.lane.b32.xlu0 %v3945, 127
        %v3960 = vpop.permute.xlu0 %3959
        %3961 = vrot.lane.b32.xlu0 %v3946, 127
        %v3962 = vpop.permute.xlu0 %3961
        %3963 = vrot.lane.b32.xlu0 %v3913, 127
        %v3964 = vpop.permute.xlu0 %3963
        %v3965 = vrot.slane %v3948, 4
        %v3966 = vrot.slane %v3950, 4
        %v3967 = vrot.slane %v3952, 4
        %v3968 = vrot.slane %v3954, 4
        %v3969 = vrot.slane %v3956, 4
        %v3970 = vrot.slane %v3958, 4
        %v3971 = vrot.slane %v3960, 4
        %v3972 = vrot.slane %v3962, 4
        %v3973 = vrot.slane %v3964, 4
        %v3974 = vsel %vm306, %v3965, %v3966
        %v3975 = vsel %vm588, %v3948, %v3974
        %v3976 = vsel %vm306, %v3966, %v3967
        %v3977 = vsel %vm588, %v3950, %v3976
        %v3978 = vsel %vm306, %v3967, %v3968
        %v3979 = vsel %vm588, %v3952, %v3978
        %v3980 = vsel %vm306, %v3968, %v3969
        %v3981 = vsel %vm588, %v3954, %v3980
        %v3982 = vsel %vm306, %v3969, %v3970
        %v3983 = vsel %vm588, %v3956, %v3982
        %v3984 = vsel %vm306, %v3970, %v3971
        %v3985 = vsel %vm588, %v3958, %v3984
        %v3986 = vsel %vm306, %v3971, %v3972
        %v3987 = vsel %vm588, %v3960, %v3986
        %v3988 = vsel %vm306, %v3972, %v3973
        %v3989 = vsel %vm588, %v3962, %v3988
        %v3998 = vmul.f32 %v3862, %v3975
        %v3999 = vmul.f32 %v3862, %v3977
        %v4000 = vmul.f32 %v3862, %v3979
        %v4001 = vmul.f32 %v3862, %v3981
        %v4002 = vmul.f32 %v3862, %v3983
        %v4003 = vmul.f32 %v3862, %v3985
        %v4004 = vmul.f32 %v3862, %v3987
        %v4005 = vmul.f32 %v3862, %v3989
        %v4006 = vadd.f32 %v3847, %v3998
        %v4007 = vadd.f32 %v3848, %v3999
        %v4008 = vadd.f32 %v3849, %v4000
        %v4009 = vadd.f32 %v3850, %v4001
        %v4010 = vadd.f32 %v3851, %v4002
        %v4011 = vadd.f32 %v3852, %v4003
        %v4012 = vadd.f32 %v3853, %v4004
        %v4013 = vadd.f32 %v3854, %v4005
        %v4014 = vld [vmem:[%s1515] sm:$0x3]
        %v4015 = vunpack.c.l.bf16 %v4014
        %4017 = vset.pattern.permute.xlu0 0
        %4018 = vperm.xlu0 %4017, %v4015
        %v4019 = vpop.permute.xlu0 %4018
        %v4022 = vunpack.c.l.s4 839922192
        %v4023 = vunpack.c.0.s8 %v4022
        %v4024 = vperm.slane %v4019, %v4023
        %4025 = vrot.lane.b32.xlu0 %v3780, 126
        %v4026 = vpop.permute.xlu0 %4025
        %4027 = vrot.lane.b32.xlu0 %v3781, 126
        %v4028 = vpop.permute.xlu0 %4027
        %4029 = vrot.lane.b32.xlu0 %v3782, 126
        %v4030 = vpop.permute.xlu0 %4029
        %4031 = vrot.lane.b32.xlu0 %v3783, 126
        %v4032 = vpop.permute.xlu0 %4031
        %4033 = vrot.lane.b32.xlu0 %v3784, 126
        %v4034 = vpop.permute.xlu0 %4033
        %4035 = vrot.lane.b32.xlu0 %v3785, 126
        %v4036 = vpop.permute.xlu0 %4035
        %4037 = vrot.lane.b32.xlu0 %v3786, 126
        %v4038 = vpop.permute.xlu0 %4037
        %4039 = vrot.lane.b32.xlu0 %v3787, 126
        %v4040 = vpop.permute.xlu0 %4039
        %4041 = vrot.lane.b32.xlu0 %v3754, 126
        %v4042 = vpop.permute.xlu0 %4041
        %v4043 = vrot.slane %v4026, 4
        %v4044 = vrot.slane %v4028, 4
        %v4045 = vrot.slane %v4030, 4
        %v4046 = vrot.slane %v4032, 4
        %v4047 = vrot.slane %v4034, 4
        %v4048 = vrot.slane %v4036, 4
        %v4049 = vrot.slane %v4038, 4
        %v4050 = vrot.slane %v4040, 4
        %v4051 = vrot.slane %v4042, 4
        %v4052 = vsel %vm306, %v4043, %v4044
        %v4053 = vsel %vm827, %v4026, %v4052
        %v4054 = vsel %vm306, %v4044, %v4045
        %v4055 = vsel %vm827, %v4028, %v4054
        %v4056 = vsel %vm306, %v4045, %v4046
        %v4057 = vsel %vm827, %v4030, %v4056
        %v4058 = vsel %vm306, %v4046, %v4047
        %v4059 = vsel %vm827, %v4032, %v4058
        %v4060 = vsel %vm306, %v4047, %v4048
        %v4061 = vsel %vm827, %v4034, %v4060
        %v4062 = vsel %vm306, %v4048, %v4049
        %v4063 = vsel %vm827, %v4036, %v4062
        %v4064 = vsel %vm306, %v4049, %v4050
        %v4065 = vsel %vm827, %v4038, %v4064
        %v4066 = vsel %vm306, %v4050, %v4051
        %v4067 = vsel %vm827, %v4040, %v4066
        %v4076 = vmul.f32 %v4024, %v4053
        %v4077 = vmul.f32 %v4024, %v4055
        %v4078 = vmul.f32 %v4024, %v4057
        %v4079 = vmul.f32 %v4024, %v4059
        %v4080 = vmul.f32 %v4024, %v4061
        %v4081 = vmul.f32 %v4024, %v4063
        %v4082 = vmul.f32 %v4024, %v4065
        %v4083 = vmul.f32 %v4024, %v4067
        %v4084 = vadd.f32 %v4006, %v4076
        %v4085 = vadd.f32 %v4007, %v4077
        %v4086 = vadd.f32 %v4008, %v4078
        %v4087 = vadd.f32 %v4009, %v4079
        %v4088 = vadd.f32 %v4010, %v4080
        %v4089 = vadd.f32 %v4011, %v4081
        %v4090 = vadd.f32 %v4012, %v4082
        %v4091 = vadd.f32 %v4013, %v4083
        %4092 = vset.pattern.permute.xlu0 1
        %4093 = vperm.xlu0 %4092, %v4015
        %v4094 = vpop.permute.xlu0 %4093
        %v4097 = vunpack.c.l.s4 839922192
        %v4098 = vunpack.c.0.s8 %v4097
        %v4099 = vperm.slane %v4094, %v4098
        %4100 = vrot.lane.b32.xlu0 %v3939, 126
        %v4101 = vpop.permute.xlu0 %4100
        %4102 = vrot.lane.b32.xlu0 %v3940, 126
        %v4103 = vpop.permute.xlu0 %4102
        %4104 = vrot.lane.b32.xlu0 %v3941, 126
        %v4105 = vpop.permute.xlu0 %4104
        %4106 = vrot.lane.b32.xlu0 %v3942, 126
        %v4107 = vpop.permute.xlu0 %4106
        %4108 = vrot.lane.b32.xlu0 %v3943, 126
        %v4109 = vpop.permute.xlu0 %4108
        %4110 = vrot.lane.b32.xlu0 %v3944, 126
        %v4111 = vpop.permute.xlu0 %4110
        %4112 = vrot.lane.b32.xlu0 %v3945, 126
        %v4113 = vpop.permute.xlu0 %4112
        %4114 = vrot.lane.b32.xlu0 %v3946, 126
        %v4115 = vpop.permute.xlu0 %4114
        %4116 = vrot.lane.b32.xlu0 %v3913, 126
        %v4117 = vpop.permute.xlu0 %4116
        %v4118 = vrot.slane %v4101, 4
        %v4119 = vrot.slane %v4103, 4
        %v4120 = vrot.slane %v4105, 4
        %v4121 = vrot.slane %v4107, 4
        %v4122 = vrot.slane %v4109, 4
        %v4123 = vrot.slane %v4111, 4
        %v4124 = vrot.slane %v4113, 4
        %v4125 = vrot.slane %v4115, 4
        %v4126 = vrot.slane %v4117, 4
        %v4127 = vsel %vm306, %v4118, %v4119
        %v4128 = vsel %vm827, %v4101, %v4127
        %v4129 = vsel %vm306, %v4119, %v4120
        %v4130 = vsel %vm827, %v4103, %v4129
        %v4131 = vsel %vm306, %v4120, %v4121
        %v4132 = vsel %vm827, %v4105, %v4131
        %v4133 = vsel %vm306, %v4121, %v4122
        %v4134 = vsel %vm827, %v4107, %v4133
        %v4135 = vsel %vm306, %v4122, %v4123
        %v4136 = vsel %vm827, %v4109, %v4135
        %v4137 = vsel %vm306, %v4123, %v4124
        %v4138 = vsel %vm827, %v4111, %v4137
        %v4139 = vsel %vm306, %v4124, %v4125
        %v4140 = vsel %vm827, %v4113, %v4139
        %v4141 = vsel %vm306, %v4125, %v4126
        %v4142 = vsel %vm827, %v4115, %v4141
        %v4151 = vmul.f32 %v4099, %v4128
        %v4152 = vmul.f32 %v4099, %v4130
        %v4153 = vmul.f32 %v4099, %v4132
        %v4154 = vmul.f32 %v4099, %v4134
        %v4155 = vmul.f32 %v4099, %v4136
        %v4156 = vmul.f32 %v4099, %v4138
        %v4157 = vmul.f32 %v4099, %v4140
        %v4158 = vmul.f32 %v4099, %v4142
        %v4159 = vadd.f32 %v4084, %v4151
        %v4160 = vadd.f32 %v4085, %v4152
        %v4161 = vadd.f32 %v4086, %v4153
        %v4162 = vadd.f32 %v4087, %v4154
        %v4163 = vadd.f32 %v4088, %v4155
        %v4164 = vadd.f32 %v4089, %v4156
        %v4165 = vadd.f32 %v4090, %v4157
        %v4166 = vadd.f32 %v4091, %v4158
        %v4167 = vld [vmem:[%s2718 + $0x2] sm:$0xff]
        %v4168 = vld [vmem:[%s2718 + $0xa] sm:$0xff]
        %v4169 = vunpack.c.l.bf16 %v4167
        %v4170 = vunpack.c.h.bf16 %v4167
        %v4171 = vunpack.c.l.bf16 %v4168
        %v4172 = vunpack.c.h.bf16 %v4168
        %v4173 = vld [vmem:[%s1675] sm:$0x3]
        %v4174 = vunpack.c.l.bf16 %v4173
        %4176 = vset.pattern.permute.xlu0 0
        %4177 = vperm.xlu0 %4176, %v4174
        %v4178 = vpop.permute.xlu0 %4177
        %v4181 = vunpack.c.l.s4 839922192
        %v4182 = vunpack.c.0.s8 %v4181
        %v4183 = vperm.slane %v4178, %v4182
        %v4188 = vperm.slane %v4169, 0
        %v4189 = vperm.slane %v4169, 2
        %v4190 = vperm.slane %v4169, 4
        %v4191 = vperm.slane %v4169, 6
        %v4192 = vperm.slane %v4170, 0
        %v4193 = vperm.slane %v4170, 2
        %v4194 = vperm.slane %v4170, 4
        %v4195 = vperm.slane %v4170, 6
        %v4196 = vperm.slane %v4171, 0
        %v4197 = vperm.slane %v4171, 2
        %v4198 = vperm.slane %v4171, 4
        %v4199 = vperm.slane %v4171, 6
        %v4200 = vperm.slane %v4172, 0
        %v4201 = vperm.slane %v4172, 2
        %v4202 = vperm.slane %v4172, 4
        %v4203 = vperm.slane %v4172, 6
        %v4220 = vperm.slane %v4188, 0
        %v4221 = vperm.slane %v4189, 0
        %v4222 = vperm.slane %v4190, 0
        %v4223 = vperm.slane %v4191, 0
        %v4224 = vperm.slane %v4192, 0
        %v4225 = vperm.slane %v4193, 0
        %v4226 = vperm.slane %v4194, 0
        %v4227 = vperm.slane %v4195, 0
        %v4228 = vperm.slane %v4196, 0
        %v4229 = vperm.slane %v4197, 0
        %v4230 = vperm.slane %v4198, 0
        %v4231 = vperm.slane %v4199, 0
        %v4232 = vperm.slane %v4200, 0
        %v4233 = vperm.slane %v4201, 0
        %v4234 = vperm.slane %v4202, 0
        %v4235 = vperm.slane %v4203, 0
        %v4252 = vrot.slane %v4221, 4
        %v4253 = vrot.slane %v4223, 4
        %v4254 = vrot.slane %v4225, 4
        %v4255 = vrot.slane %v4227, 4
        %v4256 = vrot.slane %v4229, 4
        %v4257 = vrot.slane %v4231, 4
        %v4258 = vrot.slane %v4233, 4
        %v4259 = vrot.slane %v4235, 4
        %v4260 = vsel %vm306, %v4220, %v4252
        %v4261 = vsel %vm306, %v4222, %v4253
        %v4262 = vsel %vm306, %v4224, %v4254
        %v4263 = vsel %vm306, %v4226, %v4255
        %v4264 = vsel %vm306, %v4228, %v4256
        %v4265 = vsel %vm306, %v4230, %v4257
        %v4266 = vsel %vm306, %v4232, %v4258
        %v4267 = vsel %vm306, %v4234, %v4259
        %v4276 = vmul.f32 %v4183, %v4260
        %v4277 = vmul.f32 %v4183, %v4261
        %v4278 = vmul.f32 %v4183, %v4262
        %v4279 = vmul.f32 %v4183, %v4263
        %v4280 = vmul.f32 %v4183, %v4264
        %v4281 = vmul.f32 %v4183, %v4265
        %v4282 = vmul.f32 %v4183, %v4266
        %v4283 = vmul.f32 %v4183, %v4267
        %v4284 = vadd.f32 %v4159, %v4276
        %v4285 = vadd.f32 %v4160, %v4277
        %v4286 = vadd.f32 %v4161, %v4278
        %v4287 = vadd.f32 %v4162, %v4279
        %v4288 = vadd.f32 %v4163, %v4280
        %v4289 = vadd.f32 %v4164, %v4281
        %v4290 = vadd.f32 %v4165, %v4282
        %v4291 = vadd.f32 %v4166, %v4283
        %4292 = vset.pattern.permute.xlu0 1
        %4293 = vperm.xlu0 %4292, %v4174
        %v4294 = vpop.permute.xlu0 %4293
        %v4297 = vunpack.c.l.s4 839922192
        %v4298 = vunpack.c.0.s8 %v4297
        %v4299 = vperm.slane %v4294, %v4298
        %v4300 = vperm.slane %v4169, 1
        %v4301 = vperm.slane %v4169, 3
        %v4302 = vperm.slane %v4169, 5
        %v4303 = vperm.slane %v4169, 7
        %v4304 = vperm.slane %v4170, 1
        %v4305 = vperm.slane %v4170, 3
        %v4306 = vperm.slane %v4170, 5
        %v4307 = vperm.slane %v4170, 7
        %v4308 = vperm.slane %v4171, 1
        %v4309 = vperm.slane %v4171, 3
        %v4310 = vperm.slane %v4171, 5
        %v4311 = vperm.slane %v4171, 7
        %v4312 = vperm.slane %v4172, 1
        %v4313 = vperm.slane %v4172, 3
        %v4314 = vperm.slane %v4172, 5
        %v4315 = vperm.slane %v4172, 7
        %v4332 = vperm.slane %v4300, 1
        %v4333 = vperm.slane %v4301, 1
        %v4334 = vperm.slane %v4302, 1
        %v4335 = vperm.slane %v4303, 1
        %v4336 = vperm.slane %v4304, 1
        %v4337 = vperm.slane %v4305, 1
        %v4338 = vperm.slane %v4306, 1
        %v4339 = vperm.slane %v4307, 1
        %v4340 = vperm.slane %v4308, 1
        %v4341 = vperm.slane %v4309, 1
        %v4342 = vperm.slane %v4310, 1
        %v4343 = vperm.slane %v4311, 1
        %v4344 = vperm.slane %v4312, 1
        %v4345 = vperm.slane %v4313, 1
        %v4346 = vperm.slane %v4314, 1
        %v4347 = vperm.slane %v4315, 1
        %v4364 = vrot.slane %v4333, 4
        %v4365 = vrot.slane %v4335, 4
        %v4366 = vrot.slane %v4337, 4
        %v4367 = vrot.slane %v4339, 4
        %v4368 = vrot.slane %v4341, 4
        %v4369 = vrot.slane %v4343, 4
        %v4370 = vrot.slane %v4345, 4
        %v4371 = vrot.slane %v4347, 4
        %v4372 = vsel %vm306, %v4332, %v4364
        %v4373 = vsel %vm306, %v4334, %v4365
        %v4374 = vsel %vm306, %v4336, %v4366
        %v4375 = vsel %vm306, %v4338, %v4367
        %v4376 = vsel %vm306, %v4340, %v4368
        %v4377 = vsel %vm306, %v4342, %v4369
        %v4378 = vsel %vm306, %v4344, %v4370
        %v4379 = vsel %vm306, %v4346, %v4371
        %v4388 = vmul.f32 %v4299, %v4372
        %v4389 = vmul.f32 %v4299, %v4373
        %v4390 = vmul.f32 %v4299, %v4374
        %v4391 = vmul.f32 %v4299, %v4375
        %v4392 = vmul.f32 %v4299, %v4376
        %v4393 = vmul.f32 %v4299, %v4377
        %v4394 = vmul.f32 %v4299, %v4378
        %v4395 = vmul.f32 %v4299, %v4379
        %v4396 = vadd.f32 %v4284, %v4388
        %v4397 = vadd.f32 %v4285, %v4389
        %v4398 = vadd.f32 %v4286, %v4390
        %v4399 = vadd.f32 %v4287, %v4391
        %v4400 = vadd.f32 %v4288, %v4392
        %v4401 = vadd.f32 %v4289, %v4393
        %v4402 = vadd.f32 %v4290, %v4394
        %v4403 = vadd.f32 %v4291, %v4395
        %v4404 = vld [vmem:[%s2718 + $0x2] sm:$0xff]
        %v4405 = vld [vmem:[%s2718 + $0xa] sm:$0xff]
        %v4406 = vld [vmem:[%s2718 + $0x12] sm:$0x1]
        %v4407 = vunpack.c.l.bf16 %v4404
        %v4408 = vunpack.c.h.bf16 %v4404
        %v4409 = vunpack.c.l.bf16 %v4405
        %v4410 = vunpack.c.h.bf16 %v4405
        %v4411 = vunpack.c.l.bf16 %v4406
        %v4412 = vld [vmem:[%s1915] sm:$0x3]
        %v4413 = vunpack.c.l.bf16 %v4412
        %4415 = vset.pattern.permute.xlu0 0
        %4416 = vperm.xlu0 %4415, %v4413
        %v4417 = vpop.permute.xlu0 %4416
        %v4420 = vunpack.c.l.s4 839922192
        %v4421 = vunpack.c.0.s8 %v4420
        %v4422 = vperm.slane %v4417, %v4421
        %v4428 = vperm.slane %v4407, 0
        %v4429 = vperm.slane %v4407, 2
        %v4430 = vperm.slane %v4407, 4
        %v4431 = vperm.slane %v4407, 6
        %v4432 = vperm.slane %v4408, 0
        %v4433 = vperm.slane %v4408, 2
        %v4434 = vperm.slane %v4408, 4
        %v4435 = vperm.slane %v4408, 6
        %v4436 = vperm.slane %v4409, 0
        %v4437 = vperm.slane %v4409, 2
        %v4438 = vperm.slane %v4409, 4
        %v4439 = vperm.slane %v4409, 6
        %v4440 = vperm.slane %v4410, 0
        %v4441 = vperm.slane %v4410, 2
        %v4442 = vperm.slane %v4410, 4
        %v4443 = vperm.slane %v4410, 6
        %v4444 = vperm.slane %v4411, 0
        %v4462 = vperm.slane %v4428, 0
        %v4463 = vperm.slane %v4429, 0
        %v4464 = vperm.slane %v4430, 0
        %v4465 = vperm.slane %v4431, 0
        %v4466 = vperm.slane %v4432, 0
        %v4467 = vperm.slane %v4433, 0
        %v4468 = vperm.slane %v4434, 0
        %v4469 = vperm.slane %v4435, 0
        %v4470 = vperm.slane %v4436, 0
        %v4471 = vperm.slane %v4437, 0
        %v4472 = vperm.slane %v4438, 0
        %v4473 = vperm.slane %v4439, 0
        %v4474 = vperm.slane %v4440, 0
        %v4475 = vperm.slane %v4441, 0
        %v4476 = vperm.slane %v4442, 0
        %v4477 = vperm.slane %v4443, 0
        %v4478 = vperm.slane %v4444, 0
        %v4496 = vrot.slane %v4463, 4
        %v4497 = vrot.slane %v4465, 4
        %v4498 = vrot.slane %v4467, 4
        %v4499 = vrot.slane %v4469, 4
        %v4500 = vrot.slane %v4471, 4
        %v4501 = vrot.slane %v4473, 4
        %v4502 = vrot.slane %v4475, 4
        %v4503 = vrot.slane %v4477, 4
        %v4504 = vsel %vm306, %v4462, %v4496
        %v4505 = vsel %vm306, %v4464, %v4497
        %v4506 = vsel %vm306, %v4466, %v4498
        %v4507 = vsel %vm306, %v4468, %v4499
        %v4508 = vsel %vm306, %v4470, %v4500
        %v4509 = vsel %vm306, %v4472, %v4501
        %v4510 = vsel %vm306, %v4474, %v4502
        %v4511 = vsel %vm306, %v4476, %v4503
        %4512 = vrot.lane.b32.xlu0 %v4504, 127
        %v4513 = vpop.permute.xlu0 %4512
        %4514 = vrot.lane.b32.xlu0 %v4505, 127
        %v4515 = vpop.permute.xlu0 %4514
        %4516 = vrot.lane.b32.xlu0 %v4506, 127
        %v4517 = vpop.permute.xlu0 %4516
        %4518 = vrot.lane.b32.xlu0 %v4507, 127
        %v4519 = vpop.permute.xlu0 %4518
        %4520 = vrot.lane.b32.xlu0 %v4508, 127
        %v4521 = vpop.permute.xlu0 %4520
        %4522 = vrot.lane.b32.xlu0 %v4509, 127
        %v4523 = vpop.permute.xlu0 %4522
        %4524 = vrot.lane.b32.xlu0 %v4510, 127
        %v4525 = vpop.permute.xlu0 %4524
        %4526 = vrot.lane.b32.xlu0 %v4511, 127
        %v4527 = vpop.permute.xlu0 %4526
        %4528 = vrot.lane.b32.xlu0 %v4478, 127
        %v4529 = vpop.permute.xlu0 %4528
        %v4530 = vrot.slane %v4513, 4
        %v4531 = vrot.slane %v4515, 4
        %v4532 = vrot.slane %v4517, 4
        %v4533 = vrot.slane %v4519, 4
        %v4534 = vrot.slane %v4521, 4
        %v4535 = vrot.slane %v4523, 4
        %v4536 = vrot.slane %v4525, 4
        %v4537 = vrot.slane %v4527, 4
        %v4538 = vrot.slane %v4529, 4
        %v4539 = vsel %vm306, %v4530, %v4531
        %v4540 = vsel %vm588, %v4513, %v4539
        %v4541 = vsel %vm306, %v4531, %v4532
        %v4542 = vsel %vm588, %v4515, %v4541
        %v4543 = vsel %vm306, %v4532, %v4533
        %v4544 = vsel %vm588, %v4517, %v4543
        %v4545 = vsel %vm306, %v4533, %v4534
        %v4546 = vsel %vm588, %v4519, %v4545
        %v4547 = vsel %vm306, %v4534, %v4535
        %v4548 = vsel %vm588, %v4521, %v4547
        %v4549 = vsel %vm306, %v4535, %v4536
        %v4550 = vsel %vm588, %v4523, %v4549
        %v4551 = vsel %vm306, %v4536, %v4537
        %v4552 = vsel %vm588, %v4525, %v4551
        %v4553 = vsel %vm306, %v4537, %v4538
        %v4554 = vsel %vm588, %v4527, %v4553
        %v4563 = vmul.f32 %v4422, %v4540
        %v4564 = vmul.f32 %v4422, %v4542
        %v4565 = vmul.f32 %v4422, %v4544
        %v4566 = vmul.f32 %v4422, %v4546
        %v4567 = vmul.f32 %v4422, %v4548
        %v4568 = vmul.f32 %v4422, %v4550
        %v4569 = vmul.f32 %v4422, %v4552
        %v4570 = vmul.f32 %v4422, %v4554
        %v4571 = vadd.f32 %v4396, %v4563
        %v4572 = vadd.f32 %v4397, %v4564
        %v4573 = vadd.f32 %v4398, %v4565
        %v4574 = vadd.f32 %v4399, %v4566
        %v4575 = vadd.f32 %v4400, %v4567
        %v4576 = vadd.f32 %v4401, %v4568
        %v4577 = vadd.f32 %v4402, %v4569
        %v4578 = vadd.f32 %v4403, %v4570
        %4579 = vset.pattern.permute.xlu0 1
        %4580 = vperm.xlu0 %4579, %v4413
        %v4581 = vpop.permute.xlu0 %4580
        %v4584 = vunpack.c.l.s4 839922192
        %v4585 = vunpack.c.0.s8 %v4584
        %v4586 = vperm.slane %v4581, %v4585
        %v4587 = vperm.slane %v4407, 1
        %v4588 = vperm.slane %v4407, 3
        %v4589 = vperm.slane %v4407, 5
        %v4590 = vperm.slane %v4407, 7
        %v4591 = vperm.slane %v4408, 1
        %v4592 = vperm.slane %v4408, 3
        %v4593 = vperm.slane %v4408, 5
        %v4594 = vperm.slane %v4408, 7
        %v4595 = vperm.slane %v4409, 1
        %v4596 = vperm.slane %v4409, 3
        %v4597 = vperm.slane %v4409, 5
        %v4598 = vperm.slane %v4409, 7
        %v4599 = vperm.slane %v4410, 1
        %v4600 = vperm.slane %v4410, 3
        %v4601 = vperm.slane %v4410, 5
        %v4602 = vperm.slane %v4410, 7
        %v4603 = vperm.slane %v4411, 1
        %v4621 = vperm.slane %v4587, 1
        %v4622 = vperm.slane %v4588, 1
        %v4623 = vperm.slane %v4589, 1
        %v4624 = vperm.slane %v4590, 1
        %v4625 = vperm.slane %v4591, 1
        %v4626 = vperm.slane %v4592, 1
        %v4627 = vperm.slane %v4593, 1
        %v4628 = vperm.slane %v4594, 1
        %v4629 = vperm.slane %v4595, 1
        %v4630 = vperm.slane %v4596, 1
        %v4631 = vperm.slane %v4597, 1
        %v4632 = vperm.slane %v4598, 1
        %v4633 = vperm.slane %v4599, 1
        %v4634 = vperm.slane %v4600, 1
        %v4635 = vperm.slane %v4601, 1
        %v4636 = vperm.slane %v4602, 1
        %v4637 = vperm.slane %v4603, 1
        %v4655 = vrot.slane %v4622, 4
        %v4656 = vrot.slane %v4624, 4
        %v4657 = vrot.slane %v4626, 4
        %v4658 = vrot.slane %v4628, 4
        %v4659 = vrot.slane %v4630, 4
        %v4660 = vrot.slane %v4632, 4
        %v4661 = vrot.slane %v4634, 4
        %v4662 = vrot.slane %v4636, 4
        %v4663 = vsel %vm306, %v4621, %v4655
        %v4664 = vsel %vm306, %v4623, %v4656
        %v4665 = vsel %vm306, %v4625, %v4657
        %v4666 = vsel %vm306, %v4627, %v4658
        %v4667 = vsel %vm306, %v4629, %v4659
        %v4668 = vsel %vm306, %v4631, %v4660
        %v4669 = vsel %vm306, %v4633, %v4661
        %v4670 = vsel %vm306, %v4635, %v4662
        %4671 = vrot.lane.b32.xlu0 %v4663, 127
        %v4672 = vpop.permute.xlu0 %4671
        %4673 = vrot.lane.b32.xlu0 %v4664, 127
        %v4674 = vpop.permute.xlu0 %4673
        %4675 = vrot.lane.b32.xlu0 %v4665, 127
        %v4676 = vpop.permute.xlu0 %4675
        %4677 = vrot.lane.b32.xlu0 %v4666, 127
        %v4678 = vpop.permute.xlu0 %4677
        %4679 = vrot.lane.b32.xlu0 %v4667, 127
        %v4680 = vpop.permute.xlu0 %4679
        %4681 = vrot.lane.b32.xlu0 %v4668, 127
        %v4682 = vpop.permute.xlu0 %4681
        %4683 = vrot.lane.b32.xlu0 %v4669, 127
        %v4684 = vpop.permute.xlu0 %4683
        %4685 = vrot.lane.b32.xlu0 %v4670, 127
        %v4686 = vpop.permute.xlu0 %4685
        %4687 = vrot.lane.b32.xlu0 %v4637, 127
        %v4688 = vpop.permute.xlu0 %4687
        %v4689 = vrot.slane %v4672, 4
        %v4690 = vrot.slane %v4674, 4
        %v4691 = vrot.slane %v4676, 4
        %v4692 = vrot.slane %v4678, 4
        %v4693 = vrot.slane %v4680, 4
        %v4694 = vrot.slane %v4682, 4
        %v4695 = vrot.slane %v4684, 4
        %v4696 = vrot.slane %v4686, 4
        %v4697 = vrot.slane %v4688, 4
        %v4698 = vsel %vm306, %v4689, %v4690
        %v4699 = vsel %vm588, %v4672, %v4698
        %v4700 = vsel %vm306, %v4690, %v4691
        %v4701 = vsel %vm588, %v4674, %v4700
        %v4702 = vsel %vm306, %v4691, %v4692
        %v4703 = vsel %vm588, %v4676, %v4702
        %v4704 = vsel %vm306, %v4692, %v4693
        %v4705 = vsel %vm588, %v4678, %v4704
        %v4706 = vsel %vm306, %v4693, %v4694
        %v4707 = vsel %vm588, %v4680, %v4706
        %v4708 = vsel %vm306, %v4694, %v4695
        %v4709 = vsel %vm588, %v4682, %v4708
        %v4710 = vsel %vm306, %v4695, %v4696
        %v4711 = vsel %vm588, %v4684, %v4710
        %v4712 = vsel %vm306, %v4696, %v4697
        %v4713 = vsel %vm588, %v4686, %v4712
        %v4722 = vmul.f32 %v4586, %v4699
        %v4723 = vmul.f32 %v4586, %v4701
        %v4724 = vmul.f32 %v4586, %v4703
        %v4725 = vmul.f32 %v4586, %v4705
        %v4726 = vmul.f32 %v4586, %v4707
        %v4727 = vmul.f32 %v4586, %v4709
        %v4728 = vmul.f32 %v4586, %v4711
        %v4729 = vmul.f32 %v4586, %v4713
        %v4730 = vadd.f32 %v4571, %v4722
        %v4731 = vadd.f32 %v4572, %v4723
        %v4732 = vadd.f32 %v4573, %v4724
        %v4733 = vadd.f32 %v4574, %v4725
        %v4734 = vadd.f32 %v4575, %v4726
        %v4735 = vadd.f32 %v4576, %v4727
        %v4736 = vadd.f32 %v4577, %v4728
        %v4737 = vadd.f32 %v4578, %v4729
        %v4738 = vld [vmem:[%s2242] sm:$0x3]
        %v4739 = vunpack.c.l.bf16 %v4738
        %4741 = vset.pattern.permute.xlu0 0
        %4742 = vperm.xlu0 %4741, %v4739
        %v4743 = vpop.permute.xlu0 %4742
        %v4746 = vunpack.c.l.s4 839922192
        %v4747 = vunpack.c.0.s8 %v4746
        %v4748 = vperm.slane %v4743, %v4747
        %4749 = vrot.lane.b32.xlu0 %v4504, 126
        %v4750 = vpop.permute.xlu0 %4749
        %4751 = vrot.lane.b32.xlu0 %v4505, 126
        %v4752 = vpop.permute.xlu0 %4751
        %4753 = vrot.lane.b32.xlu0 %v4506, 126
        %v4754 = vpop.permute.xlu0 %4753
        %4755 = vrot.lane.b32.xlu0 %v4507, 126
        %v4756 = vpop.permute.xlu0 %4755
        %4757 = vrot.lane.b32.xlu0 %v4508, 126
        %v4758 = vpop.permute.xlu0 %4757
        %4759 = vrot.lane.b32.xlu0 %v4509, 126
        %v4760 = vpop.permute.xlu0 %4759
        %4761 = vrot.lane.b32.xlu0 %v4510, 126
        %v4762 = vpop.permute.xlu0 %4761
        %4763 = vrot.lane.b32.xlu0 %v4511, 126
        %v4764 = vpop.permute.xlu0 %4763
        %4765 = vrot.lane.b32.xlu0 %v4478, 126
        %v4766 = vpop.permute.xlu0 %4765
        %v4767 = vrot.slane %v4750, 4
        %v4768 = vrot.slane %v4752, 4
        %v4769 = vrot.slane %v4754, 4
        %v4770 = vrot.slane %v4756, 4
        %v4771 = vrot.slane %v4758, 4
        %v4772 = vrot.slane %v4760, 4
        %v4773 = vrot.slane %v4762, 4
        %v4774 = vrot.slane %v4764, 4
        %v4775 = vrot.slane %v4766, 4
        %v4776 = vsel %vm306, %v4767, %v4768
        %v4777 = vsel %vm827, %v4750, %v4776
        %v4778 = vsel %vm306, %v4768, %v4769
        %v4779 = vsel %vm827, %v4752, %v4778
        %v4780 = vsel %vm306, %v4769, %v4770
        %v4781 = vsel %vm827, %v4754, %v4780
        %v4782 = vsel %vm306, %v4770, %v4771
        %v4783 = vsel %vm827, %v4756, %v4782
        %v4784 = vsel %vm306, %v4771, %v4772
        %v4785 = vsel %vm827, %v4758, %v4784
        %v4786 = vsel %vm306, %v4772, %v4773
        %v4787 = vsel %vm827, %v4760, %v4786
        %v4788 = vsel %vm306, %v4773, %v4774
        %v4789 = vsel %vm827, %v4762, %v4788
        %v4790 = vsel %vm306, %v4774, %v4775
        %v4791 = vsel %vm827, %v4764, %v4790
        %v4800 = vmul.f32 %v4748, %v4777
        %v4801 = vmul.f32 %v4748, %v4779
        %v4802 = vmul.f32 %v4748, %v4781
        %v4803 = vmul.f32 %v4748, %v4783
        %v4804 = vmul.f32 %v4748, %v4785
        %v4805 = vmul.f32 %v4748, %v4787
        %v4806 = vmul.f32 %v4748, %v4789
        %v4807 = vmul.f32 %v4748, %v4791
        %v4808 = vadd.f32 %v4730, %v4800
        %v4809 = vadd.f32 %v4731, %v4801
        %v4810 = vadd.f32 %v4732, %v4802
        %v4811 = vadd.f32 %v4733, %v4803
        %v4812 = vadd.f32 %v4734, %v4804
        %v4813 = vadd.f32 %v4735, %v4805
        %v4814 = vadd.f32 %v4736, %v4806
        %v4815 = vadd.f32 %v4737, %v4807
        %4816 = vset.pattern.permute.xlu0 1
        %4817 = vperm.xlu0 %4816, %v4739
        %v4818 = vpop.permute.xlu0 %4817
        %v4821 = vunpack.c.l.s4 839922192
        %v4822 = vunpack.c.0.s8 %v4821
        %v4823 = vperm.slane %v4818, %v4822
        %4824 = vrot.lane.b32.xlu0 %v4663, 126
        %v4825 = vpop.permute.xlu0 %4824
        %4826 = vrot.lane.b32.xlu0 %v4664, 126
        %v4827 = vpop.permute.xlu0 %4826
        %4828 = vrot.lane.b32.xlu0 %v4665, 126
        %v4829 = vpop.permute.xlu0 %4828
        %4830 = vrot.lane.b32.xlu0 %v4666, 126
        %v4831 = vpop.permute.xlu0 %4830
        %4832 = vrot.lane.b32.xlu0 %v4667, 126
        %v4833 = vpop.permute.xlu0 %4832
        %4834 = vrot.lane.b32.xlu0 %v4668, 126
        %v4835 = vpop.permute.xlu0 %4834
        %4836 = vrot.lane.b32.xlu0 %v4669, 126
        %v4837 = vpop.permute.xlu0 %4836
        %4838 = vrot.lane.b32.xlu0 %v4670, 126
        %v4839 = vpop.permute.xlu0 %4838
        %4840 = vrot.lane.b32.xlu0 %v4637, 126
        %v4841 = vpop.permute.xlu0 %4840
        %v4842 = vrot.slane %v4825, 4
        %v4843 = vrot.slane %v4827, 4
        %v4844 = vrot.slane %v4829, 4
        %v4845 = vrot.slane %v4831, 4
        %v4846 = vrot.slane %v4833, 4
        %v4847 = vrot.slane %v4835, 4
        %v4848 = vrot.slane %v4837, 4
        %v4849 = vrot.slane %v4839, 4
        %v4850 = vrot.slane %v4841, 4
        %v4851 = vsel %vm306, %v4842, %v4843
        %v4852 = vsel %vm827, %v4825, %v4851
        %v4853 = vsel %vm306, %v4843, %v4844
        %v4854 = vsel %vm827, %v4827, %v4853
        %v4855 = vsel %vm306, %v4844, %v4845
        %v4856 = vsel %vm827, %v4829, %v4855
        %v4857 = vsel %vm306, %v4845, %v4846
        %v4858 = vsel %vm827, %v4831, %v4857
        %v4859 = vsel %vm306, %v4846, %v4847
        %v4860 = vsel %vm827, %v4833, %v4859
        %v4861 = vsel %vm306, %v4847, %v4848
        %v4862 = vsel %vm827, %v4835, %v4861
        %v4863 = vsel %vm306, %v4848, %v4849
        %v4864 = vsel %vm827, %v4837, %v4863
        %v4865 = vsel %vm306, %v4849, %v4850
        %v4866 = vsel %vm827, %v4839, %v4865
        %v4875 = vmul.f32 %v4823, %v4852
        %v4876 = vmul.f32 %v4823, %v4854
        %v4877 = vmul.f32 %v4823, %v4856
        %v4878 = vmul.f32 %v4823, %v4858
        %v4879 = vmul.f32 %v4823, %v4860
        %v4880 = vmul.f32 %v4823, %v4862
        %v4881 = vmul.f32 %v4823, %v4864
        %v4882 = vmul.f32 %v4823, %v4866
        %v4883 = vadd.f32 %v4808, %v4875
        %v4884 = vadd.f32 %v4809, %v4876
        %v4885 = vadd.f32 %v4810, %v4877
        %v4886 = vadd.f32 %v4811, %v4878
        %v4887 = vadd.f32 %v4812, %v4879
        %v4888 = vadd.f32 %v4813, %v4880
        %v4889 = vadd.f32 %v4814, %v4881
        %v4890 = vadd.f32 %v4815, %v4882
        %v4891 = vadd.f32 %v4883, %v2399
        %v4893 = vrot.slane %v4891, 3
        %v4894 = vsel %vm2404, %v4891, %v4893
        %v4895 = vsel %vm2406, %v4891, %v4893
        %v4896 = vrot.slane %v4895, 1
        %v4897 = vsel %vm2409, %v4891, %v4893
        %v4898 = vrot.slane %v4897, 2
        %v4899 = vsel %vm2412, %v4891, %v4893
        %v4900 = vrot.slane %v4899, 3
        %s4905 = scalar_lea.vmem %s208, 64 [#allocation5]
        %4906 = vst.msk [vmem:[%s4905] sm:$0x1] %vm2419, %v4894
        %4907 = vst.msk [vmem:[%s4905 + $0x10] sm:$0x1] %vm2419, %v4896
        %4908 = vst.msk [vmem:[%s4905 + $0x20] sm:$0x1] %vm2419, %v4898
        %4909 = vst.msk [vmem:[%s4905 + $0x30] sm:$0x1] %vm2419, %v4900
        %v4911 = vrot.slane %v4883, 4
        %v4913 = vadd.f32 %v4911, %v2399
        %v4915 = vrot.slane %v4913, 3
        %v4916 = vsel %vm2404, %v4913, %v4915
        %v4917 = vsel %vm2406, %v4913, %v4915
        %v4918 = vrot.slane %v4917, 1
        %v4919 = vsel %vm2409, %v4913, %v4915
        %v4920 = vrot.slane %v4919, 2
        %v4921 = vsel %vm2412, %v4913, %v4915
        %v4922 = vrot.slane %v4921, 3
        %4927 = vst.msk [vmem:[%s4905 + $0x1] sm:$0x1] %vm2419, %v4916
        %4928 = vst.msk [vmem:[%s4905 + $0x11] sm:$0x1] %vm2419, %v4918
        %4929 = vst.msk [vmem:[%s4905 + $0x21] sm:$0x1] %vm2419, %v4920
        %4930 = vst.msk [vmem:[%s4905 + $0x31] sm:$0x1] %vm2419, %v4922
        %v4931 = vadd.f32 %v4884, %v2399
        %v4933 = vrot.slane %v4931, 3
        %v4934 = vsel %vm2404, %v4931, %v4933
        %v4935 = vsel %vm2406, %v4931, %v4933
        %v4936 = vrot.slane %v4935, 1
        %v4937 = vsel %vm2409, %v4931, %v4933
        %v4938 = vrot.slane %v4937, 2
        %v4939 = vsel %vm2412, %v4931, %v4933
        %v4940 = vrot.slane %v4939, 3
        %4945 = vst.msk [vmem:[%s4905 + $0x2] sm:$0x1] %vm2419, %v4934
        %4946 = vst.msk [vmem:[%s4905 + $0x12] sm:$0x1] %vm2419, %v4936
        %4947 = vst.msk [vmem:[%s4905 + $0x22] sm:$0x1] %vm2419, %v4938
        %4948 = vst.msk [vmem:[%s4905 + $0x32] sm:$0x1] %vm2419, %v4940
        %v4950 = vrot.slane %v4884, 4
        %v4952 = vadd.f32 %v4950, %v2399
        %v4954 = vrot.slane %v4952, 3
        %v4955 = vsel %vm2404, %v4952, %v4954
        %v4956 = vsel %vm2406, %v4952, %v4954
        %v4957 = vrot.slane %v4956, 1
        %v4958 = vsel %vm2409, %v4952, %v4954
        %v4959 = vrot.slane %v4958, 2
        %v4960 = vsel %vm2412, %v4952, %v4954
        %v4961 = vrot.slane %v4960, 3
        %4966 = vst.msk [vmem:[%s4905 + $0x3] sm:$0x1] %vm2419, %v4955
        %4967 = vst.msk [vmem:[%s4905 + $0x13] sm:$0x1] %vm2419, %v4957
        %4968 = vst.msk [vmem:[%s4905 + $0x23] sm:$0x1] %vm2419, %v4959
        %4969 = vst.msk [vmem:[%s4905 + $0x33] sm:$0x1] %vm2419, %v4961
        %v4970 = vadd.f32 %v4885, %v2399
        %v4972 = vrot.slane %v4970, 3
        %v4973 = vsel %vm2404, %v4970, %v4972
        %v4974 = vsel %vm2406, %v4970, %v4972
        %v4975 = vrot.slane %v4974, 1
        %v4976 = vsel %vm2409, %v4970, %v4972
        %v4977 = vrot.slane %v4976, 2
        %v4978 = vsel %vm2412, %v4970, %v4972
        %v4979 = vrot.slane %v4978, 3
        %4984 = vst.msk [vmem:[%s4905 + $0x4] sm:$0x1] %vm2419, %v4973
        %4985 = vst.msk [vmem:[%s4905 + $0x14] sm:$0x1] %vm2419, %v4975
        %4986 = vst.msk [vmem:[%s4905 + $0x24] sm:$0x1] %vm2419, %v4977
        %4987 = vst.msk [vmem:[%s4905 + $0x34] sm:$0x1] %vm2419, %v4979
        %v4989 = vrot.slane %v4885, 4
        %v4991 = vadd.f32 %v4989, %v2399
        %v4993 = vrot.slane %v4991, 3
        %v4994 = vsel %vm2404, %v4991, %v4993
        %v4995 = vsel %vm2406, %v4991, %v4993
        %v4996 = vrot.slane %v4995, 1
        %v4997 = vsel %vm2409, %v4991, %v4993
        %v4998 = vrot.slane %v4997, 2
        %v4999 = vsel %vm2412, %v4991, %v4993
        %v5000 = vrot.slane %v4999, 3
        %5005 = vst.msk [vmem:[%s4905 + $0x5] sm:$0x1] %vm2419, %v4994
        %5006 = vst.msk [vmem:[%s4905 + $0x15] sm:$0x1] %vm2419, %v4996
        %5007 = vst.msk [vmem:[%s4905 + $0x25] sm:$0x1] %vm2419, %v4998
        %5008 = vst.msk [vmem:[%s4905 + $0x35] sm:$0x1] %vm2419, %v5000
        %v5009 = vadd.f32 %v4886, %v2399
        %v5011 = vrot.slane %v5009, 3
        %v5012 = vsel %vm2404, %v5009, %v5011
        %v5013 = vsel %vm2406, %v5009, %v5011
        %v5014 = vrot.slane %v5013, 1
        %v5015 = vsel %vm2409, %v5009, %v5011
        %v5016 = vrot.slane %v5015, 2
        %v5017 = vsel %vm2412, %v5009, %v5011
        %v5018 = vrot.slane %v5017, 3
        %5023 = vst.msk [vmem:[%s4905 + $0x6] sm:$0x1] %vm2419, %v5012
        %5024 = vst.msk [vmem:[%s4905 + $0x16] sm:$0x1] %vm2419, %v5014
        %5025 = vst.msk [vmem:[%s4905 + $0x26] sm:$0x1] %vm2419, %v5016
        %5026 = vst.msk [vmem:[%s4905 + $0x36] sm:$0x1] %vm2419, %v5018
        %v5028 = vrot.slane %v4886, 4
        %v5030 = vadd.f32 %v5028, %v2399
        %v5032 = vrot.slane %v5030, 3
        %v5033 = vsel %vm2404, %v5030, %v5032
        %v5034 = vsel %vm2406, %v5030, %v5032
        %v5035 = vrot.slane %v5034, 1
        %v5036 = vsel %vm2409, %v5030, %v5032
        %v5037 = vrot.slane %v5036, 2
        %v5038 = vsel %vm2412, %v5030, %v5032
        %v5039 = vrot.slane %v5038, 3
        %5044 = vst.msk [vmem:[%s4905 + $0x7] sm:$0x1] %vm2419, %v5033
        %5045 = vst.msk [vmem:[%s4905 + $0x17] sm:$0x1] %vm2419, %v5035
        %5046 = vst.msk [vmem:[%s4905 + $0x27] sm:$0x1] %vm2419, %v5037
        %5047 = vst.msk [vmem:[%s4905 + $0x37] sm:$0x1] %vm2419, %v5039
        %v5048 = vadd.f32 %v4887, %v2399
        %v5050 = vrot.slane %v5048, 3
        %v5051 = vsel %vm2404, %v5048, %v5050
        %v5052 = vsel %vm2406, %v5048, %v5050
        %v5053 = vrot.slane %v5052, 1
        %v5054 = vsel %vm2409, %v5048, %v5050
        %v5055 = vrot.slane %v5054, 2
        %v5056 = vsel %vm2412, %v5048, %v5050
        %v5057 = vrot.slane %v5056, 3
        %5062 = vst.msk [vmem:[%s4905 + $0x8] sm:$0x1] %vm2419, %v5051
        %5063 = vst.msk [vmem:[%s4905 + $0x18] sm:$0x1] %vm2419, %v5053
        %5064 = vst.msk [vmem:[%s4905 + $0x28] sm:$0x1] %vm2419, %v5055
        %5065 = vst.msk [vmem:[%s4905 + $0x38] sm:$0x1] %vm2419, %v5057
        %v5067 = vrot.slane %v4887, 4
        %v5069 = vadd.f32 %v5067, %v2399
        %v5071 = vrot.slane %v5069, 3
        %v5072 = vsel %vm2404, %v5069, %v5071
        %v5073 = vsel %vm2406, %v5069, %v5071
        %v5074 = vrot.slane %v5073, 1
        %v5075 = vsel %vm2409, %v5069, %v5071
        %v5076 = vrot.slane %v5075, 2
        %v5077 = vsel %vm2412, %v5069, %v5071
        %v5078 = vrot.slane %v5077, 3
        %5083 = vst.msk [vmem:[%s4905 + $0x9] sm:$0x1] %vm2419, %v5072
        %5084 = vst.msk [vmem:[%s4905 + $0x19] sm:$0x1] %vm2419, %v5074
        %5085 = vst.msk [vmem:[%s4905 + $0x29] sm:$0x1] %vm2419, %v5076
        %5086 = vst.msk [vmem:[%s4905 + $0x39] sm:$0x1] %vm2419, %v5078
        %v5087 = vadd.f32 %v4888, %v2399
        %v5089 = vrot.slane %v5087, 3
        %v5090 = vsel %vm2404, %v5087, %v5089
        %v5091 = vsel %vm2406, %v5087, %v5089
        %v5092 = vrot.slane %v5091, 1
        %v5093 = vsel %vm2409, %v5087, %v5089
        %v5094 = vrot.slane %v5093, 2
        %v5095 = vsel %vm2412, %v5087, %v5089
        %v5096 = vrot.slane %v5095, 3
        %5101 = vst.msk [vmem:[%s4905 + $0xa] sm:$0x1] %vm2419, %v5090
        %5102 = vst.msk [vmem:[%s4905 + $0x1a] sm:$0x1] %vm2419, %v5092
        %5103 = vst.msk [vmem:[%s4905 + $0x2a] sm:$0x1] %vm2419, %v5094
        %5104 = vst.msk [vmem:[%s4905 + $0x3a] sm:$0x1] %vm2419, %v5096
        %v5106 = vrot.slane %v4888, 4
        %v5108 = vadd.f32 %v5106, %v2399
        %v5110 = vrot.slane %v5108, 3
        %v5111 = vsel %vm2404, %v5108, %v5110
        %v5112 = vsel %vm2406, %v5108, %v5110
        %v5113 = vrot.slane %v5112, 1
        %v5114 = vsel %vm2409, %v5108, %v5110
        %v5115 = vrot.slane %v5114, 2
        %v5116 = vsel %vm2412, %v5108, %v5110
        %v5117 = vrot.slane %v5116, 3
        %5122 = vst.msk [vmem:[%s4905 + $0xb] sm:$0x1] %vm2419, %v5111
        %5123 = vst.msk [vmem:[%s4905 + $0x1b] sm:$0x1] %vm2419, %v5113
        %5124 = vst.msk [vmem:[%s4905 + $0x2b] sm:$0x1] %vm2419, %v5115
        %5125 = vst.msk [vmem:[%s4905 + $0x3b] sm:$0x1] %vm2419, %v5117
        %v5126 = vadd.f32 %v4889, %v2399
        %v5128 = vrot.slane %v5126, 3
        %v5129 = vsel %vm2404, %v5126, %v5128
        %v5130 = vsel %vm2406, %v5126, %v5128
        %v5131 = vrot.slane %v5130, 1
        %v5132 = vsel %vm2409, %v5126, %v5128
        %v5133 = vrot.slane %v5132, 2
        %v5134 = vsel %vm2412, %v5126, %v5128
        %v5135 = vrot.slane %v5134, 3
        %5140 = vst.msk [vmem:[%s4905 + $0xc] sm:$0x1] %vm2419, %v5129
        %5141 = vst.msk [vmem:[%s4905 + $0x1c] sm:$0x1] %vm2419, %v5131
        %5142 = vst.msk [vmem:[%s4905 + $0x2c] sm:$0x1] %vm2419, %v5133
        %5143 = vst.msk [vmem:[%s4905 + $0x3c] sm:$0x1] %vm2419, %v5135
        %v5145 = vrot.slane %v4889, 4
        %v5147 = vadd.f32 %v5145, %v2399
        %v5149 = vrot.slane %v5147, 3
        %v5150 = vsel %vm2404, %v5147, %v5149
        %v5151 = vsel %vm2406, %v5147, %v5149
        %v5152 = vrot.slane %v5151, 1
        %v5153 = vsel %vm2409, %v5147, %v5149
        %v5154 = vrot.slane %v5153, 2
        %v5155 = vsel %vm2412, %v5147, %v5149
        %v5156 = vrot.slane %v5155, 3
        %5161 = vst.msk [vmem:[%s4905 + $0xd] sm:$0x1] %vm2419, %v5150
        %5162 = vst.msk [vmem:[%s4905 + $0x1d] sm:$0x1] %vm2419, %v5152
        %5163 = vst.msk [vmem:[%s4905 + $0x2d] sm:$0x1] %vm2419, %v5154
        %5164 = vst.msk [vmem:[%s4905 + $0x3d] sm:$0x1] %vm2419, %v5156
        %v5165 = vadd.f32 %v4890, %v2399
        %v5167 = vrot.slane %v5165, 3
        %v5168 = vsel %vm2404, %v5165, %v5167
        %v5169 = vsel %vm2406, %v5165, %v5167
        %v5170 = vrot.slane %v5169, 1
        %v5171 = vsel %vm2409, %v5165, %v5167
        %v5172 = vrot.slane %v5171, 2
        %v5173 = vsel %vm2412, %v5165, %v5167
        %v5174 = vrot.slane %v5173, 3
        %5179 = vst.msk [vmem:[%s4905 + $0xe] sm:$0x1] %vm2419, %v5168
        %5180 = vst.msk [vmem:[%s4905 + $0x1e] sm:$0x1] %vm2419, %v5170
        %5181 = vst.msk [vmem:[%s4905 + $0x2e] sm:$0x1] %vm2419, %v5172
        %5182 = vst.msk [vmem:[%s4905 + $0x3e] sm:$0x1] %vm2419, %v5174
        %v5184 = vrot.slane %v4890, 4
        %v5186 = vadd.f32 %v5184, %v2399
        %v5188 = vrot.slane %v5186, 3
        %v5189 = vsel %vm2404, %v5186, %v5188
        %v5190 = vsel %vm2406, %v5186, %v5188
        %v5191 = vrot.slane %v5190, 1
        %v5192 = vsel %vm2409, %v5186, %v5188
        %v5193 = vrot.slane %v5192, 2
        %v5194 = vsel %vm2412, %v5186, %v5188
        %v5195 = vrot.slane %v5194, 3
        %5200 = vst.msk [vmem:[%s4905 + $0xf] sm:$0x1] %vm2419, %v5189
        %5201 = vst.msk [vmem:[%s4905 + $0x1f] sm:$0x1] %vm2419, %v5191
        %5202 = vst.msk [vmem:[%s4905 + $0x2f] sm:$0x1] %vm2419, %v5193
        %5203 = vst.msk [vmem:[%s4905 + $0x3f] sm:$0x1] %vm2419, %v5195
        %s5204 = sand.u32 %s112, 1
        %s5205 = scalar_lea.sflag [#allocation4], %s5204
        %s5206 = sand.u32 %s112, 1
        %s5207 = smul.addr %s5206, 128
        %s5208 = scalar_lea.vmem [#allocation5], %s5207
        // Predicated region
        $region37: #{tpu_custom_call.1} parent=31 // pred_check
          %p5209 = pneg %p122
        $region38: #{tpu_custom_call.1} parent=31 // pred_check_branch
          %5211 = sbr.rel (%p5209) target = $region40
        $region39: #{tpu_custom_call.1} parent=31 // pred_region
          %s5212 = smul.u32 2, %s24
          %s5213 = smul.u32 2, %s25
          %5215 = vsyncadd %s5205, 0
          %s5216 = smul.addr %s5212, 8
          %s5217 = sadd.s32 %s5213, %s5216
          %s5218 = smul.addr %s5217, 8
          %s5219 = scalar_lea.hbm %s3, %s5218
          %s5220 = sshll.u32 %s5208, 4
          %s5221 = int_to_ptr.vmem [resolvable:$true] %s5220
          %s5222 = sshll.u32 %s5219, 4
          %s5223 = int_to_ptr.hbm [resolvable:$true] %s5222
          %5228 = dma.vmem_to_hbm [thread:$0]  %s5221, 2048, %s5223, %s5205, 128, 128, 8
        $region40: #{tpu_custom_call.1} parent=31 // pred_fallthru
          _
      $region32: #{tpu_custom_call.1} parent=5 // pred_fallthru
        _
      %p5229 = scmp.le.s32.totalorder 2, %s15
      // Predicated region
      $region41: #{tpu_custom_call.1} parent=5 // pred_check
        %p5230 = pneg %p5229
      $region42: #{tpu_custom_call.1} parent=5 // pred_check_branch
        %5232 = sbr.rel (%p5230) target = $region44
      $region43: #{tpu_custom_call.1} parent=5 // pred_region
        %s5233 = ssub.s32 %s15, 2
        // Predicated region
        $region45: #{tpu_custom_call.1} parent=43 // pred_check
          %p5234 = pneg %p128
        $region46: #{tpu_custom_call.1} parent=43 // pred_check_branch
          %5236 = sbr.rel (%p5234) target = $region48
        $region47: #{tpu_custom_call.1} parent=43 // pred_region
          %s5237 = sand.u32 %s113, 1
          %s5238 = scalar_lea.sflag [#allocation4], %s5237
          %s5239 = sand.u32 %s113, 1
          %s5240 = smul.addr %s5239, 128
          %s5241 = scalar_lea.vmem [#allocation5], %s5240
          %5243 = dma.done %s5238, 2048
        $region48: #{tpu_custom_call.1} parent=43 // pred_fallthru
          _
      $region44: #{tpu_custom_call.1} parent=5 // pred_fallthru
        _
    $region6: #{tpu_custom_call.1} parent=1 // loop_footer
      %s19 = sadd.s32 1, %s15
    $region7: #{tpu_custom_call.1} parent=1 // loop_footer_branch
      %14 = sbr.rel target = $region3
    $region8: #{tpu_custom_call.1} parent=1 // loop_exit
      _
    %5244 = vsyncpa [#allocation3], 1
    %s5245 = scalar_lea.sflag [#allocation3], 1
    %5246 = vsyncpa %s5245, 1
    %5247 = vsyncpa [#allocation4], 1
    %s5248 = scalar_lea.sflag [#allocation4], 1
    %5249 = vsyncpa %s5248, 1

</llo_original>
